<compile_context>
chip_gen: v7x
topology: tpu7x:2x2x1
jax: 0.10.0
libtpu: 0.0.40
codegen_flags: <defaults>
</compile_context>

<pallas_src>
import jax
import jax.numpy as jnp
import numpy as np
from jax.experimental import pallas as pl
from jax.experimental.pallas import tpu as pltpu

# ---- module hyper-parameters (consistent with NeRF.__init__) ----
D = 8                  # number of pts_linears
W = 32                 # hidden width (kept small for the test; 256 in the paper)
INPUT_CH = 3           # xyz channels
INPUT_CH_VIEWS = 3     # view-direction channels
SKIPS = (4,)           # skip connection after layer 4
OUT_CH = 4             # rgb(3) + alpha(1)
C_IN = INPUT_CH + INPUT_CH_VIEWS


def nerf_kernel(x_ref, wk_ref, bpts_ref, wp_ref, wh_ref, bh_ref,
                wvf_ref, wvv_ref, bv_ref, wr_ref, br_ref, o_ref):
    n = x_ref.shape[1]                                # tile_n (static)
    x = x_ref[...]                                    # (C_IN, n) f32
    pts = x[:INPUT_CH, :]                             # (3, n)
    views = x[INPUT_CH:INPUT_CH + INPUT_CH_VIEWS, :]  # (3, n)

    # Round the tiny inputs to bf16 values (kept in f32 for the VPU path) so the
    # products match the bf16 MXU products exactly.
    pts_r = pts.astype(jnp.bfloat16).astype(jnp.float32)
    views_r = views.astype(jnp.bfloat16).astype(jnp.float32)

    def mxu(w_bf16, h_bf16):
        # (out, k) @ (k, n) on the MXU, f32 accumulation. h must already be bf16.
        return jnp.dot(w_bf16, h_bf16, preferred_element_type=jnp.float32)

    # ---- K=3 pts contributions (layer 0 and skip layer), shared row broadcasts ----
    w0 = wk_ref[0].astype(jnp.float32)                # (W, 3) layer-0 weight
    w5 = wk_ref[1].astype(jnp.float32)                # (W, 3) skip-layer pts-part
    z0 = bpts_ref[0]                                  # (W, 1) layer-0 bias (broadcasts)
    z5 = jnp.zeros((W, n), jnp.float32)               # skip-layer pts contribution
    for j in range(INPUT_CH):
        row = jax.lax.broadcast_in_dim(pts_r[j, :], (W, n), (1,))  # hoisted, shared
        z0 = z0 + w0[:, j:j + 1] * row
        z5 = z5 + w5[:, j:j + 1] * row

    # ---- layer 0 (in=3): VPU; carry h in bf16 between layers ----
    h = jnp.maximum(z0, 0.0).astype(jnp.bfloat16)     # (W, n) bf16

    # ---- layers 1..D-1: MXU; skip concat replaced by the precomputed pts term ----
    for i in range(1, D):
        z = mxu(wp_ref[i - 1], h)                     # (W, n) f32
        if (i - 1) in SKIPS:                          # layer right after the skip concat
            z = z + z5
        h = jnp.maximum(z + bpts_ref[i], 0.0).astype(jnp.bfloat16)

    # ---- fused feature+alpha head: rows [0:W) = feature, row W = alpha ----
    head = mxu(wh_ref[...], h) + bh_ref[...]          # (W+1, n) f32
    feature = head[:W, :].astype(jnp.bfloat16)        # (W, n) bf16
    alpha = head[W:W + 1, :]                          # (1, n) f32

    # ---- views branch (concat replaced by split weights; K=3 part on the VPU) ----
    wvv = wvv_ref[...].astype(jnp.float32)            # (W//2, 3)
    zv = jnp.zeros((W // 2, n), jnp.float32)
    for j in range(INPUT_CH_VIEWS):
        rowv = jax.lax.broadcast_in_dim(views_r[j, :], (W // 2, n), (1,))
        zv = zv + wvv[:, j:j + 1] * rowv
    hv = mxu(wvf_ref[...], feature) + zv + bv_ref[...]
    hv = jnp.maximum(hv, 0.0).astype(jnp.bfloat16)    # (W//2, n) bf16

    rgb = mxu(wr_ref[...], hv) + br_ref[...]          # (3, n) f32

    # ---- single unmasked full-block store (sublane concat rides the XLU slot) ----
    out = jnp.concatenate([rgb, alpha], axis=0)       # (4, n)
    o_ref[...] = out.astype(o_ref.dtype)


def init_params(key):
    """Synthetic weights with the exact shapes NeRF.__init__ creates (PyTorch (out,in))."""
    dims = []
    for i in range(D):
        if i == 0:
            din = INPUT_CH
        elif (i - 1) in SKIPS:
            din = W + INPUT_CH
        else:
            din = W
        dims.append((din, W))

    n_layers = D + 4  # pts layers + feature + alpha + views + rgb
    keys = jax.random.split(key, 2 * n_layers)
    kit = iter(keys)

    def lin(din, dout):
        w = 0.1 * jax.random.normal(next(kit), (dout, din), jnp.float32)
        b = 0.1 * jax.random.normal(next(kit), (dout,), jnp.float32)
        return w, b

    params = {"pts": [lin(din, dout) for din, dout in dims]}
    params["feature"] = lin(W, W)
    params["alpha"] = lin(W, 1)
    params["views"] = lin(W + INPUT_CH_VIEWS, W // 2)
    params["rgb"] = lin(W // 2, 3)
    return params


def pack_params(params):
    """Split/stack weights for the kernel; matmul weights bf16, biases (out,1) f32."""
    BF16 = jnp.bfloat16
    pts = params["pts"]

    w0 = pts[0][0]                                    # (W, 3)
    b_list = [pts[0][1].reshape(W, 1)]

    wp_list = []
    w5p = None
    for i in range(1, D):
        w, b = pts[i]
        if (i - 1) in SKIPS:
            # PyTorch concat order is [input_pts, h]: cols [:3] -> pts, [3:] -> h.
            w5p = w[:, :INPUT_CH]
            wp_list.append(w[:, INPUT_CH:])
        else:
            wp_list.append(w)
        b_list.append(b.reshape(W, 1))

    wk = jnp.stack([w0, w5p], axis=0).astype(BF16)    # (2, W, 3)   bf16
    wp = jnp.stack(wp_list, axis=0).astype(BF16)      # (D-1, W, W) bf16
    bpts = jnp.stack(b_list, axis=0)                  # (D, W, 1)   f32

    wf, bfeat = params["feature"]                     # (W, W), (W,)
    wa, ba = params["alpha"]                          # (1, W), (1,)
    wh = jnp.concatenate([wf, wa], axis=0).astype(BF16)          # (W+1, W)
    bh = jnp.concatenate([bfeat, ba], axis=0).reshape(W + 1, 1)  # (W+1, 1)

    wv, bv = params["views"]                          # (W//2, W+3), (W//2,)
    wvf = wv[:, :W].astype(BF16)                      # (W//2, W)   (concat order [feature, views])
    wvv = wv[:, W:].astype(BF16)                      # (W//2, 3)
    bv = bv.reshape(W // 2, 1)

    wr, br = params["rgb"]                            # (3, W//2), (3,)
    wr = wr.astype(BF16)
    br = br.reshape(3, 1)

    return [wk, bpts, wp, wh, bh, wvf, wvv, bv, wr, br]


def _pick_tile_n(n_points, max_tile=4096):
    """Large tile to amortize per-grid-step overhead, multiple of 256, but capped so
    there are >= 2 grid steps whenever possible (v7x has 2 TensorCores)."""
    def rup(v, m=256):
        return ((v + m - 1) // m) * m
    tile = min(max_tile, rup(n_points))
    if -(-n_points // tile) < 2:
        tile = max(256, rup(-(-n_points // 2)))
    return tile


def nerf_forward_cn(x_cn, params, *, tile_n=None):
    """Core entry: x_cn is feature-major (C_IN, N_pad) with N_pad a multiple of 256;
    returns (4, N_pad) = [rgb(3), alpha(1)] feature-major (no layout round-trips)."""
    C, n_pad = x_cn.shape
    assert C == C_IN and n_pad % 256 == 0
    if tile_n is None:
        tile_n = _pick_tile_n(n_pad)
    assert n_pad % tile_n == 0
    packed = pack_params(params)

    def full_block(p):
        nd = p.ndim
        return pl.BlockSpec(p.shape, lambda i, _nd=nd: (0,) * _nd)

    in_specs = [pl.BlockSpec((C_IN, tile_n), lambda i: (0, i))]
    in_specs += [full_block(p) for p in packed]

    return pl.pallas_call(
        nerf_kernel,
        out_shape=jax.ShapeDtypeStruct((OUT_CH, n_pad), jnp.float32),
        grid=(n_pad // tile_n,),
        in_specs=in_specs,
        out_specs=pl.BlockSpec((OUT_CH, tile_n), lambda i: (0, i)),
        compiler_params=pltpu.CompilerParams(
            dimension_semantics=("parallel",)),
    )(x_cn, *packed)


def nerf_forward(x, params, *, tile_n=None):
    """PyTorch-interface wrapper: x (N, input_ch + input_ch_views) -> (N, 4)."""
    N, C = x.shape
    assert C == C_IN
    if tile_n is None:
        tile_n = _pick_tile_n(N)
    n_pad = -(-N // tile_n) * tile_n
    # pad + transpose in one fused expression (XLA fuses the pad into the copy).
    x_cn = jnp.pad(x.astype(jnp.float32), ((0, n_pad - N), (0, 0))).T
    out_cn = nerf_forward_cn(x_cn, params, tile_n=tile_n)
    return jnp.transpose(out_cn[:, :N])               # (N, 4)


def nerf_reference(x, params):
    """Pure-JAX replica of NeRF.forward (use_viewdirs=True); bf16 matmul inputs,
    f32 accumulation — the same precision policy as the kernel."""
    input_pts = x[:, :INPUT_CH]
    input_views = x[:, INPUT_CH:INPUT_CH + INPUT_CH_VIEWS]

    def lin(h, wb):
        w, b = wb
        return jnp.dot(h.astype(jnp.bfloat16), w.T.astype(jnp.bfloat16),
                       preferred_element_type=jnp.float32) + b

    h = input_pts
    for i in range(D):
        h = jax.nn.relu(lin(h, params["pts"][i]))
        if i in SKIPS:
            h = jnp.concatenate([input_pts, h], axis=-1)
    alpha = lin(h, params["alpha"])
    feature = lin(h, params["feature"])
    hv = jax.nn.relu(lin(jnp.concatenate([feature, input_views], axis=-1),
                         params["views"]))
    rgb = lin(hv, params["rgb"])
    return jnp.concatenate([rgb, alpha], axis=-1)


if __name__ == "__main__":
    key = jax.random.PRNGKey(0)
    kx, kp = jax.random.split(key)

    N = 2048  # number of sample points (rays * samples); auto-tiled to 2 steps of 1024
    x = jax.random.normal(kx, (N, C_IN), jnp.float32)
    params = init_params(kp)

    out = jax.block_until_ready(nerf_forward(x, params))

    ref = nerf_reference(x, params)
    np.testing.assert_allclose(np.asarray(out), np.asarray(ref), atol=2e-3, rtol=2e-3)

    print("KERNEL_OK")
</pallas_src>

<mosaic_0001>
module attributes {stable_mosaic.version = 11 : i64} {
  func.func @nerf_kernel(%arg0: i32, %arg1: memref<6x1024xf32, #tpu.memory_space<vmem>>, %arg2: memref<2x32x3xbf16, #tpu.memory_space<vmem>>, %arg3: memref<8x32x1xf32, #tpu.memory_space<vmem>>, %arg4: memref<7x32x32xbf16, #tpu.memory_space<vmem>>, %arg5: memref<33x32xbf16, #tpu.memory_space<vmem>>, %arg6: memref<33x1xf32, #tpu.memory_space<vmem>>, %arg7: memref<16x32xbf16, #tpu.memory_space<vmem>>, %arg8: memref<16x3xbf16, #tpu.memory_space<vmem>>, %arg9: memref<16x1xf32, #tpu.memory_space<vmem>>, %arg10: memref<3x16xbf16, #tpu.memory_space<vmem>>, %arg11: memref<3x1xf32, #tpu.memory_space<vmem>>, %arg12: memref<4x1024xf32, #tpu.memory_space<vmem>>) attributes {dimension_semantics = [#tpu.dimension_semantics<parallel>], iteration_bounds = array<i64: 2>, scalar_prefetch = 0 : i64, scratch_operands = 0 : i64, tpu.core_type = #tpu.core_type<tc>, window_params = [{transform_indices = @transform_0, window_bounds = array<i64: 6, 1024>}, {pipeline_mode = #tpu.pipeline_mode<synchronous>, transform_indices = @transform_1, window_bounds = array<i64: 2, 32, 3>}, {pipeline_mode = #tpu.pipeline_mode<synchronous>, transform_indices = @transform_2, window_bounds = array<i64: 8, 32, 1>}, {pipeline_mode = #tpu.pipeline_mode<synchronous>, transform_indices = @transform_3, window_bounds = array<i64: 7, 32, 32>}, {pipeline_mode = #tpu.pipeline_mode<synchronous>, transform_indices = @transform_4, window_bounds = array<i64: 33, 32>}, {pipeline_mode = #tpu.pipeline_mode<synchronous>, transform_indices = @transform_5, window_bounds = array<i64: 33, 1>}, {pipeline_mode = #tpu.pipeline_mode<synchronous>, transform_indices = @transform_6, window_bounds = array<i64: 16, 32>}, {pipeline_mode = #tpu.pipeline_mode<synchronous>, transform_indices = @transform_7, window_bounds = array<i64: 16, 3>}, {pipeline_mode = #tpu.pipeline_mode<synchronous>, transform_indices = @transform_8, window_bounds = array<i64: 16, 1>}, {pipeline_mode = #tpu.pipeline_mode<synchronous>, transform_indices = @transform_9, window_bounds = array<i64: 3, 16>}, {pipeline_mode = #tpu.pipeline_mode<synchronous>, transform_indices = @transform_10, window_bounds = array<i64: 3, 1>}, {transform_indices = @transform_11, window_bounds = array<i64: 4, 1024>}]} {
    %c0 = arith.constant 0 : index
    %c0_0 = arith.constant 0 : index
    %0 = vector.load %arg1[%c0, %c0_0] : memref<6x1024xf32, #tpu.memory_space<vmem>>, vector<6x1024xf32>
    %1 = vector.extract_strided_slice %0 {offsets = [0, 0], sizes = [3, 1024], strides = [1, 1]} : vector<6x1024xf32> to vector<3x1024xf32>
    %2 = vector.extract_strided_slice %0 {offsets = [3, 0], sizes = [3, 1024], strides = [1, 1]} : vector<6x1024xf32> to vector<3x1024xf32>
    %3 = arith.truncf %1 : vector<3x1024xf32> to vector<3x1024xbf16>
    %4 = arith.extf %3 : vector<3x1024xbf16> to vector<3x1024xf32>
    %5 = arith.truncf %2 : vector<3x1024xf32> to vector<3x1024xbf16>
    %6 = arith.extf %5 : vector<3x1024xbf16> to vector<3x1024xf32>
    %c0_1 = arith.constant 0 : index
    %c0_2 = arith.constant 0 : index
    %c0_3 = arith.constant 0 : index
    %7 = vector.load %arg2[%c0_1, %c0_2, %c0_3] : memref<2x32x3xbf16, #tpu.memory_space<vmem>>, vector<1x32x3xbf16>
    %8 = vector.shape_cast %7 : vector<1x32x3xbf16> to vector<32x3xbf16>
    %9 = arith.extf %8 : vector<32x3xbf16> to vector<32x3xf32>
    %c1 = arith.constant 1 : index
    %c0_4 = arith.constant 0 : index
    %c0_5 = arith.constant 0 : index
    %10 = vector.load %arg2[%c1, %c0_4, %c0_5] : memref<2x32x3xbf16, #tpu.memory_space<vmem>>, vector<1x32x3xbf16>
    %11 = vector.shape_cast %10 : vector<1x32x3xbf16> to vector<32x3xbf16>
    %12 = arith.extf %11 : vector<32x3xbf16> to vector<32x3xf32>
    %c0_6 = arith.constant 0 : index
    %c0_7 = arith.constant 0 : index
    %c0_8 = arith.constant 0 : index
    %13 = vector.load %arg3[%c0_6, %c0_7, %c0_8] : memref<8x32x1xf32, #tpu.memory_space<vmem>>, vector<1x32x1xf32>
    %14 = vector.shape_cast %13 : vector<1x32x1xf32> to vector<32x1xf32>
    %cst = arith.constant 0.000000e+00 : f32
    %15 = vector.broadcast %cst : f32 to vector<32x1024xf32>
    %16 = vector.extract_strided_slice %4 {offsets = [0, 0], sizes = [1, 1024], strides = [1, 1]} : vector<3x1024xf32> to vector<1x1024xf32>
    %17 = vector.shape_cast %16 : vector<1x1024xf32> to vector<1024xf32>
    %18 = vector.shape_cast %17 : vector<1024xf32> to vector<1x1024xf32>
    %19 = vector.broadcast %18 : vector<1x1024xf32> to vector<32x1024xf32>
    %20 = vector.extract_strided_slice %9 {offsets = [0, 0], sizes = [32, 1], strides = [1, 1]} : vector<32x3xf32> to vector<32x1xf32>
    %21 = vector.broadcast %20 : vector<32x1xf32> to vector<32x1024xf32>
    %22 = arith.mulf %21, %19 : vector<32x1024xf32>
    %23 = vector.broadcast %14 : vector<32x1xf32> to vector<32x1024xf32>
    %24 = arith.addf %23, %22 : vector<32x1024xf32>
    %25 = vector.extract_strided_slice %12 {offsets = [0, 0], sizes = [32, 1], strides = [1, 1]} : vector<32x3xf32> to vector<32x1xf32>
    %26 = vector.broadcast %25 : vector<32x1xf32> to vector<32x1024xf32>
    %27 = arith.mulf %26, %19 : vector<32x1024xf32>
    %28 = arith.addf %15, %27 : vector<32x1024xf32>
    %29 = vector.extract_strided_slice %4 {offsets = [1, 0], sizes = [1, 1024], strides = [1, 1]} : vector<3x1024xf32> to vector<1x1024xf32>
    %30 = vector.shape_cast %29 : vector<1x1024xf32> to vector<1024xf32>
    %31 = vector.shape_cast %30 : vector<1024xf32> to vector<1x1024xf32>
    %32 = vector.broadcast %31 : vector<1x1024xf32> to vector<32x1024xf32>
    %33 = vector.extract_strided_slice %9 {offsets = [0, 1], sizes = [32, 1], strides = [1, 1]} : vector<32x3xf32> to vector<32x1xf32>
    %34 = vector.broadcast %33 : vector<32x1xf32> to vector<32x1024xf32>
    %35 = arith.mulf %34, %32 : vector<32x1024xf32>
    %36 = arith.addf %24, %35 : vector<32x1024xf32>
    %37 = vector.extract_strided_slice %12 {offsets = [0, 1], sizes = [32, 1], strides = [1, 1]} : vector<32x3xf32> to vector<32x1xf32>
    %38 = vector.broadcast %37 : vector<32x1xf32> to vector<32x1024xf32>
    %39 = arith.mulf %38, %32 : vector<32x1024xf32>
    %40 = arith.addf %28, %39 : vector<32x1024xf32>
    %41 = vector.extract_strided_slice %4 {offsets = [2, 0], sizes = [1, 1024], strides = [1, 1]} : vector<3x1024xf32> to vector<1x1024xf32>
    %42 = vector.shape_cast %41 : vector<1x1024xf32> to vector<1024xf32>
    %43 = vector.shape_cast %42 : vector<1024xf32> to vector<1x1024xf32>
    %44 = vector.broadcast %43 : vector<1x1024xf32> to vector<32x1024xf32>
    %45 = vector.extract_strided_slice %9 {offsets = [0, 2], sizes = [32, 1], strides = [1, 1]} : vector<32x3xf32> to vector<32x1xf32>
    %46 = vector.broadcast %45 : vector<32x1xf32> to vector<32x1024xf32>
    %47 = arith.mulf %46, %44 : vector<32x1024xf32>
    %48 = arith.addf %36, %47 : vector<32x1024xf32>
    %49 = vector.extract_strided_slice %12 {offsets = [0, 2], sizes = [32, 1], strides = [1, 1]} : vector<32x3xf32> to vector<32x1xf32>
    %50 = vector.broadcast %49 : vector<32x1xf32> to vector<32x1024xf32>
    %51 = arith.mulf %50, %44 : vector<32x1024xf32>
    %52 = arith.addf %40, %51 : vector<32x1024xf32>
    %cst_9 = arith.constant 0.000000e+00 : f32
    %53 = vector.broadcast %cst_9 : f32 to vector<32x1024xf32>
    %54 = arith.maximumf %48, %53 : vector<32x1024xf32>
    %55 = arith.truncf %54 : vector<32x1024xf32> to vector<32x1024xbf16>
    %c0_10 = arith.constant 0 : index
    %c0_11 = arith.constant 0 : index
    %c0_12 = arith.constant 0 : index
    %56 = vector.load %arg4[%c0_10, %c0_11, %c0_12] : memref<7x32x32xbf16, #tpu.memory_space<vmem>>, vector<1x32x32xbf16>
    %57 = vector.shape_cast %56 : vector<1x32x32xbf16> to vector<32x32xbf16>
    %cst_13 = arith.constant dense<0.000000e+00> : vector<32x1024xf32>
    %58 = tpu.matmul %57, %55, %cst_13 {dimension_numbers = #tpu.dot_dimension_numbers<[1], [0], [0], [1], [0, 0, 1, 1], [], []>} : vector<32x32xbf16>, vector<32x1024xbf16>, vector<32x1024xf32> -> vector<32x1024xf32>
    %c1_14 = arith.constant 1 : index
    %c0_15 = arith.constant 0 : index
    %c0_16 = arith.constant 0 : index
    %59 = vector.load %arg3[%c1_14, %c0_15, %c0_16] : memref<8x32x1xf32, #tpu.memory_space<vmem>>, vector<1x32x1xf32>
    %60 = vector.shape_cast %59 : vector<1x32x1xf32> to vector<32x1xf32>
    %61 = vector.broadcast %60 : vector<32x1xf32> to vector<32x1024xf32>
    %62 = arith.addf %58, %61 : vector<32x1024xf32>
    %cst_17 = arith.constant 0.000000e+00 : f32
    %63 = vector.broadcast %cst_17 : f32 to vector<32x1024xf32>
    %64 = arith.maximumf %62, %63 : vector<32x1024xf32>
    %65 = arith.truncf %64 : vector<32x1024xf32> to vector<32x1024xbf16>
    %c1_18 = arith.constant 1 : index
    %c0_19 = arith.constant 0 : index
    %c0_20 = arith.constant 0 : index
    %66 = vector.load %arg4[%c1_18, %c0_19, %c0_20] : memref<7x32x32xbf16, #tpu.memory_space<vmem>>, vector<1x32x32xbf16>
    %67 = vector.shape_cast %66 : vector<1x32x32xbf16> to vector<32x32xbf16>
    %cst_21 = arith.constant dense<0.000000e+00> : vector<32x1024xf32>
    %68 = tpu.matmul %67, %65, %cst_21 {dimension_numbers = #tpu.dot_dimension_numbers<[1], [0], [0], [1], [0, 0, 1, 1], [], []>} : vector<32x32xbf16>, vector<32x1024xbf16>, vector<32x1024xf32> -> vector<32x1024xf32>
    %c2 = arith.constant 2 : index
    %c0_22 = arith.constant 0 : index
    %c0_23 = arith.constant 0 : index
    %69 = vector.load %arg3[%c2, %c0_22, %c0_23] : memref<8x32x1xf32, #tpu.memory_space<vmem>>, vector<1x32x1xf32>
    %70 = vector.shape_cast %69 : vector<1x32x1xf32> to vector<32x1xf32>
    %71 = vector.broadcast %70 : vector<32x1xf32> to vector<32x1024xf32>
    %72 = arith.addf %68, %71 : vector<32x1024xf32>
    %cst_24 = arith.constant 0.000000e+00 : f32
    %73 = vector.broadcast %cst_24 : f32 to vector<32x1024xf32>
    %74 = arith.maximumf %72, %73 : vector<32x1024xf32>
    %75 = arith.truncf %74 : vector<32x1024xf32> to vector<32x1024xbf16>
    %c2_25 = arith.constant 2 : index
    %c0_26 = arith.constant 0 : index
    %c0_27 = arith.constant 0 : index
    %76 = vector.load %arg4[%c2_25, %c0_26, %c0_27] : memref<7x32x32xbf16, #tpu.memory_space<vmem>>, vector<1x32x32xbf16>
    %77 = vector.shape_cast %76 : vector<1x32x32xbf16> to vector<32x32xbf16>
    %cst_28 = arith.constant dense<0.000000e+00> : vector<32x1024xf32>
    %78 = tpu.matmul %77, %75, %cst_28 {dimension_numbers = #tpu.dot_dimension_numbers<[1], [0], [0], [1], [0, 0, 1, 1], [], []>} : vector<32x32xbf16>, vector<32x1024xbf16>, vector<32x1024xf32> -> vector<32x1024xf32>
    %c3 = arith.constant 3 : index
    %c0_29 = arith.constant 0 : index
    %c0_30 = arith.constant 0 : index
    %79 = vector.load %arg3[%c3, %c0_29, %c0_30] : memref<8x32x1xf32, #tpu.memory_space<vmem>>, vector<1x32x1xf32>
    %80 = vector.shape_cast %79 : vector<1x32x1xf32> to vector<32x1xf32>
    %81 = vector.broadcast %80 : vector<32x1xf32> to vector<32x1024xf32>
    %82 = arith.addf %78, %81 : vector<32x1024xf32>
    %cst_31 = arith.constant 0.000000e+00 : f32
    %83 = vector.broadcast %cst_31 : f32 to vector<32x1024xf32>
    %84 = arith.maximumf %82, %83 : vector<32x1024xf32>
    %85 = arith.truncf %84 : vector<32x1024xf32> to vector<32x1024xbf16>
    %c3_32 = arith.constant 3 : index
    %c0_33 = arith.constant 0 : index
    %c0_34 = arith.constant 0 : index
    %86 = vector.load %arg4[%c3_32, %c0_33, %c0_34] : memref<7x32x32xbf16, #tpu.memory_space<vmem>>, vector<1x32x32xbf16>
    %87 = vector.shape_cast %86 : vector<1x32x32xbf16> to vector<32x32xbf16>
    %cst_35 = arith.constant dense<0.000000e+00> : vector<32x1024xf32>
    %88 = tpu.matmul %87, %85, %cst_35 {dimension_numbers = #tpu.dot_dimension_numbers<[1], [0], [0], [1], [0, 0, 1, 1], [], []>} : vector<32x32xbf16>, vector<32x1024xbf16>, vector<32x1024xf32> -> vector<32x1024xf32>
    %c4 = arith.constant 4 : index
    %c0_36 = arith.constant 0 : index
    %c0_37 = arith.constant 0 : index
    %89 = vector.load %arg3[%c4, %c0_36, %c0_37] : memref<8x32x1xf32, #tpu.memory_space<vmem>>, vector<1x32x1xf32>
    %90 = vector.shape_cast %89 : vector<1x32x1xf32> to vector<32x1xf32>
    %91 = vector.broadcast %90 : vector<32x1xf32> to vector<32x1024xf32>
    %92 = arith.addf %88, %91 : vector<32x1024xf32>
    %cst_38 = arith.constant 0.000000e+00 : f32
    %93 = vector.broadcast %cst_38 : f32 to vector<32x1024xf32>
    %94 = arith.maximumf %92, %93 : vector<32x1024xf32>
    %95 = arith.truncf %94 : vector<32x1024xf32> to vector<32x1024xbf16>
    %c4_39 = arith.constant 4 : index
    %c0_40 = arith.constant 0 : index
    %c0_41 = arith.constant 0 : index
    %96 = vector.load %arg4[%c4_39, %c0_40, %c0_41] : memref<7x32x32xbf16, #tpu.memory_space<vmem>>, vector<1x32x32xbf16>
    %97 = vector.shape_cast %96 : vector<1x32x32xbf16> to vector<32x32xbf16>
    %cst_42 = arith.constant dense<0.000000e+00> : vector<32x1024xf32>
    %98 = tpu.matmul %97, %95, %cst_42 {dimension_numbers = #tpu.dot_dimension_numbers<[1], [0], [0], [1], [0, 0, 1, 1], [], []>} : vector<32x32xbf16>, vector<32x1024xbf16>, vector<32x1024xf32> -> vector<32x1024xf32>
    %99 = arith.addf %98, %52 : vector<32x1024xf32>
    %c5 = arith.constant 5 : index
    %c0_43 = arith.constant 0 : index
    %c0_44 = arith.constant 0 : index
    %100 = vector.load %arg3[%c5, %c0_43, %c0_44] : memref<8x32x1xf32, #tpu.memory_space<vmem>>, vector<1x32x1xf32>
    %101 = vector.shape_cast %100 : vector<1x32x1xf32> to vector<32x1xf32>
    %102 = vector.broadcast %101 : vector<32x1xf32> to vector<32x1024xf32>
    %103 = arith.addf %99, %102 : vector<32x1024xf32>
    %cst_45 = arith.constant 0.000000e+00 : f32
    %104 = vector.broadcast %cst_45 : f32 to vector<32x1024xf32>
    %105 = arith.maximumf %103, %104 : vector<32x1024xf32>
    %106 = arith.truncf %105 : vector<32x1024xf32> to vector<32x1024xbf16>
    %c5_46 = arith.constant 5 : index
    %c0_47 = arith.constant 0 : index
    %c0_48 = arith.constant 0 : index
    %107 = vector.load %arg4[%c5_46, %c0_47, %c0_48] : memref<7x32x32xbf16, #tpu.memory_space<vmem>>, vector<1x32x32xbf16>
    %108 = vector.shape_cast %107 : vector<1x32x32xbf16> to vector<32x32xbf16>
    %cst_49 = arith.constant dense<0.000000e+00> : vector<32x1024xf32>
    %109 = tpu.matmul %108, %106, %cst_49 {dimension_numbers = #tpu.dot_dimension_numbers<[1], [0], [0], [1], [0, 0, 1, 1], [], []>} : vector<32x32xbf16>, vector<32x1024xbf16>, vector<32x1024xf32> -> vector<32x1024xf32>
    %c6 = arith.constant 6 : index
    %c0_50 = arith.constant 0 : index
    %c0_51 = arith.constant 0 : index
    %110 = vector.load %arg3[%c6, %c0_50, %c0_51] : memref<8x32x1xf32, #tpu.memory_space<vmem>>, vector<1x32x1xf32>
    %111 = vector.shape_cast %110 : vector<1x32x1xf32> to vector<32x1xf32>
    %112 = vector.broadcast %111 : vector<32x1xf32> to vector<32x1024xf32>
    %113 = arith.addf %109, %112 : vector<32x1024xf32>
    %cst_52 = arith.constant 0.000000e+00 : f32
    %114 = vector.broadcast %cst_52 : f32 to vector<32x1024xf32>
    %115 = arith.maximumf %113, %114 : vector<32x1024xf32>
    %116 = arith.truncf %115 : vector<32x1024xf32> to vector<32x1024xbf16>
    %c6_53 = arith.constant 6 : index
    %c0_54 = arith.constant 0 : index
    %c0_55 = arith.constant 0 : index
    %117 = vector.load %arg4[%c6_53, %c0_54, %c0_55] : memref<7x32x32xbf16, #tpu.memory_space<vmem>>, vector<1x32x32xbf16>
    %118 = vector.shape_cast %117 : vector<1x32x32xbf16> to vector<32x32xbf16>
    %cst_56 = arith.constant dense<0.000000e+00> : vector<32x1024xf32>
    %119 = tpu.matmul %118, %116, %cst_56 {dimension_numbers = #tpu.dot_dimension_numbers<[1], [0], [0], [1], [0, 0, 1, 1], [], []>} : vector<32x32xbf16>, vector<32x1024xbf16>, vector<32x1024xf32> -> vector<32x1024xf32>
    %c7 = arith.constant 7 : index
    %c0_57 = arith.constant 0 : index
    %c0_58 = arith.constant 0 : index
    %120 = vector.load %arg3[%c7, %c0_57, %c0_58] : memref<8x32x1xf32, #tpu.memory_space<vmem>>, vector<1x32x1xf32>
    %121 = vector.shape_cast %120 : vector<1x32x1xf32> to vector<32x1xf32>
    %122 = vector.broadcast %121 : vector<32x1xf32> to vector<32x1024xf32>
    %123 = arith.addf %119, %122 : vector<32x1024xf32>
    %cst_59 = arith.constant 0.000000e+00 : f32
    %124 = vector.broadcast %cst_59 : f32 to vector<32x1024xf32>
    %125 = arith.maximumf %123, %124 : vector<32x1024xf32>
    %126 = arith.truncf %125 : vector<32x1024xf32> to vector<32x1024xbf16>
    %c0_60 = arith.constant 0 : index
    %c0_61 = arith.constant 0 : index
    %127 = vector.load %arg5[%c0_60, %c0_61] : memref<33x32xbf16, #tpu.memory_space<vmem>>, vector<33x32xbf16>
    %cst_62 = arith.constant dense<0.000000e+00> : vector<33x1024xf32>
    %128 = tpu.matmul %127, %126, %cst_62 {dimension_numbers = #tpu.dot_dimension_numbers<[1], [0], [0], [1], [0, 0, 1, 1], [], []>} : vector<33x32xbf16>, vector<32x1024xbf16>, vector<33x1024xf32> -> vector<33x1024xf32>
    %c0_63 = arith.constant 0 : index
    %c0_64 = arith.constant 0 : index
    %129 = vector.load %arg6[%c0_63, %c0_64] : memref<33x1xf32, #tpu.memory_space<vmem>>, vector<33x1xf32>
    %130 = vector.broadcast %129 : vector<33x1xf32> to vector<33x1024xf32>
    %131 = arith.addf %128, %130 : vector<33x1024xf32>
    %132 = vector.extract_strided_slice %131 {offsets = [0, 0], sizes = [32, 1024], strides = [1, 1]} : vector<33x1024xf32> to vector<32x1024xf32>
    %133 = arith.truncf %132 : vector<32x1024xf32> to vector<32x1024xbf16>
    %134 = vector.extract_strided_slice %131 {offsets = [32, 0], sizes = [1, 1024], strides = [1, 1]} : vector<33x1024xf32> to vector<1x1024xf32>
    %c0_65 = arith.constant 0 : index
    %c0_66 = arith.constant 0 : index
    %135 = vector.load %arg8[%c0_65, %c0_66] : memref<16x3xbf16, #tpu.memory_space<vmem>>, vector<16x3xbf16>
    %136 = arith.extf %135 : vector<16x3xbf16> to vector<16x3xf32>
    %cst_67 = arith.constant 0.000000e+00 : f32
    %137 = vector.broadcast %cst_67 : f32 to vector<16x1024xf32>
    %138 = vector.extract_strided_slice %6 {offsets = [0, 0], sizes = [1, 1024], strides = [1, 1]} : vector<3x1024xf32> to vector<1x1024xf32>
    %139 = vector.shape_cast %138 : vector<1x1024xf32> to vector<1024xf32>
    %140 = vector.shape_cast %139 : vector<1024xf32> to vector<1x1024xf32>
    %141 = vector.broadcast %140 : vector<1x1024xf32> to vector<16x1024xf32>
    %142 = vector.extract_strided_slice %136 {offsets = [0, 0], sizes = [16, 1], strides = [1, 1]} : vector<16x3xf32> to vector<16x1xf32>
    %143 = vector.broadcast %142 : vector<16x1xf32> to vector<16x1024xf32>
    %144 = arith.mulf %143, %141 : vector<16x1024xf32>
    %145 = arith.addf %137, %144 : vector<16x1024xf32>
    %146 = vector.extract_strided_slice %6 {offsets = [1, 0], sizes = [1, 1024], strides = [1, 1]} : vector<3x1024xf32> to vector<1x1024xf32>
    %147 = vector.shape_cast %146 : vector<1x1024xf32> to vector<1024xf32>
    %148 = vector.shape_cast %147 : vector<1024xf32> to vector<1x1024xf32>
    %149 = vector.broadcast %148 : vector<1x1024xf32> to vector<16x1024xf32>
    %150 = vector.extract_strided_slice %136 {offsets = [0, 1], sizes = [16, 1], strides = [1, 1]} : vector<16x3xf32> to vector<16x1xf32>
    %151 = vector.broadcast %150 : vector<16x1xf32> to vector<16x1024xf32>
    %152 = arith.mulf %151, %149 : vector<16x1024xf32>
    %153 = arith.addf %145, %152 : vector<16x1024xf32>
    %154 = vector.extract_strided_slice %6 {offsets = [2, 0], sizes = [1, 1024], strides = [1, 1]} : vector<3x1024xf32> to vector<1x1024xf32>
    %155 = vector.shape_cast %154 : vector<1x1024xf32> to vector<1024xf32>
    %156 = vector.shape_cast %155 : vector<1024xf32> to vector<1x1024xf32>
    %157 = vector.broadcast %156 : vector<1x1024xf32> to vector<16x1024xf32>
    %158 = vector.extract_strided_slice %136 {offsets = [0, 2], sizes = [16, 1], strides = [1, 1]} : vector<16x3xf32> to vector<16x1xf32>
    %159 = vector.broadcast %158 : vector<16x1xf32> to vector<16x1024xf32>
    %160 = arith.mulf %159, %157 : vector<16x1024xf32>
    %161 = arith.addf %153, %160 : vector<16x1024xf32>
    %c0_68 = arith.constant 0 : index
    %c0_69 = arith.constant 0 : index
    %162 = vector.load %arg7[%c0_68, %c0_69] : memref<16x32xbf16, #tpu.memory_space<vmem>>, vector<16x32xbf16>
    %cst_70 = arith.constant dense<0.000000e+00> : vector<16x1024xf32>
    %163 = tpu.matmul %162, %133, %cst_70 {dimension_numbers = #tpu.dot_dimension_numbers<[1], [0], [0], [1], [0, 0, 1, 1], [], []>} : vector<16x32xbf16>, vector<32x1024xbf16>, vector<16x1024xf32> -> vector<16x1024xf32>
    %164 = arith.addf %163, %161 : vector<16x1024xf32>
    %c0_71 = arith.constant 0 : index
    %c0_72 = arith.constant 0 : index
    %165 = vector.load %arg9[%c0_71, %c0_72] : memref<16x1xf32, #tpu.memory_space<vmem>>, vector<16x1xf32>
    %166 = vector.broadcast %165 : vector<16x1xf32> to vector<16x1024xf32>
    %167 = arith.addf %164, %166 : vector<16x1024xf32>
    %cst_73 = arith.constant 0.000000e+00 : f32
    %168 = vector.broadcast %cst_73 : f32 to vector<16x1024xf32>
    %169 = arith.maximumf %167, %168 : vector<16x1024xf32>
    %170 = arith.truncf %169 : vector<16x1024xf32> to vector<16x1024xbf16>
    %c0_74 = arith.constant 0 : index
    %c0_75 = arith.constant 0 : index
    %171 = vector.load %arg10[%c0_74, %c0_75] : memref<3x16xbf16, #tpu.memory_space<vmem>>, vector<3x16xbf16>
    %cst_76 = arith.constant dense<0.000000e+00> : vector<3x1024xf32>
    %172 = tpu.matmul %171, %170, %cst_76 {dimension_numbers = #tpu.dot_dimension_numbers<[1], [0], [0], [1], [0, 0, 1, 1], [], []>} : vector<3x16xbf16>, vector<16x1024xbf16>, vector<3x1024xf32> -> vector<3x1024xf32>
    %c0_77 = arith.constant 0 : index
    %c0_78 = arith.constant 0 : index
    %173 = vector.load %arg11[%c0_77, %c0_78] : memref<3x1xf32, #tpu.memory_space<vmem>>, vector<3x1xf32>
    %174 = vector.broadcast %173 : vector<3x1xf32> to vector<3x1024xf32>
    %175 = arith.addf %172, %174 : vector<3x1024xf32>
    %176 = tpu.concatenate %175, %134 in 0 : vector<3x1024xf32>, vector<1x1024xf32> -> vector<4x1024xf32>
    %c0_79 = arith.constant 0 : index
    %c0_80 = arith.constant 0 : index
    %177 = vector.load %arg12[%c0_79, %c0_80] : memref<4x1024xf32, #tpu.memory_space<vmem>>, vector<4x1024xf32>
    tpu.vector_store %arg12[%c0_79, %c0_80], %176 {strides = array<i32>} : memref<4x1024xf32, #tpu.memory_space<vmem>>, vector<4x1024xf32>,
    return
  }
  func.func @transform_0(%arg0: i32) -> (i32, i32) {
    %c0_i32 = arith.constant 0 : i32
    %c0_i32_0 = arith.constant 0 : i32
    return %c0_i32, %arg0 : i32, i32
  }
  func.func @transform_1(%arg0: i32) -> (i32, i32, i32) {
    %c0_i32 = arith.constant 0 : i32
    %c0_i32_0 = arith.constant 0 : i32
    %c0_i32_1 = arith.constant 0 : i32
    %c0_i32_2 = arith.constant 0 : i32
    return %c0_i32, %c0_i32_0, %c0_i32_1 : i32, i32, i32
  }
  func.func @transform_2(%arg0: i32) -> (i32, i32, i32) {
    %c0_i32 = arith.constant 0 : i32
    %c0_i32_0 = arith.constant 0 : i32
    %c0_i32_1 = arith.constant 0 : i32
    %c0_i32_2 = arith.constant 0 : i32
    return %c0_i32, %c0_i32_0, %c0_i32_1 : i32, i32, i32
  }
  func.func @transform_3(%arg0: i32) -> (i32, i32, i32) {
    %c0_i32 = arith.constant 0 : i32
    %c0_i32_0 = arith.constant 0 : i32
    %c0_i32_1 = arith.constant 0 : i32
    %c0_i32_2 = arith.constant 0 : i32
    return %c0_i32, %c0_i32_0, %c0_i32_1 : i32, i32, i32
  }
  func.func @transform_4(%arg0: i32) -> (i32, i32) {
    %c0_i32 = arith.constant 0 : i32
    %c0_i32_0 = arith.constant 0 : i32
    %c0_i32_1 = arith.constant 0 : i32
    return %c0_i32, %c0_i32_0 : i32, i32
  }
  func.func @transform_5(%arg0: i32) -> (i32, i32) {
    %c0_i32 = arith.constant 0 : i32
    %c0_i32_0 = arith.constant 0 : i32
    %c0_i32_1 = arith.constant 0 : i32
    return %c0_i32, %c0_i32_0 : i32, i32
  }
  func.func @transform_6(%arg0: i32) -> (i32, i32) {
    %c0_i32 = arith.constant 0 : i32
    %c0_i32_0 = arith.constant 0 : i32
    %c0_i32_1 = arith.constant 0 : i32
    return %c0_i32, %c0_i32_0 : i32, i32
  }
  func.func @transform_7(%arg0: i32) -> (i32, i32) {
    %c0_i32 = arith.constant 0 : i32
    %c0_i32_0 = arith.constant 0 : i32
    %c0_i32_1 = arith.constant 0 : i32
    return %c0_i32, %c0_i32_0 : i32, i32
  }
  func.func @transform_8(%arg0: i32) -> (i32, i32) {
    %c0_i32 = arith.constant 0 : i32
    %c0_i32_0 = arith.constant 0 : i32
    %c0_i32_1 = arith.constant 0 : i32
    return %c0_i32, %c0_i32_0 : i32, i32
  }
  func.func @transform_9(%arg0: i32) -> (i32, i32) {
    %c0_i32 = arith.constant 0 : i32
    %c0_i32_0 = arith.constant 0 : i32
    %c0_i32_1 = arith.constant 0 : i32
    return %c0_i32, %c0_i32_0 : i32, i32
  }
  func.func @transform_10(%arg0: i32) -> (i32, i32) {
    %c0_i32 = arith.constant 0 : i32
    %c0_i32_0 = arith.constant 0 : i32
    %c0_i32_1 = arith.constant 0 : i32
    return %c0_i32, %c0_i32_0 : i32, i32
  }
  func.func @transform_11(%arg0: i32) -> (i32, i32) {
    %c0_i32 = arith.constant 0 : i32
    %c0_i32_0 = arith.constant 0 : i32
    return %c0_i32, %arg0 : i32, i32
  }
}

</mosaic_0001>

<llo_original>
// kernel: tpu_custom_call.1
$region0: #{tpu_custom_call.1}
  #allocation0 [shape = 'u32[]', space=smem, size = 0x4, offset = 0x4, fixed_abs, tag = 'smem constant byte address 0x4 - core index']
  #allocation1 [shape = 'u32[144,128]{1,0:T(1,128)}', space=vmem, size = 0x12000, scoped, tag = 'internal scratch']
  %s0 = inlined_call_operand.vmem [shape: f32[6,2048], index: 0, kind: input, shape index: {}]
  %s1 = inlined_call_operand.vmem [shape: bf16[2,32,3], index: 1, kind: input, shape index: {}]
  %s2 = inlined_call_operand.vmem [shape: f32[8,32,1], index: 2, kind: input, shape index: {}]
  %s3 = inlined_call_operand.vmem [shape: bf16[7,32,32], index: 3, kind: input, shape index: {}]
  %s4 = inlined_call_operand.vmem [shape: bf16[33,32], index: 4, kind: input, shape index: {}]
  %s5 = inlined_call_operand.vmem [shape: f32[33,1], index: 5, kind: input, shape index: {}]
  %s6 = inlined_call_operand.vmem [shape: bf16[16,32], index: 6, kind: input, shape index: {}]
  %s7 = inlined_call_operand.vmem [shape: bf16[16,3], index: 7, kind: input, shape index: {}]
  %s8 = inlined_call_operand.vmem [shape: f32[16,1], index: 8, kind: input, shape index: {}]
  %s9 = inlined_call_operand.vmem [shape: bf16[3,16], index: 9, kind: input, shape index: {}]
  %s10 = inlined_call_operand.vmem [shape: f32[3,1], index: 10, kind: input, shape index: {}]
  %s11 = inlined_call_operand.hbm [shape: f32[4,2048], index: 11, kind: output, shape index: {}]
  %s12 = sld [smem:[#allocation0]]
  $region77: #{tpu_custom_call.1} parent=0
    _
  %s14 = ssub.s32 1, %s12
  %s15 = scalar_select 0, %s14, %s12
  $region1: #{tpu_custom_call.1} parent=0
    #allocation2 [shape = 'u8[32768]{0}', space=vmem, size = 0x8000, scoped, tag = 'output window, operand 0']
    #allocation3 [shape = 's32[2]{0}', space=sflag, size = 0x8, scoped, tag = 'scoped memory for tpu_custom_call.1']
    %16 = vsyncpa [#allocation3], 0
    %s17 = scalar_lea.sflag [#allocation3], 1
    %18 = vsyncpa %s17, 0
    loop: start=0, step=1, limit=4
    $region2: #{tpu_custom_call.1} parent=1 // loop_pre_header
      _
    $region3: #{tpu_custom_call.1} parent=1 // loop_header
      %s20 = sphi 0, %s24
      %p21 = scmp.ge.s32.totalorder %s20, 4
      %s30 = sphi 0, %s32
      %s33 = sphi 0, %s30
      %s34 = sphi 0, %s33
      %s50 = sphi 0, %s34
      %s54 = sphi 0, %s54
      %s56 = sphi 0, %s54
      %s57 = sphi 0, %s56
      %s71 = sphi 0, %s57
      %s75 = sphi 0, %s75
      %s77 = sphi 0, %s75
      %s78 = sphi 0, %s77
      %s92 = sphi 0, %s78
      %s96 = sphi 0, %s96
      %s98 = sphi 0, %s96
      %s99 = sphi 0, %s98
      %s113 = sphi 0, %s99
      %s117 = sphi 0, %s117
      %s119 = sphi 0, %s117
      %s120 = sphi 0, %s119
      %s134 = sphi 0, %s120
      %s138 = sphi 0, %s138
      %s140 = sphi 0, %s138
      %s141 = sphi 0, %s140
      %s155 = sphi 0, %s141
      %s159 = sphi 0, %s159
      %s161 = sphi 0, %s159
      %s162 = sphi 0, %s161
      %s176 = sphi 0, %s162
      %s180 = sphi 0, %s180
      %s182 = sphi 0, %s180
      %s183 = sphi 0, %s182
      %s197 = sphi 0, %s183
      %s201 = sphi 0, %s201
      %s203 = sphi 0, %s201
      %s204 = sphi 0, %s203
      %s218 = sphi 0, %s204
      %s222 = sphi 0, %s222
      %s224 = sphi 0, %s222
      %s225 = sphi 0, %s224
      %s239 = sphi 0, %s225
      %s243 = sphi 0, %s243
      %s245 = sphi 0, %s243
      %s246 = sphi 0, %s245
      %s260 = sphi 0, %s246
      %s266 = sphi 0, %s268
      %s269 = sphi 0, %s266
      %s270 = sphi 0, %s269
      %s286 = sphi 0, %s270
    $region4: #{tpu_custom_call.1} parent=1 // loop_header_branch
      %23 = sbr.rel (%p21) target = $region8
    $region5: #{tpu_custom_call.1} parent=1 // loop_body
      %s25 = ssub.s32 %s20, 1
      %s26 = ssub.s32 %s20, 2
      %s27 = sadd.s32 %s20, 1
      %s28 = ssub.s32 %s20, %s27
      %p29 = scmp.eq.s32.totalorder %s28, 0
      %s31 = sadd.s32 %s30, 1
      %s32 = scalar_select %p29, %s30, %s31
      %p35 = pneg %p29
      %p36 = scmp.eq.s32.totalorder %s20, 1
      %p37 = por %p35, %p36
      %p38 = scmp.ne.s32.totalorder %s30, %s33
      %p39 = scmp.eq.s32.totalorder %s20, 0
      %p40 = por %p38, %p39
      %p41 = scmp.ne.s32.totalorder %s30, %s33
      %p42 = scmp.eq.s32.totalorder %s25, 1
      %p43 = por %p41, %p42
      %p44 = scmp.ne.s32.totalorder %s33, %s34
      %p45 = scmp.eq.s32.totalorder %s25, 0
      %p46 = por %p44, %p45
      %p47 = scmp.ne.s32.totalorder %s33, %s34
      %p48 = scmp.eq.s32.totalorder %s26, 1
      %p49 = por %p47, %p48
      %p51 = scmp.ne.s32.totalorder %s34, %s50
      %p52 = scmp.eq.s32.totalorder %s26, 0
      %p53 = por %p51, %p52
      %s55 = sadd.s32 %s54, 1
      %p58 = scmp.eq.s32.totalorder %s20, 1
      %p59 = scmp.ne.s32.totalorder %s54, %s56
      %p60 = scmp.eq.s32.totalorder %s20, 0
      %p61 = por %p59, %p60
      %p62 = scmp.ne.s32.totalorder %s54, %s56
      %p63 = scmp.eq.s32.totalorder %s25, 1
      %p64 = por %p62, %p63
      %p65 = scmp.ne.s32.totalorder %s56, %s57
      %p66 = scmp.eq.s32.totalorder %s25, 0
      %p67 = por %p65, %p66
      %p68 = scmp.ne.s32.totalorder %s56, %s57
      %p69 = scmp.eq.s32.totalorder %s26, 1
      %p70 = por %p68, %p69
      %p72 = scmp.ne.s32.totalorder %s57, %s71
      %p73 = scmp.eq.s32.totalorder %s26, 0
      %p74 = por %p72, %p73
      %s76 = sadd.s32 %s75, 1
      %p79 = scmp.eq.s32.totalorder %s20, 1
      %p80 = scmp.ne.s32.totalorder %s75, %s77
      %p81 = scmp.eq.s32.totalorder %s20, 0
      %p82 = por %p80, %p81
      %p83 = scmp.ne.s32.totalorder %s75, %s77
      %p84 = scmp.eq.s32.totalorder %s25, 1
      %p85 = por %p83, %p84
      %p86 = scmp.ne.s32.totalorder %s77, %s78
      %p87 = scmp.eq.s32.totalorder %s25, 0
      %p88 = por %p86, %p87
      %p89 = scmp.ne.s32.totalorder %s77, %s78
      %p90 = scmp.eq.s32.totalorder %s26, 1
      %p91 = por %p89, %p90
      %p93 = scmp.ne.s32.totalorder %s78, %s92
      %p94 = scmp.eq.s32.totalorder %s26, 0
      %p95 = por %p93, %p94
      %s97 = sadd.s32 %s96, 1
      %p100 = scmp.eq.s32.totalorder %s20, 1
      %p101 = scmp.ne.s32.totalorder %s96, %s98
      %p102 = scmp.eq.s32.totalorder %s20, 0
      %p103 = por %p101, %p102
      %p104 = scmp.ne.s32.totalorder %s96, %s98
      %p105 = scmp.eq.s32.totalorder %s25, 1
      %p106 = por %p104, %p105
      %p107 = scmp.ne.s32.totalorder %s98, %s99
      %p108 = scmp.eq.s32.totalorder %s25, 0
      %p109 = por %p107, %p108
      %p110 = scmp.ne.s32.totalorder %s98, %s99
      %p111 = scmp.eq.s32.totalorder %s26, 1
      %p112 = por %p110, %p111
      %p114 = scmp.ne.s32.totalorder %s99, %s113
      %p115 = scmp.eq.s32.totalorder %s26, 0
      %p116 = por %p114, %p115
      %s118 = sadd.s32 %s117, 1
      %p121 = scmp.eq.s32.totalorder %s20, 1
      %p122 = scmp.ne.s32.totalorder %s117, %s119
      %p123 = scmp.eq.s32.totalorder %s20, 0
      %p124 = por %p122, %p123
      %p125 = scmp.ne.s32.totalorder %s117, %s119
      %p126 = scmp.eq.s32.totalorder %s25, 1
      %p127 = por %p125, %p126
      %p128 = scmp.ne.s32.totalorder %s119, %s120
      %p129 = scmp.eq.s32.totalorder %s25, 0
      %p130 = por %p128, %p129
      %p131 = scmp.ne.s32.totalorder %s119, %s120
      %p132 = scmp.eq.s32.totalorder %s26, 1
      %p133 = por %p131, %p132
      %p135 = scmp.ne.s32.totalorder %s120, %s134
      %p136 = scmp.eq.s32.totalorder %s26, 0
      %p137 = por %p135, %p136
      %s139 = sadd.s32 %s138, 1
      %p142 = scmp.eq.s32.totalorder %s20, 1
      %p143 = scmp.ne.s32.totalorder %s138, %s140
      %p144 = scmp.eq.s32.totalorder %s20, 0
      %p145 = por %p143, %p144
      %p146 = scmp.ne.s32.totalorder %s138, %s140
      %p147 = scmp.eq.s32.totalorder %s25, 1
      %p148 = por %p146, %p147
      %p149 = scmp.ne.s32.totalorder %s140, %s141
      %p150 = scmp.eq.s32.totalorder %s25, 0
      %p151 = por %p149, %p150
      %p152 = scmp.ne.s32.totalorder %s140, %s141
      %p153 = scmp.eq.s32.totalorder %s26, 1
      %p154 = por %p152, %p153
      %p156 = scmp.ne.s32.totalorder %s141, %s155
      %p157 = scmp.eq.s32.totalorder %s26, 0
      %p158 = por %p156, %p157
      %s160 = sadd.s32 %s159, 1
      %p163 = scmp.eq.s32.totalorder %s20, 1
      %p164 = scmp.ne.s32.totalorder %s159, %s161
      %p165 = scmp.eq.s32.totalorder %s20, 0
      %p166 = por %p164, %p165
      %p167 = scmp.ne.s32.totalorder %s159, %s161
      %p168 = scmp.eq.s32.totalorder %s25, 1
      %p169 = por %p167, %p168
      %p170 = scmp.ne.s32.totalorder %s161, %s162
      %p171 = scmp.eq.s32.totalorder %s25, 0
      %p172 = por %p170, %p171
      %p173 = scmp.ne.s32.totalorder %s161, %s162
      %p174 = scmp.eq.s32.totalorder %s26, 1
      %p175 = por %p173, %p174
      %p177 = scmp.ne.s32.totalorder %s162, %s176
      %p178 = scmp.eq.s32.totalorder %s26, 0
      %p179 = por %p177, %p178
      %s181 = sadd.s32 %s180, 1
      %p184 = scmp.eq.s32.totalorder %s20, 1
      %p185 = scmp.ne.s32.totalorder %s180, %s182
      %p186 = scmp.eq.s32.totalorder %s20, 0
      %p187 = por %p185, %p186
      %p188 = scmp.ne.s32.totalorder %s180, %s182
      %p189 = scmp.eq.s32.totalorder %s25, 1
      %p190 = por %p188, %p189
      %p191 = scmp.ne.s32.totalorder %s182, %s183
      %p192 = scmp.eq.s32.totalorder %s25, 0
      %p193 = por %p191, %p192
      %p194 = scmp.ne.s32.totalorder %s182, %s183
      %p195 = scmp.eq.s32.totalorder %s26, 1
      %p196 = por %p194, %p195
      %p198 = scmp.ne.s32.totalorder %s183, %s197
      %p199 = scmp.eq.s32.totalorder %s26, 0
      %p200 = por %p198, %p199
      %s202 = sadd.s32 %s201, 1
      %p205 = scmp.eq.s32.totalorder %s20, 1
      %p206 = scmp.ne.s32.totalorder %s201, %s203
      %p207 = scmp.eq.s32.totalorder %s20, 0
      %p208 = por %p206, %p207
      %p209 = scmp.ne.s32.totalorder %s201, %s203
      %p210 = scmp.eq.s32.totalorder %s25, 1
      %p211 = por %p209, %p210
      %p212 = scmp.ne.s32.totalorder %s203, %s204
      %p213 = scmp.eq.s32.totalorder %s25, 0
      %p214 = por %p212, %p213
      %p215 = scmp.ne.s32.totalorder %s203, %s204
      %p216 = scmp.eq.s32.totalorder %s26, 1
      %p217 = por %p215, %p216
      %p219 = scmp.ne.s32.totalorder %s204, %s218
      %p220 = scmp.eq.s32.totalorder %s26, 0
      %p221 = por %p219, %p220
      %s223 = sadd.s32 %s222, 1
      %p226 = scmp.eq.s32.totalorder %s20, 1
      %p227 = scmp.ne.s32.totalorder %s222, %s224
      %p228 = scmp.eq.s32.totalorder %s20, 0
      %p229 = por %p227, %p228
      %p230 = scmp.ne.s32.totalorder %s222, %s224
      %p231 = scmp.eq.s32.totalorder %s25, 1
      %p232 = por %p230, %p231
      %p233 = scmp.ne.s32.totalorder %s224, %s225
      %p234 = scmp.eq.s32.totalorder %s25, 0
      %p235 = por %p233, %p234
      %p236 = scmp.ne.s32.totalorder %s224, %s225
      %p237 = scmp.eq.s32.totalorder %s26, 1
      %p238 = por %p236, %p237
      %p240 = scmp.ne.s32.totalorder %s225, %s239
      %p241 = scmp.eq.s32.totalorder %s26, 0
      %p242 = por %p240, %p241
      %s244 = sadd.s32 %s243, 1
      %p247 = scmp.eq.s32.totalorder %s20, 1
      %p248 = scmp.ne.s32.totalorder %s243, %s245
      %p249 = scmp.eq.s32.totalorder %s20, 0
      %p250 = por %p248, %p249
      %p251 = scmp.ne.s32.totalorder %s243, %s245
      %p252 = scmp.eq.s32.totalorder %s25, 1
      %p253 = por %p251, %p252
      %p254 = scmp.ne.s32.totalorder %s245, %s246
      %p255 = scmp.eq.s32.totalorder %s25, 0
      %p256 = por %p254, %p255
      %p257 = scmp.ne.s32.totalorder %s245, %s246
      %p258 = scmp.eq.s32.totalorder %s26, 1
      %p259 = por %p257, %p258
      %p261 = scmp.ne.s32.totalorder %s246, %s260
      %p262 = scmp.eq.s32.totalorder %s26, 0
      %p263 = por %p261, %p262
      %s264 = ssub.s32 %s20, %s27
      %p265 = scmp.eq.s32.totalorder %s264, 0
      %s267 = sadd.s32 %s266, 1
      %s268 = scalar_select %p265, %s266, %s267
      %p271 = pneg %p265
      %p272 = scmp.eq.s32.totalorder %s20, 1
      %p273 = por %p271, %p272
      %p274 = scmp.ne.s32.totalorder %s266, %s269
      %p275 = scmp.eq.s32.totalorder %s20, 0
      %p276 = por %p274, %p275
      %p277 = scmp.ne.s32.totalorder %s266, %s269
      %p278 = scmp.eq.s32.totalorder %s25, 1
      %p279 = por %p277, %p278
      %p280 = scmp.ne.s32.totalorder %s269, %s270
      %p281 = scmp.eq.s32.totalorder %s25, 0
      %p282 = por %p280, %p281
      %p283 = scmp.ne.s32.totalorder %s269, %s270
      %p284 = scmp.eq.s32.totalorder %s26, 1
      %p285 = por %p283, %p284
      %p287 = scmp.ne.s32.totalorder %s270, %s286
      %p288 = scmp.eq.s32.totalorder %s26, 0
      %p289 = por %p287, %p288
      %p290 = scmp.le.s32.totalorder 1, %s20
      %p291 = scmp.lt.s32.totalorder %s20, 3
      %p292 = pnand %p290, %p291
      %p293 = pneg %p292
      // Predicated region
      $region9: #{tpu_custom_call.1} parent=5 // pred_check
        _
      $region10: #{tpu_custom_call.1} parent=5 // pred_check_branch
        %295 = sbr.rel (%p292) target = $region12
      $region11: #{tpu_custom_call.1} parent=5 // pred_region
        %s296 = ssub.s32 %s20, 1
        // Predicated region
        $region13: #{tpu_custom_call.1} parent=11 // pred_check
          %p297 = pneg %p67
        $region14: #{tpu_custom_call.1} parent=11 // pred_check_branch
          %299 = sbr.rel (%p297) target = $region16
        $region15: #{tpu_custom_call.1} parent=11 // pred_region
          _
        $region16: #{tpu_custom_call.1} parent=11 // pred_fallthru
          _
        // Predicated region
        $region17: #{tpu_custom_call.1} parent=11 // pred_check
          %p300 = pneg %p88
        $region18: #{tpu_custom_call.1} parent=11 // pred_check_branch
          %302 = sbr.rel (%p300) target = $region20
        $region19: #{tpu_custom_call.1} parent=11 // pred_region
          _
        $region20: #{tpu_custom_call.1} parent=11 // pred_fallthru
          _
        // Predicated region
        $region21: #{tpu_custom_call.1} parent=11 // pred_check
          %p303 = pneg %p109
        $region22: #{tpu_custom_call.1} parent=11 // pred_check_branch
          %305 = sbr.rel (%p303) target = $region24
        $region23: #{tpu_custom_call.1} parent=11 // pred_region
          _
        $region24: #{tpu_custom_call.1} parent=11 // pred_fallthru
          _
        // Predicated region
        $region25: #{tpu_custom_call.1} parent=11 // pred_check
          %p306 = pneg %p130
        $region26: #{tpu_custom_call.1} parent=11 // pred_check_branch
          %308 = sbr.rel (%p306) target = $region28
        $region27: #{tpu_custom_call.1} parent=11 // pred_region
          _
        $region28: #{tpu_custom_call.1} parent=11 // pred_fallthru
          _
        // Predicated region
        $region29: #{tpu_custom_call.1} parent=11 // pred_check
          %p309 = pneg %p151
        $region30: #{tpu_custom_call.1} parent=11 // pred_check_branch
          %311 = sbr.rel (%p309) target = $region32
        $region31: #{tpu_custom_call.1} parent=11 // pred_region
          _
        $region32: #{tpu_custom_call.1} parent=11 // pred_fallthru
          _
        // Predicated region
        $region33: #{tpu_custom_call.1} parent=11 // pred_check
          %p312 = pneg %p172
        $region34: #{tpu_custom_call.1} parent=11 // pred_check_branch
          %314 = sbr.rel (%p312) target = $region36
        $region35: #{tpu_custom_call.1} parent=11 // pred_region
          _
        $region36: #{tpu_custom_call.1} parent=11 // pred_fallthru
          _
        // Predicated region
        $region37: #{tpu_custom_call.1} parent=11 // pred_check
          %p315 = pneg %p193
        $region38: #{tpu_custom_call.1} parent=11 // pred_check_branch
          %317 = sbr.rel (%p315) target = $region40
        $region39: #{tpu_custom_call.1} parent=11 // pred_region
          _
        $region40: #{tpu_custom_call.1} parent=11 // pred_fallthru
          _
        // Predicated region
        $region41: #{tpu_custom_call.1} parent=11 // pred_check
          %p318 = pneg %p214
        $region42: #{tpu_custom_call.1} parent=11 // pred_check_branch
          %320 = sbr.rel (%p318) target = $region44
        $region43: #{tpu_custom_call.1} parent=11 // pred_region
          _
        $region44: #{tpu_custom_call.1} parent=11 // pred_fallthru
          _
        // Predicated region
        $region45: #{tpu_custom_call.1} parent=11 // pred_check
          %p321 = pneg %p235
        $region46: #{tpu_custom_call.1} parent=11 // pred_check_branch
          %323 = sbr.rel (%p321) target = $region48
        $region47: #{tpu_custom_call.1} parent=11 // pred_region
          _
        $region48: #{tpu_custom_call.1} parent=11 // pred_fallthru
          _
        // Predicated region
        $region49: #{tpu_custom_call.1} parent=11 // pred_check
          %p324 = pneg %p256
        $region50: #{tpu_custom_call.1} parent=11 // pred_check_branch
          %326 = sbr.rel (%p324) target = $region52
        $region51: #{tpu_custom_call.1} parent=11 // pred_region
          _
        $region52: #{tpu_custom_call.1} parent=11 // pred_fallthru
          _
      $region12: #{tpu_custom_call.1} parent=5 // pred_fallthru
        _
      %p327 = scmp.lt.s32.totalorder %s20, 2
      // Predicated region
      $region53: #{tpu_custom_call.1} parent=5 // pred_check
        %p328 = pneg %p327
      $region54: #{tpu_custom_call.1} parent=5 // pred_check_branch
        %330 = sbr.rel (%p328) target = $region56
      $region55: #{tpu_custom_call.1} parent=5 // pred_region
        // Predicated region
        $region57: #{tpu_custom_call.1} parent=55 // pred_check
          %p331 = pneg %p40
        $region58: #{tpu_custom_call.1} parent=55 // pred_check_branch
          %333 = sbr.rel (%p331) target = $region60
        $region59: #{tpu_custom_call.1} parent=55 // pred_region
          %s334 = smul.u32 8, %s20
          %p335 = scmp.lt.s32.totalorder %s334, 15
          %s336 = scalar_select %p335, %s334, 15
          %s337 = smul.addr %s336, 8
          %s338 = scalar_lea.vmem %s0, %s337
          %s339 = smul.u32 8, %s20
        $region60: #{tpu_custom_call.1} parent=55 // pred_fallthru
          _
      $region56: #{tpu_custom_call.1} parent=5 // pred_fallthru
        _
      %p340 = scmp.le.s32.totalorder 1, %s20
      %p341 = scmp.lt.s32.totalorder %s20, 3
      %p342 = pnand %p340, %p341
      %p343 = pneg %p342
      // Predicated region
      $region61: #{tpu_custom_call.1} parent=5 // pred_check
        _
      $region62: #{tpu_custom_call.1} parent=5 // pred_check_branch
        %345 = sbr.rel (%p342) target = $region64
      $region63: #{tpu_custom_call.1} parent=5 // pred_region
        %s346 = ssub.s32 %s20, 1
        %s347 = smul.u32 8, %s25
        %p348 = scmp.lt.s32.totalorder %s347, 15
        %s349 = scalar_select %p348, %s347, 15
        %s350 = smul.addr %s349, 8
        %s351 = scalar_lea.vmem %s0, %s350
        %p352 = pneg %p46
        %p353 = pneg %p43
        %p354 = pneg %p67
        %p355 = pneg %p64
        %p356 = pneg %p88
        %p357 = pneg %p85
        %p358 = pneg %p109
        %p359 = pneg %p106
        %p360 = pneg %p130
        %p361 = pneg %p127
        %p362 = pneg %p151
        %p363 = pneg %p148
        %p364 = pneg %p172
        %p365 = pneg %p169
        %p366 = pneg %p193
        %p367 = pneg %p190
        %p368 = pneg %p214
        %p369 = pneg %p211
        %p370 = pneg %p235
        %p371 = pneg %p232
        %p372 = pneg %p256
        %p373 = pneg %p253
        %p374 = pneg %p282
        %p375 = pneg %p279
        %s376 = sand.u32 %s269, 1
        %s377 = scalar_lea.sflag [#allocation3], %s376
        %s378 = sand.u32 %s269, 1
        %s379 = smul.addr %s378, 32
        %s380 = scalar_lea.vmem [#allocation2], %s379
        %s381 = smul.u32 8, %s25
        %p382 = scmp.lt.s32.totalorder %s381, 15
        %s383 = scalar_select %p382, %s381, 15
        %s384 = smul.addr %s383, 8
        %s385 = scalar_lea.vmem %s0, %s384
        %s386 = smul.u32 8, %s25
        %s387 = smul.u32 8, %s25
        %v389 = vld [vmem:[%s385] sm:$0x3f]
        %v390 = vld [vmem:[%s385 + $0x8] sm:$0x3f]
        %v391 = vld [vmem:[%s385 + $0x10] sm:$0x3f]
        %v392 = vld [vmem:[%s385 + $0x18] sm:$0x3f]
        %v393 = vld [vmem:[%s385 + $0x20] sm:$0x3f]
        %v394 = vld [vmem:[%s385 + $0x28] sm:$0x3f]
        %v395 = vld [vmem:[%s385 + $0x30] sm:$0x3f]
        %v396 = vld [vmem:[%s385 + $0x38] sm:$0x3f]
        %v397 = vpack.c.bf16 %v389, %v389
        %v398 = vpack.c.bf16 %v390, %v390
        %v399 = vpack.c.bf16 %v391, %v391
        %v400 = vpack.c.bf16 %v392, %v392
        %v401 = vpack.c.bf16 %v393, %v393
        %v402 = vpack.c.bf16 %v394, %v394
        %v403 = vpack.c.bf16 %v395, %v395
        %v404 = vpack.c.bf16 %v396, %v396
        %v405 = vunpack.c.l.bf16 %v397
        %v406 = vunpack.c.l.bf16 %v398
        %v407 = vunpack.c.l.bf16 %v399
        %v408 = vunpack.c.l.bf16 %v400
        %v409 = vunpack.c.l.bf16 %v401
        %v410 = vunpack.c.l.bf16 %v402
        %v411 = vunpack.c.l.bf16 %v403
        %v412 = vunpack.c.l.bf16 %v404
        %v413 = vld [vmem:[%s1] sm:$0xf]
        %v414 = vld [vmem:[%s1 + $0x4] sm:$0xf]
        %v415 = vld [vmem:[%s1 + $0x8] sm:$0xf]
        %v416 = vld [vmem:[%s1 + $0xc] sm:$0xf]
        %v417 = vunpack.c.l.bf16 %v413
        %v418 = vunpack.c.l.bf16 %v414
        %v419 = vunpack.c.l.bf16 %v415
        %v420 = vunpack.c.l.bf16 %v416
        %s421 = scalar_lea.vmem %s1, 16
        %v422 = vld [vmem:[%s421] sm:$0xf]
        %v423 = vld [vmem:[%s421 + $0x4] sm:$0xf]
        %v424 = vld [vmem:[%s421 + $0x8] sm:$0xf]
        %v425 = vld [vmem:[%s421 + $0xc] sm:$0xf]
        %v426 = vunpack.c.l.bf16 %v422
        %v427 = vunpack.c.l.bf16 %v423
        %v428 = vunpack.c.l.bf16 %v424
        %v429 = vunpack.c.l.bf16 %v425
        %v430 = vld [vmem:[%s2] sm:$0xff]
        %v431 = vld [vmem:[%s2 + $0x8] sm:$0xff]
        %v432 = vld [vmem:[%s2 + $0x10] sm:$0xff]
        %v433 = vld [vmem:[%s2 + $0x18] sm:$0xff]
        %v434 = vlaneseq
        %v435 = vshrl.u32 %v434, 7
        %v436 = vsub.s32 0, %v435
        %v437 = vrot.slane %v405, %v436
        %v438 = vlaneseq
        %v439 = vshrl.u32 %v438, 7
        %v440 = vsub.s32 0, %v439
        %v441 = vrot.slane %v406, %v440
        %v442 = vlaneseq
        %v443 = vshrl.u32 %v442, 7
        %v444 = vsub.s32 0, %v443
        %v445 = vrot.slane %v407, %v444
        %v446 = vlaneseq
        %v447 = vshrl.u32 %v446, 7
        %v448 = vsub.s32 0, %v447
        %v449 = vrot.slane %v408, %v448
        %v450 = vlaneseq
        %v451 = vshrl.u32 %v450, 7
        %v452 = vsub.s32 0, %v451
        %v453 = vrot.slane %v409, %v452
        %v454 = vlaneseq
        %v455 = vshrl.u32 %v454, 7
        %v456 = vsub.s32 0, %v455
        %v457 = vrot.slane %v410, %v456
        %v458 = vlaneseq
        %v459 = vshrl.u32 %v458, 7
        %v460 = vsub.s32 0, %v459
        %v461 = vrot.slane %v411, %v460
        %v462 = vlaneseq
        %v463 = vshrl.u32 %v462, 7
        %v464 = vsub.s32 0, %v463
        %v465 = vrot.slane %v412, %v464
        %467 = vset.pattern.permute.xlu0 0
        %468 = vperm.xlu0 %467, %v417
        %v469 = vpop.permute.xlu0 %468
        %472 = vset.pattern.permute.xlu0 0
        %473 = vperm.xlu0 %472, %v418
        %v474 = vpop.permute.xlu0 %473
        %477 = vset.pattern.permute.xlu0 0
        %478 = vperm.xlu0 %477, %v419
        %v479 = vpop.permute.xlu0 %478
        %482 = vset.pattern.permute.xlu0 0
        %483 = vperm.xlu0 %482, %v420
        %v484 = vpop.permute.xlu0 %483
        %v486 = vmul.f32 %v469, %v437
        %v487 = vmul.f32 %v469, %v441
        %v488 = vmul.f32 %v469, %v445
        %v489 = vmul.f32 %v469, %v449
        %v490 = vmul.f32 %v469, %v453
        %v491 = vmul.f32 %v469, %v457
        %v492 = vmul.f32 %v469, %v461
        %v493 = vmul.f32 %v469, %v465
        %v494 = vmul.f32 %v474, %v437
        %v495 = vmul.f32 %v474, %v441
        %v496 = vmul.f32 %v474, %v445
        %v497 = vmul.f32 %v474, %v449
        %v498 = vmul.f32 %v474, %v453
        %v499 = vmul.f32 %v474, %v457
        %v500 = vmul.f32 %v474, %v461
        %v501 = vmul.f32 %v474, %v465
        %v502 = vmul.f32 %v479, %v437
        %v503 = vmul.f32 %v479, %v441
        %v504 = vmul.f32 %v479, %v445
        %v505 = vmul.f32 %v479, %v449
        %v506 = vmul.f32 %v479, %v453
        %v507 = vmul.f32 %v479, %v457
        %v508 = vmul.f32 %v479, %v461
        %v509 = vmul.f32 %v479, %v465
        %v510 = vmul.f32 %v484, %v437
        %v511 = vmul.f32 %v484, %v441
        %v512 = vmul.f32 %v484, %v445
        %v513 = vmul.f32 %v484, %v449
        %v514 = vmul.f32 %v484, %v453
        %v515 = vmul.f32 %v484, %v457
        %v516 = vmul.f32 %v484, %v461
        %v517 = vmul.f32 %v484, %v465
        %519 = vset.pattern.permute.xlu0 0
        %520 = vperm.xlu0 %519, %v430
        %v521 = vpop.permute.xlu0 %520
        %524 = vset.pattern.permute.xlu0 0
        %525 = vperm.xlu0 %524, %v431
        %v526 = vpop.permute.xlu0 %525
        %529 = vset.pattern.permute.xlu0 0
        %530 = vperm.xlu0 %529, %v432
        %v531 = vpop.permute.xlu0 %530
        %534 = vset.pattern.permute.xlu0 0
        %535 = vperm.xlu0 %534, %v433
        %v536 = vpop.permute.xlu0 %535
        %v538 = vadd.f32 %v521, %v486
        %v539 = vadd.f32 %v521, %v487
        %v540 = vadd.f32 %v521, %v488
        %v541 = vadd.f32 %v521, %v489
        %v542 = vadd.f32 %v521, %v490
        %v543 = vadd.f32 %v521, %v491
        %v544 = vadd.f32 %v521, %v492
        %v545 = vadd.f32 %v521, %v493
        %v546 = vadd.f32 %v526, %v494
        %v547 = vadd.f32 %v526, %v495
        %v548 = vadd.f32 %v526, %v496
        %v549 = vadd.f32 %v526, %v497
        %v550 = vadd.f32 %v526, %v498
        %v551 = vadd.f32 %v526, %v499
        %v552 = vadd.f32 %v526, %v500
        %v553 = vadd.f32 %v526, %v501
        %v554 = vadd.f32 %v531, %v502
        %v555 = vadd.f32 %v531, %v503
        %v556 = vadd.f32 %v531, %v504
        %v557 = vadd.f32 %v531, %v505
        %v558 = vadd.f32 %v531, %v506
        %v559 = vadd.f32 %v531, %v507
        %v560 = vadd.f32 %v531, %v508
        %v561 = vadd.f32 %v531, %v509
        %v562 = vadd.f32 %v536, %v510
        %v563 = vadd.f32 %v536, %v511
        %v564 = vadd.f32 %v536, %v512
        %v565 = vadd.f32 %v536, %v513
        %v566 = vadd.f32 %v536, %v514
        %v567 = vadd.f32 %v536, %v515
        %v568 = vadd.f32 %v536, %v516
        %v569 = vadd.f32 %v536, %v517
        %571 = vset.pattern.permute.xlu0 0
        %572 = vperm.xlu0 %571, %v426
        %v573 = vpop.permute.xlu0 %572
        %576 = vset.pattern.permute.xlu0 0
        %577 = vperm.xlu0 %576, %v427
        %v578 = vpop.permute.xlu0 %577
        %581 = vset.pattern.permute.xlu0 0
        %582 = vperm.xlu0 %581, %v428
        %v583 = vpop.permute.xlu0 %582
        %586 = vset.pattern.permute.xlu0 0
        %587 = vperm.xlu0 %586, %v429
        %v588 = vpop.permute.xlu0 %587
        %v590 = vmul.f32 %v573, %v437
        %v591 = vmul.f32 %v573, %v441
        %v592 = vmul.f32 %v573, %v445
        %v593 = vmul.f32 %v573, %v449
        %v594 = vmul.f32 %v573, %v453
        %v595 = vmul.f32 %v573, %v457
        %v596 = vmul.f32 %v573, %v461
        %v597 = vmul.f32 %v573, %v465
        %v598 = vmul.f32 %v578, %v437
        %v599 = vmul.f32 %v578, %v441
        %v600 = vmul.f32 %v578, %v445
        %v601 = vmul.f32 %v578, %v449
        %v602 = vmul.f32 %v578, %v453
        %v603 = vmul.f32 %v578, %v457
        %v604 = vmul.f32 %v578, %v461
        %v605 = vmul.f32 %v578, %v465
        %v606 = vmul.f32 %v583, %v437
        %v607 = vmul.f32 %v583, %v441
        %v608 = vmul.f32 %v583, %v445
        %v609 = vmul.f32 %v583, %v449
        %v610 = vmul.f32 %v583, %v453
        %v611 = vmul.f32 %v583, %v457
        %v612 = vmul.f32 %v583, %v461
        %v613 = vmul.f32 %v583, %v465
        %v614 = vmul.f32 %v588, %v437
        %v615 = vmul.f32 %v588, %v441
        %v616 = vmul.f32 %v588, %v445
        %v617 = vmul.f32 %v588, %v449
        %v618 = vmul.f32 %v588, %v453
        %v619 = vmul.f32 %v588, %v457
        %v620 = vmul.f32 %v588, %v461
        %v621 = vmul.f32 %v588, %v465
        %v622 = vadd.f32 %v590, 0.0
        %v623 = vadd.f32 %v591, 0.0
        %v624 = vadd.f32 %v592, 0.0
        %v625 = vadd.f32 %v593, 0.0
        %v626 = vadd.f32 %v594, 0.0
        %v627 = vadd.f32 %v595, 0.0
        %v628 = vadd.f32 %v596, 0.0
        %v629 = vadd.f32 %v597, 0.0
        %v630 = vadd.f32 %v598, 0.0
        %v631 = vadd.f32 %v599, 0.0
        %v632 = vadd.f32 %v600, 0.0
        %v633 = vadd.f32 %v601, 0.0
        %v634 = vadd.f32 %v602, 0.0
        %v635 = vadd.f32 %v603, 0.0
        %v636 = vadd.f32 %v604, 0.0
        %v637 = vadd.f32 %v605, 0.0
        %v638 = vadd.f32 %v606, 0.0
        %v639 = vadd.f32 %v607, 0.0
        %v640 = vadd.f32 %v608, 0.0
        %v641 = vadd.f32 %v609, 0.0
        %v642 = vadd.f32 %v610, 0.0
        %v643 = vadd.f32 %v611, 0.0
        %v644 = vadd.f32 %v612, 0.0
        %v645 = vadd.f32 %v613, 0.0
        %v646 = vadd.f32 %v614, 0.0
        %v647 = vadd.f32 %v615, 0.0
        %v648 = vadd.f32 %v616, 0.0
        %v649 = vadd.f32 %v617, 0.0
        %v650 = vadd.f32 %v618, 0.0
        %v651 = vadd.f32 %v619, 0.0
        %v652 = vadd.f32 %v620, 0.0
        %v653 = vadd.f32 %v621, 0.0
        %v654 = vlaneseq
        %v655 = vshrl.u32 %v654, 7
        %v656 = vsub.s32 1, %v655
        %v657 = vrot.slane %v405, %v656
        %v658 = vlaneseq
        %v659 = vshrl.u32 %v658, 7
        %v660 = vsub.s32 1, %v659
        %v661 = vrot.slane %v406, %v660
        %v662 = vlaneseq
        %v663 = vshrl.u32 %v662, 7
        %v664 = vsub.s32 1, %v663
        %v665 = vrot.slane %v407, %v664
        %v666 = vlaneseq
        %v667 = vshrl.u32 %v666, 7
        %v668 = vsub.s32 1, %v667
        %v669 = vrot.slane %v408, %v668
        %v670 = vlaneseq
        %v671 = vshrl.u32 %v670, 7
        %v672 = vsub.s32 1, %v671
        %v673 = vrot.slane %v409, %v672
        %v674 = vlaneseq
        %v675 = vshrl.u32 %v674, 7
        %v676 = vsub.s32 1, %v675
        %v677 = vrot.slane %v410, %v676
        %v678 = vlaneseq
        %v679 = vshrl.u32 %v678, 7
        %v680 = vsub.s32 1, %v679
        %v681 = vrot.slane %v411, %v680
        %v682 = vlaneseq
        %v683 = vshrl.u32 %v682, 7
        %v684 = vsub.s32 1, %v683
        %v685 = vrot.slane %v412, %v684
        %686 = vset.pattern.permute.xlu0 1
        %687 = vperm.xlu0 %686, %v417
        %v688 = vpop.permute.xlu0 %687
        %690 = vset.pattern.permute.xlu0 1
        %691 = vperm.xlu0 %690, %v418
        %v692 = vpop.permute.xlu0 %691
        %694 = vset.pattern.permute.xlu0 1
        %695 = vperm.xlu0 %694, %v419
        %v696 = vpop.permute.xlu0 %695
        %698 = vset.pattern.permute.xlu0 1
        %699 = vperm.xlu0 %698, %v420
        %v700 = vpop.permute.xlu0 %699
        %v702 = vmul.f32 %v688, %v657
        %v703 = vmul.f32 %v688, %v661
        %v704 = vmul.f32 %v688, %v665
        %v705 = vmul.f32 %v688, %v669
        %v706 = vmul.f32 %v688, %v673
        %v707 = vmul.f32 %v688, %v677
        %v708 = vmul.f32 %v688, %v681
        %v709 = vmul.f32 %v688, %v685
        %v710 = vmul.f32 %v692, %v657
        %v711 = vmul.f32 %v692, %v661
        %v712 = vmul.f32 %v692, %v665
        %v713 = vmul.f32 %v692, %v669
        %v714 = vmul.f32 %v692, %v673
        %v715 = vmul.f32 %v692, %v677
        %v716 = vmul.f32 %v692, %v681
        %v717 = vmul.f32 %v692, %v685
        %v718 = vmul.f32 %v696, %v657
        %v719 = vmul.f32 %v696, %v661
        %v720 = vmul.f32 %v696, %v665
        %v721 = vmul.f32 %v696, %v669
        %v722 = vmul.f32 %v696, %v673
        %v723 = vmul.f32 %v696, %v677
        %v724 = vmul.f32 %v696, %v681
        %v725 = vmul.f32 %v696, %v685
        %v726 = vmul.f32 %v700, %v657
        %v727 = vmul.f32 %v700, %v661
        %v728 = vmul.f32 %v700, %v665
        %v729 = vmul.f32 %v700, %v669
        %v730 = vmul.f32 %v700, %v673
        %v731 = vmul.f32 %v700, %v677
        %v732 = vmul.f32 %v700, %v681
        %v733 = vmul.f32 %v700, %v685
        %v734 = vadd.f32 %v538, %v702
        %v735 = vadd.f32 %v539, %v703
        %v736 = vadd.f32 %v540, %v704
        %v737 = vadd.f32 %v541, %v705
        %v738 = vadd.f32 %v542, %v706
        %v739 = vadd.f32 %v543, %v707
        %v740 = vadd.f32 %v544, %v708
        %v741 = vadd.f32 %v545, %v709
        %v742 = vadd.f32 %v546, %v710
        %v743 = vadd.f32 %v547, %v711
        %v744 = vadd.f32 %v548, %v712
        %v745 = vadd.f32 %v549, %v713
        %v746 = vadd.f32 %v550, %v714
        %v747 = vadd.f32 %v551, %v715
        %v748 = vadd.f32 %v552, %v716
        %v749 = vadd.f32 %v553, %v717
        %v750 = vadd.f32 %v554, %v718
        %v751 = vadd.f32 %v555, %v719
        %v752 = vadd.f32 %v556, %v720
        %v753 = vadd.f32 %v557, %v721
        %v754 = vadd.f32 %v558, %v722
        %v755 = vadd.f32 %v559, %v723
        %v756 = vadd.f32 %v560, %v724
        %v757 = vadd.f32 %v561, %v725
        %v758 = vadd.f32 %v562, %v726
        %v759 = vadd.f32 %v563, %v727
        %v760 = vadd.f32 %v564, %v728
        %v761 = vadd.f32 %v565, %v729
        %v762 = vadd.f32 %v566, %v730
        %v763 = vadd.f32 %v567, %v731
        %v764 = vadd.f32 %v568, %v732
        %v765 = vadd.f32 %v569, %v733
        %766 = vset.pattern.permute.xlu0 1
        %767 = vperm.xlu0 %766, %v426
        %v768 = vpop.permute.xlu0 %767
        %770 = vset.pattern.permute.xlu0 1
        %771 = vperm.xlu0 %770, %v427
        %v772 = vpop.permute.xlu0 %771
        %774 = vset.pattern.permute.xlu0 1
        %775 = vperm.xlu0 %774, %v428
        %v776 = vpop.permute.xlu0 %775
        %778 = vset.pattern.permute.xlu0 1
        %779 = vperm.xlu0 %778, %v429
        %v780 = vpop.permute.xlu0 %779
        %v782 = vmul.f32 %v768, %v657
        %v783 = vmul.f32 %v768, %v661
        %v784 = vmul.f32 %v768, %v665
        %v785 = vmul.f32 %v768, %v669
        %v786 = vmul.f32 %v768, %v673
        %v787 = vmul.f32 %v768, %v677
        %v788 = vmul.f32 %v768, %v681
        %v789 = vmul.f32 %v768, %v685
        %v790 = vmul.f32 %v772, %v657
        %v791 = vmul.f32 %v772, %v661
        %v792 = vmul.f32 %v772, %v665
        %v793 = vmul.f32 %v772, %v669
        %v794 = vmul.f32 %v772, %v673
        %v795 = vmul.f32 %v772, %v677
        %v796 = vmul.f32 %v772, %v681
        %v797 = vmul.f32 %v772, %v685
        %v798 = vmul.f32 %v776, %v657
        %v799 = vmul.f32 %v776, %v661
        %v800 = vmul.f32 %v776, %v665
        %v801 = vmul.f32 %v776, %v669
        %v802 = vmul.f32 %v776, %v673
        %v803 = vmul.f32 %v776, %v677
        %v804 = vmul.f32 %v776, %v681
        %v805 = vmul.f32 %v776, %v685
        %v806 = vmul.f32 %v780, %v657
        %v807 = vmul.f32 %v780, %v661
        %v808 = vmul.f32 %v780, %v665
        %v809 = vmul.f32 %v780, %v669
        %v810 = vmul.f32 %v780, %v673
        %v811 = vmul.f32 %v780, %v677
        %v812 = vmul.f32 %v780, %v681
        %v813 = vmul.f32 %v780, %v685
        %v814 = vadd.f32 %v622, %v782
        %v815 = vadd.f32 %v623, %v783
        %v816 = vadd.f32 %v624, %v784
        %v817 = vadd.f32 %v625, %v785
        %v818 = vadd.f32 %v626, %v786
        %v819 = vadd.f32 %v627, %v787
        %v820 = vadd.f32 %v628, %v788
        %v821 = vadd.f32 %v629, %v789
        %v822 = vadd.f32 %v630, %v790
        %v823 = vadd.f32 %v631, %v791
        %v824 = vadd.f32 %v632, %v792
        %v825 = vadd.f32 %v633, %v793
        %v826 = vadd.f32 %v634, %v794
        %v827 = vadd.f32 %v635, %v795
        %v828 = vadd.f32 %v636, %v796
        %v829 = vadd.f32 %v637, %v797
        %v830 = vadd.f32 %v638, %v798
        %v831 = vadd.f32 %v639, %v799
        %v832 = vadd.f32 %v640, %v800
        %v833 = vadd.f32 %v641, %v801
        %v834 = vadd.f32 %v642, %v802
        %v835 = vadd.f32 %v643, %v803
        %v836 = vadd.f32 %v644, %v804
        %v837 = vadd.f32 %v645, %v805
        %v838 = vadd.f32 %v646, %v806
        %v839 = vadd.f32 %v647, %v807
        %v840 = vadd.f32 %v648, %v808
        %v841 = vadd.f32 %v649, %v809
        %v842 = vadd.f32 %v650, %v810
        %v843 = vadd.f32 %v651, %v811
        %v844 = vadd.f32 %v652, %v812
        %v845 = vadd.f32 %v653, %v813
        %v846 = vlaneseq
        %v847 = vshrl.u32 %v846, 7
        %v848 = vsub.s32 2, %v847
        %v849 = vrot.slane %v405, %v848
        %v850 = vlaneseq
        %v851 = vshrl.u32 %v850, 7
        %v852 = vsub.s32 2, %v851
        %v853 = vrot.slane %v406, %v852
        %v854 = vlaneseq
        %v855 = vshrl.u32 %v854, 7
        %v856 = vsub.s32 2, %v855
        %v857 = vrot.slane %v407, %v856
        %v858 = vlaneseq
        %v859 = vshrl.u32 %v858, 7
        %v860 = vsub.s32 2, %v859
        %v861 = vrot.slane %v408, %v860
        %v862 = vlaneseq
        %v863 = vshrl.u32 %v862, 7
        %v864 = vsub.s32 2, %v863
        %v865 = vrot.slane %v409, %v864
        %v866 = vlaneseq
        %v867 = vshrl.u32 %v866, 7
        %v868 = vsub.s32 2, %v867
        %v869 = vrot.slane %v410, %v868
        %v870 = vlaneseq
        %v871 = vshrl.u32 %v870, 7
        %v872 = vsub.s32 2, %v871
        %v873 = vrot.slane %v411, %v872
        %v874 = vlaneseq
        %v875 = vshrl.u32 %v874, 7
        %v876 = vsub.s32 2, %v875
        %v877 = vrot.slane %v412, %v876
        %878 = vset.pattern.permute.xlu0 2
        %879 = vperm.xlu0 %878, %v417
        %v880 = vpop.permute.xlu0 %879
        %882 = vset.pattern.permute.xlu0 2
        %883 = vperm.xlu0 %882, %v418
        %v884 = vpop.permute.xlu0 %883
        %886 = vset.pattern.permute.xlu0 2
        %887 = vperm.xlu0 %886, %v419
        %v888 = vpop.permute.xlu0 %887
        %890 = vset.pattern.permute.xlu0 2
        %891 = vperm.xlu0 %890, %v420
        %v892 = vpop.permute.xlu0 %891
        %v894 = vmul.f32 %v880, %v849
        %v895 = vmul.f32 %v880, %v853
        %v896 = vmul.f32 %v880, %v857
        %v897 = vmul.f32 %v880, %v861
        %v898 = vmul.f32 %v880, %v865
        %v899 = vmul.f32 %v880, %v869
        %v900 = vmul.f32 %v880, %v873
        %v901 = vmul.f32 %v880, %v877
        %v902 = vmul.f32 %v884, %v849
        %v903 = vmul.f32 %v884, %v853
        %v904 = vmul.f32 %v884, %v857
        %v905 = vmul.f32 %v884, %v861
        %v906 = vmul.f32 %v884, %v865
        %v907 = vmul.f32 %v884, %v869
        %v908 = vmul.f32 %v884, %v873
        %v909 = vmul.f32 %v884, %v877
        %v910 = vmul.f32 %v888, %v849
        %v911 = vmul.f32 %v888, %v853
        %v912 = vmul.f32 %v888, %v857
        %v913 = vmul.f32 %v888, %v861
        %v914 = vmul.f32 %v888, %v865
        %v915 = vmul.f32 %v888, %v869
        %v916 = vmul.f32 %v888, %v873
        %v917 = vmul.f32 %v888, %v877
        %v918 = vmul.f32 %v892, %v849
        %v919 = vmul.f32 %v892, %v853
        %v920 = vmul.f32 %v892, %v857
        %v921 = vmul.f32 %v892, %v861
        %v922 = vmul.f32 %v892, %v865
        %v923 = vmul.f32 %v892, %v869
        %v924 = vmul.f32 %v892, %v873
        %v925 = vmul.f32 %v892, %v877
        %v926 = vadd.f32 %v734, %v894
        %v927 = vadd.f32 %v735, %v895
        %v928 = vadd.f32 %v736, %v896
        %v929 = vadd.f32 %v737, %v897
        %v930 = vadd.f32 %v738, %v898
        %v931 = vadd.f32 %v739, %v899
        %v932 = vadd.f32 %v740, %v900
        %v933 = vadd.f32 %v741, %v901
        %v934 = vadd.f32 %v742, %v902
        %v935 = vadd.f32 %v743, %v903
        %v936 = vadd.f32 %v744, %v904
        %v937 = vadd.f32 %v745, %v905
        %v938 = vadd.f32 %v746, %v906
        %v939 = vadd.f32 %v747, %v907
        %v940 = vadd.f32 %v748, %v908
        %v941 = vadd.f32 %v749, %v909
        %v942 = vadd.f32 %v750, %v910
        %v943 = vadd.f32 %v751, %v911
        %v944 = vadd.f32 %v752, %v912
        %v945 = vadd.f32 %v753, %v913
        %v946 = vadd.f32 %v754, %v914
        %v947 = vadd.f32 %v755, %v915
        %v948 = vadd.f32 %v756, %v916
        %v949 = vadd.f32 %v757, %v917
        %v950 = vadd.f32 %v758, %v918
        %v951 = vadd.f32 %v759, %v919
        %v952 = vadd.f32 %v760, %v920
        %v953 = vadd.f32 %v761, %v921
        %v954 = vadd.f32 %v762, %v922
        %v955 = vadd.f32 %v763, %v923
        %v956 = vadd.f32 %v764, %v924
        %v957 = vadd.f32 %v765, %v925
        %958 = vset.pattern.permute.xlu0 2
        %959 = vperm.xlu0 %958, %v426
        %v960 = vpop.permute.xlu0 %959
        %962 = vset.pattern.permute.xlu0 2
        %963 = vperm.xlu0 %962, %v427
        %v964 = vpop.permute.xlu0 %963
        %966 = vset.pattern.permute.xlu0 2
        %967 = vperm.xlu0 %966, %v428
        %v968 = vpop.permute.xlu0 %967
        %970 = vset.pattern.permute.xlu0 2
        %971 = vperm.xlu0 %970, %v429
        %v972 = vpop.permute.xlu0 %971
        %v974 = vmul.f32 %v960, %v849
        %v975 = vmul.f32 %v960, %v853
        %v976 = vmul.f32 %v960, %v857
        %v977 = vmul.f32 %v960, %v861
        %v978 = vmul.f32 %v960, %v865
        %v979 = vmul.f32 %v960, %v869
        %v980 = vmul.f32 %v960, %v873
        %v981 = vmul.f32 %v960, %v877
        %v982 = vmul.f32 %v964, %v849
        %v983 = vmul.f32 %v964, %v853
        %v984 = vmul.f32 %v964, %v857
        %v985 = vmul.f32 %v964, %v861
        %v986 = vmul.f32 %v964, %v865
        %v987 = vmul.f32 %v964, %v869
        %v988 = vmul.f32 %v964, %v873
        %v989 = vmul.f32 %v964, %v877
        %v990 = vmul.f32 %v968, %v849
        %v991 = vmul.f32 %v968, %v853
        %v992 = vmul.f32 %v968, %v857
        %v993 = vmul.f32 %v968, %v861
        %v994 = vmul.f32 %v968, %v865
        %v995 = vmul.f32 %v968, %v869
        %v996 = vmul.f32 %v968, %v873
        %v997 = vmul.f32 %v968, %v877
        %v998 = vmul.f32 %v972, %v849
        %v999 = vmul.f32 %v972, %v853
        %v1000 = vmul.f32 %v972, %v857
        %v1001 = vmul.f32 %v972, %v861
        %v1002 = vmul.f32 %v972, %v865
        %v1003 = vmul.f32 %v972, %v869
        %v1004 = vmul.f32 %v972, %v873
        %v1005 = vmul.f32 %v972, %v877
        %v1006 = vadd.f32 %v814, %v974
        %v1007 = vadd.f32 %v815, %v975
        %v1008 = vadd.f32 %v816, %v976
        %v1009 = vadd.f32 %v817, %v977
        %v1010 = vadd.f32 %v818, %v978
        %v1011 = vadd.f32 %v819, %v979
        %v1012 = vadd.f32 %v820, %v980
        %v1013 = vadd.f32 %v821, %v981
        %v1014 = vadd.f32 %v822, %v982
        %v1015 = vadd.f32 %v823, %v983
        %v1016 = vadd.f32 %v824, %v984
        %v1017 = vadd.f32 %v825, %v985
        %v1018 = vadd.f32 %v826, %v986
        %v1019 = vadd.f32 %v827, %v987
        %v1020 = vadd.f32 %v828, %v988
        %v1021 = vadd.f32 %v829, %v989
        %v1022 = vadd.f32 %v830, %v990
        %v1023 = vadd.f32 %v831, %v991
        %v1024 = vadd.f32 %v832, %v992
        %v1025 = vadd.f32 %v833, %v993
        %v1026 = vadd.f32 %v834, %v994
        %v1027 = vadd.f32 %v835, %v995
        %v1028 = vadd.f32 %v836, %v996
        %v1029 = vadd.f32 %v837, %v997
        %v1030 = vadd.f32 %v838, %v998
        %v1031 = vadd.f32 %v839, %v999
        %v1032 = vadd.f32 %v840, %v1000
        %v1033 = vadd.f32 %v841, %v1001
        %v1034 = vadd.f32 %v842, %v1002
        %v1035 = vadd.f32 %v843, %v1003
        %v1036 = vadd.f32 %v844, %v1004
        %v1037 = vadd.f32 %v845, %v1005
        %v1038 = vmax.f32 %v926, 0.0
        %v1039 = vmax.f32 %v927, 0.0
        %v1040 = vmax.f32 %v928, 0.0
        %v1041 = vmax.f32 %v929, 0.0
        %v1042 = vmax.f32 %v930, 0.0
        %v1043 = vmax.f32 %v931, 0.0
        %v1044 = vmax.f32 %v932, 0.0
        %v1045 = vmax.f32 %v933, 0.0
        %v1046 = vmax.f32 %v934, 0.0
        %v1047 = vmax.f32 %v935, 0.0
        %v1048 = vmax.f32 %v936, 0.0
        %v1049 = vmax.f32 %v937, 0.0
        %v1050 = vmax.f32 %v938, 0.0
        %v1051 = vmax.f32 %v939, 0.0
        %v1052 = vmax.f32 %v940, 0.0
        %v1053 = vmax.f32 %v941, 0.0
        %v1054 = vmax.f32 %v942, 0.0
        %v1055 = vmax.f32 %v943, 0.0
        %v1056 = vmax.f32 %v944, 0.0
        %v1057 = vmax.f32 %v945, 0.0
        %v1058 = vmax.f32 %v946, 0.0
        %v1059 = vmax.f32 %v947, 0.0
        %v1060 = vmax.f32 %v948, 0.0
        %v1061 = vmax.f32 %v949, 0.0
        %v1062 = vmax.f32 %v950, 0.0
        %v1063 = vmax.f32 %v951, 0.0
        %v1064 = vmax.f32 %v952, 0.0
        %v1065 = vmax.f32 %v953, 0.0
        %v1066 = vmax.f32 %v954, 0.0
        %v1067 = vmax.f32 %v955, 0.0
        %v1068 = vmax.f32 %v956, 0.0
        %v1069 = vmax.f32 %v957, 0.0
        %v1070 = vpack.c.bf16 %v1046, %v1038
        %v1071 = vpack.c.bf16 %v1047, %v1039
        %v1072 = vpack.c.bf16 %v1048, %v1040
        %v1073 = vpack.c.bf16 %v1049, %v1041
        %v1074 = vpack.c.bf16 %v1050, %v1042
        %v1075 = vpack.c.bf16 %v1051, %v1043
        %v1076 = vpack.c.bf16 %v1052, %v1044
        %v1077 = vpack.c.bf16 %v1053, %v1045
        %v1078 = vpack.c.bf16 %v1062, %v1054
        %v1079 = vpack.c.bf16 %v1063, %v1055
        %v1080 = vpack.c.bf16 %v1064, %v1056
        %v1081 = vpack.c.bf16 %v1065, %v1057
        %v1082 = vpack.c.bf16 %v1066, %v1058
        %v1083 = vpack.c.bf16 %v1067, %v1059
        %v1084 = vpack.c.bf16 %v1068, %v1060
        %v1085 = vpack.c.bf16 %v1069, %v1061
        %v1086 = vld [vmem:[%s3] sm:$0xf]
        %v1087 = vld [vmem:[%s3 + $0x4] sm:$0xf]
        %v1088 = vld [vmem:[%s3 + $0x8] sm:$0xf]
        %v1089 = vld [vmem:[%s3 + $0xc] sm:$0xf]
        %s1090 = scalar_lea.vmem %s2, 32
        %v1091 = vld [vmem:[%s1090] sm:$0xff]
        %v1092 = vld [vmem:[%s1090 + $0x8] sm:$0xff]
        %v1093 = vld [vmem:[%s1090 + $0x10] sm:$0xff]
        %v1094 = vld [vmem:[%s1090 + $0x18] sm:$0xff]
        %1096 = vset.pattern.permute.xlu0 0
        %1097 = vperm.xlu0 %1096, %v1091
        %v1098 = vpop.permute.xlu0 %1097
        %1101 = vset.pattern.permute.xlu0 0
        %1102 = vperm.xlu0 %1101, %v1092
        %v1103 = vpop.permute.xlu0 %1102
        %1106 = vset.pattern.permute.xlu0 0
        %1107 = vperm.xlu0 %1106, %v1093
        %v1108 = vpop.permute.xlu0 %1107
        %1111 = vset.pattern.permute.xlu0 0
        %1112 = vperm.xlu0 %1111, %v1094
        %v1113 = vpop.permute.xlu0 %1112
        %v1119 = vunpack.c.l.b16 %v1086
        %v1120 = vunpack.c.l.b16 %v1087
        %v1121 = vunpack.c.l.b16 %v1088
        %v1122 = vunpack.c.l.b16 %v1089
        %v1123 = vpack.c.b16 %v1120, %v1119
        %v1124 = vpack.c.b16 %v1122, %v1121
        %vm1125 = vcmask 261120
        %v1127 = vsel %vm1125, %v1123, 0
        %v1130 = vsel %vm1125, %v1124, 0
        %1132 = vmatprep.subr.bf16.mxu0 %v1071
        %1133 = vmatpush1.bf16.msra.mxu0 %v1070
        %1134 = vmatprep.subr.bf16.mxu0 %v1079
        %1135 = vmatpush1.bf16.msra.mxu0 %v1078
        %1136 = vmatprep.subr.bf16.mxu0 0
        %1137 = vmatpush1.bf16.msra.mxu0 0
        %1138 = vmatprep.subr.bf16.mxu0 0
        %1139 = vmatpush1.bf16.msra.mxu0 0
        %1140 = vmatprep.subr.bf16.mxu0 0
        %1141 = vmatpush1.bf16.msra.mxu0 0
        %1142 = vmatprep.subr.bf16.mxu0 0
        %1143 = vmatpush1.bf16.msra.mxu0 0
        %1144 = vmatprep.subr.bf16.mxu0 0
        %1145 = vmatpush1.bf16.msra.mxu0 0
        %1146 = vmatprep.subr.bf16.mxu0 0
        %1147 = vmatpush1.bf16.msra.mxu0 0
        %1148 = vmatprep.subr.bf16.mxu0 0
        %1149 = vmatpush1.bf16.msra.mxu0 0
        %1150 = vmatprep.subr.bf16.mxu0 0
        %1151 = vmatpush1.bf16.msra.mxu0 0
        %1152 = vmatprep.subr.bf16.mxu0 0
        %1153 = vmatpush1.bf16.msra.mxu0 0
        %1154 = vmatprep.subr.bf16.mxu0 0
        %1155 = vmatpush1.bf16.msra.mxu0 0
        %1156 = vmatprep.subr.bf16.mxu0 0
        %1157 = vmatpush1.bf16.msra.mxu0 0
        %1158 = vmatprep.subr.bf16.mxu0 0
        %1159 = vmatpush1.bf16.msra.mxu0 0
        %1160 = vmatprep.subr.bf16.mxu0 0
        %1161 = vmatpush1.bf16.msra.mxu0 0
        %1162 = vmatprep.subr.bf16.mxu0 0
        %1163 = vmatpush1.bf16.msra.mxu0 0
        %1164 = vmatprep.mubr.bf16.mxu0 0
        %1165 = vmatmul.mubr.bf16.gmra.mrb[0].mxu0 %v1127
        %v1166 = vpop.f32.mrb[0].mxu0
        %v1167 = vadd.f32 %v1098, %v1166
        %v1168 = vpop.f32.mrb[0].mxu0
        %v1169 = vadd.f32 %v1098, %v1168
        %v1170 = vpop.f32.mrb[0].mxu0
        %v1171 = vadd.f32 %v1103, %v1170
        %v1172 = vpop.f32.mrb[0].mxu0
        %v1173 = vadd.f32 %v1103, %v1172
        %1174 = vmatprep.mubr.bf16.mxu0 0
        %1175 = vmatmul.mubr.bf16.gmra.mrb[0].mxu0 %v1130
        %v1176 = vpop.f32.mrb[0].mxu0
        %v1177 = vadd.f32 %v1108, %v1176
        %v1178 = vpop.f32.mrb[0].mxu0
        %v1179 = vadd.f32 %v1108, %v1178
        %v1180 = vpop.f32.mrb[0].mxu0
        %v1181 = vadd.f32 %v1113, %v1180
        %v1182 = vpop.f32.mrb[0].mxu0
        %v1183 = vadd.f32 %v1113, %v1182
        %1184 = vdwg.mxu0
        %1185 = vmatprep.subr.bf16.mxu0 %v1073
        %1186 = vmatpush1.bf16.msra.mxu0 %v1072
        %1187 = vmatprep.subr.bf16.mxu0 %v1081
        %1188 = vmatpush1.bf16.msra.mxu0 %v1080
        %1189 = vmatprep.subr.bf16.mxu0 0
        %1190 = vmatpush1.bf16.msra.mxu0 0
        %1191 = vmatprep.subr.bf16.mxu0 0
        %1192 = vmatpush1.bf16.msra.mxu0 0
        %1193 = vmatprep.subr.bf16.mxu0 0
        %1194 = vmatpush1.bf16.msra.mxu0 0
        %1195 = vmatprep.subr.bf16.mxu0 0
        %1196 = vmatpush1.bf16.msra.mxu0 0
        %1197 = vmatprep.subr.bf16.mxu0 0
        %1198 = vmatpush1.bf16.msra.mxu0 0
        %1199 = vmatprep.subr.bf16.mxu0 0
        %1200 = vmatpush1.bf16.msra.mxu0 0
        %1201 = vmatprep.subr.bf16.mxu0 0
        %1202 = vmatpush1.bf16.msra.mxu0 0
        %1203 = vmatprep.subr.bf16.mxu0 0
        %1204 = vmatpush1.bf16.msra.mxu0 0
        %1205 = vmatprep.subr.bf16.mxu0 0
        %1206 = vmatpush1.bf16.msra.mxu0 0
        %1207 = vmatprep.subr.bf16.mxu0 0
        %1208 = vmatpush1.bf16.msra.mxu0 0
        %1209 = vmatprep.subr.bf16.mxu0 0
        %1210 = vmatpush1.bf16.msra.mxu0 0
        %1211 = vmatprep.subr.bf16.mxu0 0
        %1212 = vmatpush1.bf16.msra.mxu0 0
        %1213 = vmatprep.subr.bf16.mxu0 0
        %1214 = vmatpush1.bf16.msra.mxu0 0
        %1215 = vmatprep.subr.bf16.mxu0 0
        %1216 = vmatpush1.bf16.msra.mxu0 0
        %1217 = vmatprep.mubr.bf16.mxu0 0
        %1218 = vmatmul.mubr.bf16.gmra.mrb[0].mxu0 %v1127
        %v1219 = vpop.f32.mrb[0].mxu0
        %v1220 = vadd.f32 %v1098, %v1219
        %v1221 = vpop.f32.mrb[0].mxu0
        %v1222 = vadd.f32 %v1098, %v1221
        %v1223 = vpop.f32.mrb[0].mxu0
        %v1224 = vadd.f32 %v1103, %v1223
        %v1225 = vpop.f32.mrb[0].mxu0
        %v1226 = vadd.f32 %v1103, %v1225
        %1227 = vmatprep.mubr.bf16.mxu0 0
        %1228 = vmatmul.mubr.bf16.gmra.mrb[0].mxu0 %v1130
        %v1229 = vpop.f32.mrb[0].mxu0
        %v1230 = vadd.f32 %v1108, %v1229
        %v1231 = vpop.f32.mrb[0].mxu0
        %v1232 = vadd.f32 %v1108, %v1231
        %v1233 = vpop.f32.mrb[0].mxu0
        %v1234 = vadd.f32 %v1113, %v1233
        %v1235 = vpop.f32.mrb[0].mxu0
        %v1236 = vadd.f32 %v1113, %v1235
        %1237 = vdwg.mxu0
        %1238 = vmatprep.subr.bf16.mxu0 %v1075
        %1239 = vmatpush1.bf16.msra.mxu0 %v1074
        %1240 = vmatprep.subr.bf16.mxu0 %v1083
        %1241 = vmatpush1.bf16.msra.mxu0 %v1082
        %1242 = vmatprep.subr.bf16.mxu0 0
        %1243 = vmatpush1.bf16.msra.mxu0 0
        %1244 = vmatprep.subr.bf16.mxu0 0
        %1245 = vmatpush1.bf16.msra.mxu0 0
        %1246 = vmatprep.subr.bf16.mxu0 0
        %1247 = vmatpush1.bf16.msra.mxu0 0
        %1248 = vmatprep.subr.bf16.mxu0 0
        %1249 = vmatpush1.bf16.msra.mxu0 0
        %1250 = vmatprep.subr.bf16.mxu0 0
        %1251 = vmatpush1.bf16.msra.mxu0 0
        %1252 = vmatprep.subr.bf16.mxu0 0
        %1253 = vmatpush1.bf16.msra.mxu0 0
        %1254 = vmatprep.subr.bf16.mxu0 0
        %1255 = vmatpush1.bf16.msra.mxu0 0
        %1256 = vmatprep.subr.bf16.mxu0 0
        %1257 = vmatpush1.bf16.msra.mxu0 0
        %1258 = vmatprep.subr.bf16.mxu0 0
        %1259 = vmatpush1.bf16.msra.mxu0 0
        %1260 = vmatprep.subr.bf16.mxu0 0
        %1261 = vmatpush1.bf16.msra.mxu0 0
        %1262 = vmatprep.subr.bf16.mxu0 0
        %1263 = vmatpush1.bf16.msra.mxu0 0
        %1264 = vmatprep.subr.bf16.mxu0 0
        %1265 = vmatpush1.bf16.msra.mxu0 0
        %1266 = vmatprep.subr.bf16.mxu0 0
        %1267 = vmatpush1.bf16.msra.mxu0 0
        %1268 = vmatprep.subr.bf16.mxu0 0
        %1269 = vmatpush1.bf16.msra.mxu0 0
        %1270 = vmatprep.mubr.bf16.mxu0 0
        %1271 = vmatmul.mubr.bf16.gmra.mrb[0].mxu0 %v1127
        %v1272 = vpop.f32.mrb[0].mxu0
        %v1273 = vadd.f32 %v1098, %v1272
        %v1274 = vpop.f32.mrb[0].mxu0
        %v1275 = vadd.f32 %v1098, %v1274
        %v1276 = vpop.f32.mrb[0].mxu0
        %v1277 = vadd.f32 %v1103, %v1276
        %v1278 = vpop.f32.mrb[0].mxu0
        %v1279 = vadd.f32 %v1103, %v1278
        %1280 = vmatprep.mubr.bf16.mxu0 0
        %1281 = vmatmul.mubr.bf16.gmra.mrb[0].mxu0 %v1130
        %v1282 = vpop.f32.mrb[0].mxu0
        %v1283 = vadd.f32 %v1108, %v1282
        %v1284 = vpop.f32.mrb[0].mxu0
        %v1285 = vadd.f32 %v1108, %v1284
        %v1286 = vpop.f32.mrb[0].mxu0
        %v1287 = vadd.f32 %v1113, %v1286
        %v1288 = vpop.f32.mrb[0].mxu0
        %v1289 = vadd.f32 %v1113, %v1288
        %1290 = vdwg.mxu0
        %1291 = vmatprep.subr.bf16.mxu0 %v1077
        %1292 = vmatpush1.bf16.msra.mxu0 %v1076
        %1293 = vmatprep.subr.bf16.mxu0 %v1085
        %1294 = vmatpush1.bf16.msra.mxu0 %v1084
        %1295 = vmatprep.subr.bf16.mxu0 0
        %1296 = vmatpush1.bf16.msra.mxu0 0
        %1297 = vmatprep.subr.bf16.mxu0 0
        %1298 = vmatpush1.bf16.msra.mxu0 0
        %1299 = vmatprep.subr.bf16.mxu0 0
        %1300 = vmatpush1.bf16.msra.mxu0 0
        %1301 = vmatprep.subr.bf16.mxu0 0
        %1302 = vmatpush1.bf16.msra.mxu0 0
        %1303 = vmatprep.subr.bf16.mxu0 0
        %1304 = vmatpush1.bf16.msra.mxu0 0
        %1305 = vmatprep.subr.bf16.mxu0 0
        %1306 = vmatpush1.bf16.msra.mxu0 0
        %1307 = vmatprep.subr.bf16.mxu0 0
        %1308 = vmatpush1.bf16.msra.mxu0 0
        %1309 = vmatprep.subr.bf16.mxu0 0
        %1310 = vmatpush1.bf16.msra.mxu0 0
        %1311 = vmatprep.subr.bf16.mxu0 0
        %1312 = vmatpush1.bf16.msra.mxu0 0
        %1313 = vmatprep.subr.bf16.mxu0 0
        %1314 = vmatpush1.bf16.msra.mxu0 0
        %1315 = vmatprep.subr.bf16.mxu0 0
        %1316 = vmatpush1.bf16.msra.mxu0 0
        %1317 = vmatprep.subr.bf16.mxu0 0
        %1318 = vmatpush1.bf16.msra.mxu0 0
        %1319 = vmatprep.subr.bf16.mxu0 0
        %1320 = vmatpush1.bf16.msra.mxu0 0
        %1321 = vmatprep.subr.bf16.mxu0 0
        %1322 = vmatpush1.bf16.msra.mxu0 0
        %1323 = vmatprep.mubr.bf16.mxu0 0
        %1324 = vmatmul.mubr.bf16.gmra.mrb[0].mxu0 %v1127
        %v1325 = vpop.f32.mrb[0].mxu0
        %v1326 = vadd.f32 %v1098, %v1325
        %v1327 = vpop.f32.mrb[0].mxu0
        %v1328 = vadd.f32 %v1098, %v1327
        %v1329 = vpop.f32.mrb[0].mxu0
        %v1330 = vadd.f32 %v1103, %v1329
        %v1331 = vpop.f32.mrb[0].mxu0
        %v1332 = vadd.f32 %v1103, %v1331
        %1333 = vmatprep.mubr.bf16.mxu0 0
        %1334 = vmatmul.mubr.bf16.gmra.mrb[0].mxu0 %v1130
        %v1335 = vpop.f32.mrb[0].mxu0
        %v1336 = vadd.f32 %v1108, %v1335
        %v1337 = vpop.f32.mrb[0].mxu0
        %v1338 = vadd.f32 %v1108, %v1337
        %v1339 = vpop.f32.mrb[0].mxu0
        %v1340 = vadd.f32 %v1113, %v1339
        %v1341 = vpop.f32.mrb[0].mxu0
        %v1342 = vadd.f32 %v1113, %v1341
        %1343 = vdwg.mxu0
        %v1344 = vmax.f32 %v1167, 0.0
        %v1345 = vmax.f32 %v1169, 0.0
        %v1346 = vmax.f32 %v1220, 0.0
        %v1347 = vmax.f32 %v1222, 0.0
        %v1348 = vmax.f32 %v1273, 0.0
        %v1349 = vmax.f32 %v1275, 0.0
        %v1350 = vmax.f32 %v1326, 0.0
        %v1351 = vmax.f32 %v1328, 0.0
        %v1352 = vmax.f32 %v1171, 0.0
        %v1353 = vmax.f32 %v1173, 0.0
        %v1354 = vmax.f32 %v1224, 0.0
        %v1355 = vmax.f32 %v1226, 0.0
        %v1356 = vmax.f32 %v1277, 0.0
        %v1357 = vmax.f32 %v1279, 0.0
        %v1358 = vmax.f32 %v1330, 0.0
        %v1359 = vmax.f32 %v1332, 0.0
        %v1360 = vmax.f32 %v1177, 0.0
        %v1361 = vmax.f32 %v1179, 0.0
        %v1362 = vmax.f32 %v1230, 0.0
        %v1363 = vmax.f32 %v1232, 0.0
        %v1364 = vmax.f32 %v1283, 0.0
        %v1365 = vmax.f32 %v1285, 0.0
        %v1366 = vmax.f32 %v1336, 0.0
        %v1367 = vmax.f32 %v1338, 0.0
        %v1368 = vmax.f32 %v1181, 0.0
        %v1369 = vmax.f32 %v1183, 0.0
        %v1370 = vmax.f32 %v1234, 0.0
        %v1371 = vmax.f32 %v1236, 0.0
        %v1372 = vmax.f32 %v1287, 0.0
        %v1373 = vmax.f32 %v1289, 0.0
        %v1374 = vmax.f32 %v1340, 0.0
        %v1375 = vmax.f32 %v1342, 0.0
        %v1376 = vpack.c.bf16 %v1352, %v1344
        %v1377 = vpack.c.bf16 %v1353, %v1345
        %v1378 = vpack.c.bf16 %v1354, %v1346
        %v1379 = vpack.c.bf16 %v1355, %v1347
        %v1380 = vpack.c.bf16 %v1356, %v1348
        %v1381 = vpack.c.bf16 %v1357, %v1349
        %v1382 = vpack.c.bf16 %v1358, %v1350
        %v1383 = vpack.c.bf16 %v1359, %v1351
        %v1384 = vpack.c.bf16 %v1368, %v1360
        %v1385 = vpack.c.bf16 %v1369, %v1361
        %v1386 = vpack.c.bf16 %v1370, %v1362
        %v1387 = vpack.c.bf16 %v1371, %v1363
        %v1388 = vpack.c.bf16 %v1372, %v1364
        %v1389 = vpack.c.bf16 %v1373, %v1365
        %v1390 = vpack.c.bf16 %v1374, %v1366
        %v1391 = vpack.c.bf16 %v1375, %v1367
        %s1392 = scalar_lea.vmem %s3, 16
        %v1393 = vld [vmem:[%s1392] sm:$0xf]
        %v1394 = vld [vmem:[%s1392 + $0x4] sm:$0xf]
        %v1395 = vld [vmem:[%s1392 + $0x8] sm:$0xf]
        %v1396 = vld [vmem:[%s1392 + $0xc] sm:$0xf]
        %s1397 = scalar_lea.vmem %s2, 64
        %v1398 = vld [vmem:[%s1397] sm:$0xff]
        %v1399 = vld [vmem:[%s1397 + $0x8] sm:$0xff]
        %v1400 = vld [vmem:[%s1397 + $0x10] sm:$0xff]
        %v1401 = vld [vmem:[%s1397 + $0x18] sm:$0xff]
        %1403 = vset.pattern.permute.xlu0 0
        %1404 = vperm.xlu0 %1403, %v1398
        %v1405 = vpop.permute.xlu0 %1404
        %1408 = vset.pattern.permute.xlu0 0
        %1409 = vperm.xlu0 %1408, %v1399
        %v1410 = vpop.permute.xlu0 %1409
        %1413 = vset.pattern.permute.xlu0 0
        %1414 = vperm.xlu0 %1413, %v1400
        %v1415 = vpop.permute.xlu0 %1414
        %1418 = vset.pattern.permute.xlu0 0
        %1419 = vperm.xlu0 %1418, %v1401
        %v1420 = vpop.permute.xlu0 %1419
        %v1426 = vunpack.c.l.b16 %v1393
        %v1427 = vunpack.c.l.b16 %v1394
        %v1428 = vunpack.c.l.b16 %v1395
        %v1429 = vunpack.c.l.b16 %v1396
        %v1430 = vpack.c.b16 %v1427, %v1426
        %v1431 = vpack.c.b16 %v1429, %v1428
        %v1433 = vsel %vm1125, %v1430, 0
        %v1436 = vsel %vm1125, %v1431, 0
        %1438 = vmatprep.subr.bf16.mxu0 %v1377
        %1439 = vmatpush1.bf16.msra.mxu0 %v1376
        %1440 = vmatprep.subr.bf16.mxu0 %v1385
        %1441 = vmatpush1.bf16.msra.mxu0 %v1384
        %1442 = vmatprep.subr.bf16.mxu0 0
        %1443 = vmatpush1.bf16.msra.mxu0 0
        %1444 = vmatprep.subr.bf16.mxu0 0
        %1445 = vmatpush1.bf16.msra.mxu0 0
        %1446 = vmatprep.subr.bf16.mxu0 0
        %1447 = vmatpush1.bf16.msra.mxu0 0
        %1448 = vmatprep.subr.bf16.mxu0 0
        %1449 = vmatpush1.bf16.msra.mxu0 0
        %1450 = vmatprep.subr.bf16.mxu0 0
        %1451 = vmatpush1.bf16.msra.mxu0 0
        %1452 = vmatprep.subr.bf16.mxu0 0
        %1453 = vmatpush1.bf16.msra.mxu0 0
        %1454 = vmatprep.subr.bf16.mxu0 0
        %1455 = vmatpush1.bf16.msra.mxu0 0
        %1456 = vmatprep.subr.bf16.mxu0 0
        %1457 = vmatpush1.bf16.msra.mxu0 0
        %1458 = vmatprep.subr.bf16.mxu0 0
        %1459 = vmatpush1.bf16.msra.mxu0 0
        %1460 = vmatprep.subr.bf16.mxu0 0
        %1461 = vmatpush1.bf16.msra.mxu0 0
        %1462 = vmatprep.subr.bf16.mxu0 0
        %1463 = vmatpush1.bf16.msra.mxu0 0
        %1464 = vmatprep.subr.bf16.mxu0 0
        %1465 = vmatpush1.bf16.msra.mxu0 0
        %1466 = vmatprep.subr.bf16.mxu0 0
        %1467 = vmatpush1.bf16.msra.mxu0 0
        %1468 = vmatprep.subr.bf16.mxu0 0
        %1469 = vmatpush1.bf16.msra.mxu0 0
        %1470 = vmatprep.mubr.bf16.mxu0 0
        %1471 = vmatmul.mubr.bf16.gmra.mrb[0].mxu0 %v1433
        %v1472 = vpop.f32.mrb[0].mxu0
        %v1473 = vadd.f32 %v1405, %v1472
        %v1474 = vpop.f32.mrb[0].mxu0
        %v1475 = vadd.f32 %v1405, %v1474
        %v1476 = vpop.f32.mrb[0].mxu0
        %v1477 = vadd.f32 %v1410, %v1476
        %v1478 = vpop.f32.mrb[0].mxu0
        %v1479 = vadd.f32 %v1410, %v1478
        %1480 = vmatprep.mubr.bf16.mxu0 0
        %1481 = vmatmul.mubr.bf16.gmra.mrb[0].mxu0 %v1436
        %v1482 = vpop.f32.mrb[0].mxu0
        %v1483 = vadd.f32 %v1415, %v1482
        %v1484 = vpop.f32.mrb[0].mxu0
        %v1485 = vadd.f32 %v1415, %v1484
        %v1486 = vpop.f32.mrb[0].mxu0
        %v1487 = vadd.f32 %v1420, %v1486
        %v1488 = vpop.f32.mrb[0].mxu0
        %v1489 = vadd.f32 %v1420, %v1488
        %1490 = vdwg.mxu0
        %1491 = vmatprep.subr.bf16.mxu0 %v1379
        %1492 = vmatpush1.bf16.msra.mxu0 %v1378
        %1493 = vmatprep.subr.bf16.mxu0 %v1387
        %1494 = vmatpush1.bf16.msra.mxu0 %v1386
        %1495 = vmatprep.subr.bf16.mxu0 0
        %1496 = vmatpush1.bf16.msra.mxu0 0
        %1497 = vmatprep.subr.bf16.mxu0 0
        %1498 = vmatpush1.bf16.msra.mxu0 0
        %1499 = vmatprep.subr.bf16.mxu0 0
        %1500 = vmatpush1.bf16.msra.mxu0 0
        %1501 = vmatprep.subr.bf16.mxu0 0
        %1502 = vmatpush1.bf16.msra.mxu0 0
        %1503 = vmatprep.subr.bf16.mxu0 0
        %1504 = vmatpush1.bf16.msra.mxu0 0
        %1505 = vmatprep.subr.bf16.mxu0 0
        %1506 = vmatpush1.bf16.msra.mxu0 0
        %1507 = vmatprep.subr.bf16.mxu0 0
        %1508 = vmatpush1.bf16.msra.mxu0 0
        %1509 = vmatprep.subr.bf16.mxu0 0
        %1510 = vmatpush1.bf16.msra.mxu0 0
        %1511 = vmatprep.subr.bf16.mxu0 0
        %1512 = vmatpush1.bf16.msra.mxu0 0
        %1513 = vmatprep.subr.bf16.mxu0 0
        %1514 = vmatpush1.bf16.msra.mxu0 0
        %1515 = vmatprep.subr.bf16.mxu0 0
        %1516 = vmatpush1.bf16.msra.mxu0 0
        %1517 = vmatprep.subr.bf16.mxu0 0
        %1518 = vmatpush1.bf16.msra.mxu0 0
        %1519 = vmatprep.subr.bf16.mxu0 0
        %1520 = vmatpush1.bf16.msra.mxu0 0
        %1521 = vmatprep.subr.bf16.mxu0 0
        %1522 = vmatpush1.bf16.msra.mxu0 0
        %1523 = vmatprep.mubr.bf16.mxu0 0
        %1524 = vmatmul.mubr.bf16.gmra.mrb[0].mxu0 %v1433
        %v1525 = vpop.f32.mrb[0].mxu0
        %v1526 = vadd.f32 %v1405, %v1525
        %v1527 = vpop.f32.mrb[0].mxu0
        %v1528 = vadd.f32 %v1405, %v1527
        %v1529 = vpop.f32.mrb[0].mxu0
        %v1530 = vadd.f32 %v1410, %v1529
        %v1531 = vpop.f32.mrb[0].mxu0
        %v1532 = vadd.f32 %v1410, %v1531
        %1533 = vmatprep.mubr.bf16.mxu0 0
        %1534 = vmatmul.mubr.bf16.gmra.mrb[0].mxu0 %v1436
        %v1535 = vpop.f32.mrb[0].mxu0
        %v1536 = vadd.f32 %v1415, %v1535
        %v1537 = vpop.f32.mrb[0].mxu0
        %v1538 = vadd.f32 %v1415, %v1537
        %v1539 = vpop.f32.mrb[0].mxu0
        %v1540 = vadd.f32 %v1420, %v1539
        %v1541 = vpop.f32.mrb[0].mxu0
        %v1542 = vadd.f32 %v1420, %v1541
        %1543 = vdwg.mxu0
        %1544 = vmatprep.subr.bf16.mxu0 %v1381
        %1545 = vmatpush1.bf16.msra.mxu0 %v1380
        %1546 = vmatprep.subr.bf16.mxu0 %v1389
        %1547 = vmatpush1.bf16.msra.mxu0 %v1388
        %1548 = vmatprep.subr.bf16.mxu0 0
        %1549 = vmatpush1.bf16.msra.mxu0 0
        %1550 = vmatprep.subr.bf16.mxu0 0
        %1551 = vmatpush1.bf16.msra.mxu0 0
        %1552 = vmatprep.subr.bf16.mxu0 0
        %1553 = vmatpush1.bf16.msra.mxu0 0
        %1554 = vmatprep.subr.bf16.mxu0 0
        %1555 = vmatpush1.bf16.msra.mxu0 0
        %1556 = vmatprep.subr.bf16.mxu0 0
        %1557 = vmatpush1.bf16.msra.mxu0 0
        %1558 = vmatprep.subr.bf16.mxu0 0
        %1559 = vmatpush1.bf16.msra.mxu0 0
        %1560 = vmatprep.subr.bf16.mxu0 0
        %1561 = vmatpush1.bf16.msra.mxu0 0
        %1562 = vmatprep.subr.bf16.mxu0 0
        %1563 = vmatpush1.bf16.msra.mxu0 0
        %1564 = vmatprep.subr.bf16.mxu0 0
        %1565 = vmatpush1.bf16.msra.mxu0 0
        %1566 = vmatprep.subr.bf16.mxu0 0
        %1567 = vmatpush1.bf16.msra.mxu0 0
        %1568 = vmatprep.subr.bf16.mxu0 0
        %1569 = vmatpush1.bf16.msra.mxu0 0
        %1570 = vmatprep.subr.bf16.mxu0 0
        %1571 = vmatpush1.bf16.msra.mxu0 0
        %1572 = vmatprep.subr.bf16.mxu0 0
        %1573 = vmatpush1.bf16.msra.mxu0 0
        %1574 = vmatprep.subr.bf16.mxu0 0
        %1575 = vmatpush1.bf16.msra.mxu0 0
        %1576 = vmatprep.mubr.bf16.mxu0 0
        %1577 = vmatmul.mubr.bf16.gmra.mrb[0].mxu0 %v1433
        %v1578 = vpop.f32.mrb[0].mxu0
        %v1579 = vadd.f32 %v1405, %v1578
        %v1580 = vpop.f32.mrb[0].mxu0
        %v1581 = vadd.f32 %v1405, %v1580
        %v1582 = vpop.f32.mrb[0].mxu0
        %v1583 = vadd.f32 %v1410, %v1582
        %v1584 = vpop.f32.mrb[0].mxu0
        %v1585 = vadd.f32 %v1410, %v1584
        %1586 = vmatprep.mubr.bf16.mxu0 0
        %1587 = vmatmul.mubr.bf16.gmra.mrb[0].mxu0 %v1436
        %v1588 = vpop.f32.mrb[0].mxu0
        %v1589 = vadd.f32 %v1415, %v1588
        %v1590 = vpop.f32.mrb[0].mxu0
        %v1591 = vadd.f32 %v1415, %v1590
        %v1592 = vpop.f32.mrb[0].mxu0
        %v1593 = vadd.f32 %v1420, %v1592
        %v1594 = vpop.f32.mrb[0].mxu0
        %v1595 = vadd.f32 %v1420, %v1594
        %1596 = vdwg.mxu0
        %1597 = vmatprep.subr.bf16.mxu0 %v1383
        %1598 = vmatpush1.bf16.msra.mxu0 %v1382
        %1599 = vmatprep.subr.bf16.mxu0 %v1391
        %1600 = vmatpush1.bf16.msra.mxu0 %v1390
        %1601 = vmatprep.subr.bf16.mxu0 0
        %1602 = vmatpush1.bf16.msra.mxu0 0
        %1603 = vmatprep.subr.bf16.mxu0 0
        %1604 = vmatpush1.bf16.msra.mxu0 0
        %1605 = vmatprep.subr.bf16.mxu0 0
        %1606 = vmatpush1.bf16.msra.mxu0 0
        %1607 = vmatprep.subr.bf16.mxu0 0
        %1608 = vmatpush1.bf16.msra.mxu0 0
        %1609 = vmatprep.subr.bf16.mxu0 0
        %1610 = vmatpush1.bf16.msra.mxu0 0
        %1611 = vmatprep.subr.bf16.mxu0 0
        %1612 = vmatpush1.bf16.msra.mxu0 0
        %1613 = vmatprep.subr.bf16.mxu0 0
        %1614 = vmatpush1.bf16.msra.mxu0 0
        %1615 = vmatprep.subr.bf16.mxu0 0
        %1616 = vmatpush1.bf16.msra.mxu0 0
        %1617 = vmatprep.subr.bf16.mxu0 0
        %1618 = vmatpush1.bf16.msra.mxu0 0
        %1619 = vmatprep.subr.bf16.mxu0 0
        %1620 = vmatpush1.bf16.msra.mxu0 0
        %1621 = vmatprep.subr.bf16.mxu0 0
        %1622 = vmatpush1.bf16.msra.mxu0 0
        %1623 = vmatprep.subr.bf16.mxu0 0
        %1624 = vmatpush1.bf16.msra.mxu0 0
        %1625 = vmatprep.subr.bf16.mxu0 0
        %1626 = vmatpush1.bf16.msra.mxu0 0
        %1627 = vmatprep.subr.bf16.mxu0 0
        %1628 = vmatpush1.bf16.msra.mxu0 0
        %1629 = vmatprep.mubr.bf16.mxu0 0
        %1630 = vmatmul.mubr.bf16.gmra.mrb[0].mxu0 %v1433
        %v1631 = vpop.f32.mrb[0].mxu0
        %v1632 = vadd.f32 %v1405, %v1631
        %v1633 = vpop.f32.mrb[0].mxu0
        %v1634 = vadd.f32 %v1405, %v1633
        %v1635 = vpop.f32.mrb[0].mxu0
        %v1636 = vadd.f32 %v1410, %v1635
        %v1637 = vpop.f32.mrb[0].mxu0
        %v1638 = vadd.f32 %v1410, %v1637
        %1639 = vmatprep.mubr.bf16.mxu0 0
        %1640 = vmatmul.mubr.bf16.gmra.mrb[0].mxu0 %v1436
        %v1641 = vpop.f32.mrb[0].mxu0
        %v1642 = vadd.f32 %v1415, %v1641
        %v1643 = vpop.f32.mrb[0].mxu0
        %v1644 = vadd.f32 %v1415, %v1643
        %v1645 = vpop.f32.mrb[0].mxu0
        %v1646 = vadd.f32 %v1420, %v1645
        %v1647 = vpop.f32.mrb[0].mxu0
        %v1648 = vadd.f32 %v1420, %v1647
        %1649 = vdwg.mxu0
        %v1650 = vmax.f32 %v1473, 0.0
        %v1651 = vmax.f32 %v1475, 0.0
        %v1652 = vmax.f32 %v1526, 0.0
        %v1653 = vmax.f32 %v1528, 0.0
        %v1654 = vmax.f32 %v1579, 0.0
        %v1655 = vmax.f32 %v1581, 0.0
        %v1656 = vmax.f32 %v1632, 0.0
        %v1657 = vmax.f32 %v1634, 0.0
        %v1658 = vmax.f32 %v1477, 0.0
        %v1659 = vmax.f32 %v1479, 0.0
        %v1660 = vmax.f32 %v1530, 0.0
        %v1661 = vmax.f32 %v1532, 0.0
        %v1662 = vmax.f32 %v1583, 0.0
        %v1663 = vmax.f32 %v1585, 0.0
        %v1664 = vmax.f32 %v1636, 0.0
        %v1665 = vmax.f32 %v1638, 0.0
        %v1666 = vmax.f32 %v1483, 0.0
        %v1667 = vmax.f32 %v1485, 0.0
        %v1668 = vmax.f32 %v1536, 0.0
        %v1669 = vmax.f32 %v1538, 0.0
        %v1670 = vmax.f32 %v1589, 0.0
        %v1671 = vmax.f32 %v1591, 0.0
        %v1672 = vmax.f32 %v1642, 0.0
        %v1673 = vmax.f32 %v1644, 0.0
        %v1674 = vmax.f32 %v1487, 0.0
        %v1675 = vmax.f32 %v1489, 0.0
        %v1676 = vmax.f32 %v1540, 0.0
        %v1677 = vmax.f32 %v1542, 0.0
        %v1678 = vmax.f32 %v1593, 0.0
        %v1679 = vmax.f32 %v1595, 0.0
        %v1680 = vmax.f32 %v1646, 0.0
        %v1681 = vmax.f32 %v1648, 0.0
        %v1682 = vpack.c.bf16 %v1658, %v1650
        %v1683 = vpack.c.bf16 %v1659, %v1651
        %v1684 = vpack.c.bf16 %v1660, %v1652
        %v1685 = vpack.c.bf16 %v1661, %v1653
        %v1686 = vpack.c.bf16 %v1662, %v1654
        %v1687 = vpack.c.bf16 %v1663, %v1655
        %v1688 = vpack.c.bf16 %v1664, %v1656
        %v1689 = vpack.c.bf16 %v1665, %v1657
        %v1690 = vpack.c.bf16 %v1674, %v1666
        %v1691 = vpack.c.bf16 %v1675, %v1667
        %v1692 = vpack.c.bf16 %v1676, %v1668
        %v1693 = vpack.c.bf16 %v1677, %v1669
        %v1694 = vpack.c.bf16 %v1678, %v1670
        %v1695 = vpack.c.bf16 %v1679, %v1671
        %v1696 = vpack.c.bf16 %v1680, %v1672
        %v1697 = vpack.c.bf16 %v1681, %v1673
        %s1698 = scalar_lea.vmem %s3, 32
        %v1699 = vld [vmem:[%s1698] sm:$0xf]
        %v1700 = vld [vmem:[%s1698 + $0x4] sm:$0xf]
        %v1701 = vld [vmem:[%s1698 + $0x8] sm:$0xf]
        %v1702 = vld [vmem:[%s1698 + $0xc] sm:$0xf]
        %s1703 = scalar_lea.vmem %s2, 96
        %v1704 = vld [vmem:[%s1703] sm:$0xff]
        %v1705 = vld [vmem:[%s1703 + $0x8] sm:$0xff]
        %v1706 = vld [vmem:[%s1703 + $0x10] sm:$0xff]
        %v1707 = vld [vmem:[%s1703 + $0x18] sm:$0xff]
        %1709 = vset.pattern.permute.xlu0 0
        %1710 = vperm.xlu0 %1709, %v1704
        %v1711 = vpop.permute.xlu0 %1710
        %1714 = vset.pattern.permute.xlu0 0
        %1715 = vperm.xlu0 %1714, %v1705
        %v1716 = vpop.permute.xlu0 %1715
        %1719 = vset.pattern.permute.xlu0 0
        %1720 = vperm.xlu0 %1719, %v1706
        %v1721 = vpop.permute.xlu0 %1720
        %1724 = vset.pattern.permute.xlu0 0
        %1725 = vperm.xlu0 %1724, %v1707
        %v1726 = vpop.permute.xlu0 %1725
        %v1732 = vunpack.c.l.b16 %v1699
        %v1733 = vunpack.c.l.b16 %v1700
        %v1734 = vunpack.c.l.b16 %v1701
        %v1735 = vunpack.c.l.b16 %v1702
        %v1736 = vpack.c.b16 %v1733, %v1732
        %v1737 = vpack.c.b16 %v1735, %v1734
        %v1739 = vsel %vm1125, %v1736, 0
        %v1742 = vsel %vm1125, %v1737, 0
        %1744 = vmatprep.subr.bf16.mxu0 %v1683
        %1745 = vmatpush1.bf16.msra.mxu0 %v1682
        %1746 = vmatprep.subr.bf16.mxu0 %v1691
        %1747 = vmatpush1.bf16.msra.mxu0 %v1690
        %1748 = vmatprep.subr.bf16.mxu0 0
        %1749 = vmatpush1.bf16.msra.mxu0 0
        %1750 = vmatprep.subr.bf16.mxu0 0
        %1751 = vmatpush1.bf16.msra.mxu0 0
        %1752 = vmatprep.subr.bf16.mxu0 0
        %1753 = vmatpush1.bf16.msra.mxu0 0
        %1754 = vmatprep.subr.bf16.mxu0 0
        %1755 = vmatpush1.bf16.msra.mxu0 0
        %1756 = vmatprep.subr.bf16.mxu0 0
        %1757 = vmatpush1.bf16.msra.mxu0 0
        %1758 = vmatprep.subr.bf16.mxu0 0
        %1759 = vmatpush1.bf16.msra.mxu0 0
        %1760 = vmatprep.subr.bf16.mxu0 0
        %1761 = vmatpush1.bf16.msra.mxu0 0
        %1762 = vmatprep.subr.bf16.mxu0 0
        %1763 = vmatpush1.bf16.msra.mxu0 0
        %1764 = vmatprep.subr.bf16.mxu0 0
        %1765 = vmatpush1.bf16.msra.mxu0 0
        %1766 = vmatprep.subr.bf16.mxu0 0
        %1767 = vmatpush1.bf16.msra.mxu0 0
        %1768 = vmatprep.subr.bf16.mxu0 0
        %1769 = vmatpush1.bf16.msra.mxu0 0
        %1770 = vmatprep.subr.bf16.mxu0 0
        %1771 = vmatpush1.bf16.msra.mxu0 0
        %1772 = vmatprep.subr.bf16.mxu0 0
        %1773 = vmatpush1.bf16.msra.mxu0 0
        %1774 = vmatprep.subr.bf16.mxu0 0
        %1775 = vmatpush1.bf16.msra.mxu0 0
        %1776 = vmatprep.mubr.bf16.mxu0 0
        %1777 = vmatmul.mubr.bf16.gmra.mrb[0].mxu0 %v1739
        %v1778 = vpop.f32.mrb[0].mxu0
        %v1779 = vadd.f32 %v1711, %v1778
        %v1780 = vpop.f32.mrb[0].mxu0
        %v1781 = vadd.f32 %v1711, %v1780
        %v1782 = vpop.f32.mrb[0].mxu0
        %v1783 = vadd.f32 %v1716, %v1782
        %v1784 = vpop.f32.mrb[0].mxu0
        %v1785 = vadd.f32 %v1716, %v1784
        %1786 = vmatprep.mubr.bf16.mxu0 0
        %1787 = vmatmul.mubr.bf16.gmra.mrb[0].mxu0 %v1742
        %v1788 = vpop.f32.mrb[0].mxu0
        %v1789 = vadd.f32 %v1721, %v1788
        %v1790 = vpop.f32.mrb[0].mxu0
        %v1791 = vadd.f32 %v1721, %v1790
        %v1792 = vpop.f32.mrb[0].mxu0
        %v1793 = vadd.f32 %v1726, %v1792
        %v1794 = vpop.f32.mrb[0].mxu0
        %v1795 = vadd.f32 %v1726, %v1794
        %1796 = vdwg.mxu0
        %1797 = vmatprep.subr.bf16.mxu0 %v1685
        %1798 = vmatpush1.bf16.msra.mxu0 %v1684
        %1799 = vmatprep.subr.bf16.mxu0 %v1693
        %1800 = vmatpush1.bf16.msra.mxu0 %v1692
        %1801 = vmatprep.subr.bf16.mxu0 0
        %1802 = vmatpush1.bf16.msra.mxu0 0
        %1803 = vmatprep.subr.bf16.mxu0 0
        %1804 = vmatpush1.bf16.msra.mxu0 0
        %1805 = vmatprep.subr.bf16.mxu0 0
        %1806 = vmatpush1.bf16.msra.mxu0 0
        %1807 = vmatprep.subr.bf16.mxu0 0
        %1808 = vmatpush1.bf16.msra.mxu0 0
        %1809 = vmatprep.subr.bf16.mxu0 0
        %1810 = vmatpush1.bf16.msra.mxu0 0
        %1811 = vmatprep.subr.bf16.mxu0 0
        %1812 = vmatpush1.bf16.msra.mxu0 0
        %1813 = vmatprep.subr.bf16.mxu0 0
        %1814 = vmatpush1.bf16.msra.mxu0 0
        %1815 = vmatprep.subr.bf16.mxu0 0
        %1816 = vmatpush1.bf16.msra.mxu0 0
        %1817 = vmatprep.subr.bf16.mxu0 0
        %1818 = vmatpush1.bf16.msra.mxu0 0
        %1819 = vmatprep.subr.bf16.mxu0 0
        %1820 = vmatpush1.bf16.msra.mxu0 0
        %1821 = vmatprep.subr.bf16.mxu0 0
        %1822 = vmatpush1.bf16.msra.mxu0 0
        %1823 = vmatprep.subr.bf16.mxu0 0
        %1824 = vmatpush1.bf16.msra.mxu0 0
        %1825 = vmatprep.subr.bf16.mxu0 0
        %1826 = vmatpush1.bf16.msra.mxu0 0
        %1827 = vmatprep.subr.bf16.mxu0 0
        %1828 = vmatpush1.bf16.msra.mxu0 0
        %1829 = vmatprep.mubr.bf16.mxu0 0
        %1830 = vmatmul.mubr.bf16.gmra.mrb[0].mxu0 %v1739
        %v1831 = vpop.f32.mrb[0].mxu0
        %v1832 = vadd.f32 %v1711, %v1831
        %v1833 = vpop.f32.mrb[0].mxu0
        %v1834 = vadd.f32 %v1711, %v1833
        %v1835 = vpop.f32.mrb[0].mxu0
        %v1836 = vadd.f32 %v1716, %v1835
        %v1837 = vpop.f32.mrb[0].mxu0
        %v1838 = vadd.f32 %v1716, %v1837
        %1839 = vmatprep.mubr.bf16.mxu0 0
        %1840 = vmatmul.mubr.bf16.gmra.mrb[0].mxu0 %v1742
        %v1841 = vpop.f32.mrb[0].mxu0
        %v1842 = vadd.f32 %v1721, %v1841
        %v1843 = vpop.f32.mrb[0].mxu0
        %v1844 = vadd.f32 %v1721, %v1843
        %v1845 = vpop.f32.mrb[0].mxu0
        %v1846 = vadd.f32 %v1726, %v1845
        %v1847 = vpop.f32.mrb[0].mxu0
        %v1848 = vadd.f32 %v1726, %v1847
        %1849 = vdwg.mxu0
        %1850 = vmatprep.subr.bf16.mxu0 %v1687
        %1851 = vmatpush1.bf16.msra.mxu0 %v1686
        %1852 = vmatprep.subr.bf16.mxu0 %v1695
        %1853 = vmatpush1.bf16.msra.mxu0 %v1694
        %1854 = vmatprep.subr.bf16.mxu0 0
        %1855 = vmatpush1.bf16.msra.mxu0 0
        %1856 = vmatprep.subr.bf16.mxu0 0
        %1857 = vmatpush1.bf16.msra.mxu0 0
        %1858 = vmatprep.subr.bf16.mxu0 0
        %1859 = vmatpush1.bf16.msra.mxu0 0
        %1860 = vmatprep.subr.bf16.mxu0 0
        %1861 = vmatpush1.bf16.msra.mxu0 0
        %1862 = vmatprep.subr.bf16.mxu0 0
        %1863 = vmatpush1.bf16.msra.mxu0 0
        %1864 = vmatprep.subr.bf16.mxu0 0
        %1865 = vmatpush1.bf16.msra.mxu0 0
        %1866 = vmatprep.subr.bf16.mxu0 0
        %1867 = vmatpush1.bf16.msra.mxu0 0
        %1868 = vmatprep.subr.bf16.mxu0 0
        %1869 = vmatpush1.bf16.msra.mxu0 0
        %1870 = vmatprep.subr.bf16.mxu0 0
        %1871 = vmatpush1.bf16.msra.mxu0 0
        %1872 = vmatprep.subr.bf16.mxu0 0
        %1873 = vmatpush1.bf16.msra.mxu0 0
        %1874 = vmatprep.subr.bf16.mxu0 0
        %1875 = vmatpush1.bf16.msra.mxu0 0
        %1876 = vmatprep.subr.bf16.mxu0 0
        %1877 = vmatpush1.bf16.msra.mxu0 0
        %1878 = vmatprep.subr.bf16.mxu0 0
        %1879 = vmatpush1.bf16.msra.mxu0 0
        %1880 = vmatprep.subr.bf16.mxu0 0
        %1881 = vmatpush1.bf16.msra.mxu0 0
        %1882 = vmatprep.mubr.bf16.mxu0 0
        %1883 = vmatmul.mubr.bf16.gmra.mrb[0].mxu0 %v1739
        %v1884 = vpop.f32.mrb[0].mxu0
        %v1885 = vadd.f32 %v1711, %v1884
        %v1886 = vpop.f32.mrb[0].mxu0
        %v1887 = vadd.f32 %v1711, %v1886
        %v1888 = vpop.f32.mrb[0].mxu0
        %v1889 = vadd.f32 %v1716, %v1888
        %v1890 = vpop.f32.mrb[0].mxu0
        %v1891 = vadd.f32 %v1716, %v1890
        %1892 = vmatprep.mubr.bf16.mxu0 0
        %1893 = vmatmul.mubr.bf16.gmra.mrb[0].mxu0 %v1742
        %v1894 = vpop.f32.mrb[0].mxu0
        %v1895 = vadd.f32 %v1721, %v1894
        %v1896 = vpop.f32.mrb[0].mxu0
        %v1897 = vadd.f32 %v1721, %v1896
        %v1898 = vpop.f32.mrb[0].mxu0
        %v1899 = vadd.f32 %v1726, %v1898
        %v1900 = vpop.f32.mrb[0].mxu0
        %v1901 = vadd.f32 %v1726, %v1900
        %1902 = vdwg.mxu0
        %1903 = vmatprep.subr.bf16.mxu0 %v1689
        %1904 = vmatpush1.bf16.msra.mxu0 %v1688
        %1905 = vmatprep.subr.bf16.mxu0 %v1697
        %1906 = vmatpush1.bf16.msra.mxu0 %v1696
        %1907 = vmatprep.subr.bf16.mxu0 0
        %1908 = vmatpush1.bf16.msra.mxu0 0
        %1909 = vmatprep.subr.bf16.mxu0 0
        %1910 = vmatpush1.bf16.msra.mxu0 0
        %1911 = vmatprep.subr.bf16.mxu0 0
        %1912 = vmatpush1.bf16.msra.mxu0 0
        %1913 = vmatprep.subr.bf16.mxu0 0
        %1914 = vmatpush1.bf16.msra.mxu0 0
        %1915 = vmatprep.subr.bf16.mxu0 0
        %1916 = vmatpush1.bf16.msra.mxu0 0
        %1917 = vmatprep.subr.bf16.mxu0 0
        %1918 = vmatpush1.bf16.msra.mxu0 0
        %1919 = vmatprep.subr.bf16.mxu0 0
        %1920 = vmatpush1.bf16.msra.mxu0 0
        %1921 = vmatprep.subr.bf16.mxu0 0
        %1922 = vmatpush1.bf16.msra.mxu0 0
        %1923 = vmatprep.subr.bf16.mxu0 0
        %1924 = vmatpush1.bf16.msra.mxu0 0
        %1925 = vmatprep.subr.bf16.mxu0 0
        %1926 = vmatpush1.bf16.msra.mxu0 0
        %1927 = vmatprep.subr.bf16.mxu0 0
        %1928 = vmatpush1.bf16.msra.mxu0 0
        %1929 = vmatprep.subr.bf16.mxu0 0
        %1930 = vmatpush1.bf16.msra.mxu0 0
        %1931 = vmatprep.subr.bf16.mxu0 0
        %1932 = vmatpush1.bf16.msra.mxu0 0
        %1933 = vmatprep.subr.bf16.mxu0 0
        %1934 = vmatpush1.bf16.msra.mxu0 0
        %1935 = vmatprep.mubr.bf16.mxu0 0
        %1936 = vmatmul.mubr.bf16.gmra.mrb[0].mxu0 %v1739
        %v1937 = vpop.f32.mrb[0].mxu0
        %v1938 = vadd.f32 %v1711, %v1937
        %v1939 = vpop.f32.mrb[0].mxu0
        %v1940 = vadd.f32 %v1711, %v1939
        %v1941 = vpop.f32.mrb[0].mxu0
        %v1942 = vadd.f32 %v1716, %v1941
        %v1943 = vpop.f32.mrb[0].mxu0
        %v1944 = vadd.f32 %v1716, %v1943
        %1945 = vmatprep.mubr.bf16.mxu0 0
        %1946 = vmatmul.mubr.bf16.gmra.mrb[0].mxu0 %v1742
        %v1947 = vpop.f32.mrb[0].mxu0
        %v1948 = vadd.f32 %v1721, %v1947
        %v1949 = vpop.f32.mrb[0].mxu0
        %v1950 = vadd.f32 %v1721, %v1949
        %v1951 = vpop.f32.mrb[0].mxu0
        %v1952 = vadd.f32 %v1726, %v1951
        %v1953 = vpop.f32.mrb[0].mxu0
        %v1954 = vadd.f32 %v1726, %v1953
        %1955 = vdwg.mxu0
        %v1956 = vmax.f32 %v1779, 0.0
        %v1957 = vmax.f32 %v1781, 0.0
        %v1958 = vmax.f32 %v1832, 0.0
        %v1959 = vmax.f32 %v1834, 0.0
        %v1960 = vmax.f32 %v1885, 0.0
        %v1961 = vmax.f32 %v1887, 0.0
        %v1962 = vmax.f32 %v1938, 0.0
        %v1963 = vmax.f32 %v1940, 0.0
        %v1964 = vmax.f32 %v1783, 0.0
        %v1965 = vmax.f32 %v1785, 0.0
        %v1966 = vmax.f32 %v1836, 0.0
        %v1967 = vmax.f32 %v1838, 0.0
        %v1968 = vmax.f32 %v1889, 0.0
        %v1969 = vmax.f32 %v1891, 0.0
        %v1970 = vmax.f32 %v1942, 0.0
        %v1971 = vmax.f32 %v1944, 0.0
        %v1972 = vmax.f32 %v1789, 0.0
        %v1973 = vmax.f32 %v1791, 0.0
        %v1974 = vmax.f32 %v1842, 0.0
        %v1975 = vmax.f32 %v1844, 0.0
        %v1976 = vmax.f32 %v1895, 0.0
        %v1977 = vmax.f32 %v1897, 0.0
        %v1978 = vmax.f32 %v1948, 0.0
        %v1979 = vmax.f32 %v1950, 0.0
        %v1980 = vmax.f32 %v1793, 0.0
        %v1981 = vmax.f32 %v1795, 0.0
        %v1982 = vmax.f32 %v1846, 0.0
        %v1983 = vmax.f32 %v1848, 0.0
        %v1984 = vmax.f32 %v1899, 0.0
        %v1985 = vmax.f32 %v1901, 0.0
        %v1986 = vmax.f32 %v1952, 0.0
        %v1987 = vmax.f32 %v1954, 0.0
        %v1988 = vpack.c.bf16 %v1964, %v1956
        %v1989 = vpack.c.bf16 %v1965, %v1957
        %v1990 = vpack.c.bf16 %v1966, %v1958
        %v1991 = vpack.c.bf16 %v1967, %v1959
        %v1992 = vpack.c.bf16 %v1968, %v1960
        %v1993 = vpack.c.bf16 %v1969, %v1961
        %v1994 = vpack.c.bf16 %v1970, %v1962
        %v1995 = vpack.c.bf16 %v1971, %v1963
        %v1996 = vpack.c.bf16 %v1980, %v1972
        %v1997 = vpack.c.bf16 %v1981, %v1973
        %v1998 = vpack.c.bf16 %v1982, %v1974
        %v1999 = vpack.c.bf16 %v1983, %v1975
        %v2000 = vpack.c.bf16 %v1984, %v1976
        %v2001 = vpack.c.bf16 %v1985, %v1977
        %v2002 = vpack.c.bf16 %v1986, %v1978
        %v2003 = vpack.c.bf16 %v1987, %v1979
        %s2004 = scalar_lea.vmem %s3, 48
        %v2005 = vld [vmem:[%s2004] sm:$0xf]
        %v2006 = vld [vmem:[%s2004 + $0x4] sm:$0xf]
        %v2007 = vld [vmem:[%s2004 + $0x8] sm:$0xf]
        %v2008 = vld [vmem:[%s2004 + $0xc] sm:$0xf]
        %s2009 = scalar_lea.vmem %s2, 128
        %v2010 = vld [vmem:[%s2009] sm:$0xff]
        %v2011 = vld [vmem:[%s2009 + $0x8] sm:$0xff]
        %v2012 = vld [vmem:[%s2009 + $0x10] sm:$0xff]
        %v2013 = vld [vmem:[%s2009 + $0x18] sm:$0xff]
        %2015 = vset.pattern.permute.xlu0 0
        %2016 = vperm.xlu0 %2015, %v2010
        %v2017 = vpop.permute.xlu0 %2016
        %2020 = vset.pattern.permute.xlu0 0
        %2021 = vperm.xlu0 %2020, %v2011
        %v2022 = vpop.permute.xlu0 %2021
        %2025 = vset.pattern.permute.xlu0 0
        %2026 = vperm.xlu0 %2025, %v2012
        %v2027 = vpop.permute.xlu0 %2026
        %2030 = vset.pattern.permute.xlu0 0
        %2031 = vperm.xlu0 %2030, %v2013
        %v2032 = vpop.permute.xlu0 %2031
        %v2038 = vunpack.c.l.b16 %v2005
        %v2039 = vunpack.c.l.b16 %v2006
        %v2040 = vunpack.c.l.b16 %v2007
        %v2041 = vunpack.c.l.b16 %v2008
        %v2042 = vpack.c.b16 %v2039, %v2038
        %v2043 = vpack.c.b16 %v2041, %v2040
        %v2045 = vsel %vm1125, %v2042, 0
        %v2048 = vsel %vm1125, %v2043, 0
        %2050 = vmatprep.subr.bf16.mxu0 %v1989
        %2051 = vmatpush1.bf16.msra.mxu0 %v1988
        %2052 = vmatprep.subr.bf16.mxu0 %v1997
        %2053 = vmatpush1.bf16.msra.mxu0 %v1996
        %2054 = vmatprep.subr.bf16.mxu0 0
        %2055 = vmatpush1.bf16.msra.mxu0 0
        %2056 = vmatprep.subr.bf16.mxu0 0
        %2057 = vmatpush1.bf16.msra.mxu0 0
        %2058 = vmatprep.subr.bf16.mxu0 0
        %2059 = vmatpush1.bf16.msra.mxu0 0
        %2060 = vmatprep.subr.bf16.mxu0 0
        %2061 = vmatpush1.bf16.msra.mxu0 0
        %2062 = vmatprep.subr.bf16.mxu0 0
        %2063 = vmatpush1.bf16.msra.mxu0 0
        %2064 = vmatprep.subr.bf16.mxu0 0
        %2065 = vmatpush1.bf16.msra.mxu0 0
        %2066 = vmatprep.subr.bf16.mxu0 0
        %2067 = vmatpush1.bf16.msra.mxu0 0
        %2068 = vmatprep.subr.bf16.mxu0 0
        %2069 = vmatpush1.bf16.msra.mxu0 0
        %2070 = vmatprep.subr.bf16.mxu0 0
        %2071 = vmatpush1.bf16.msra.mxu0 0
        %2072 = vmatprep.subr.bf16.mxu0 0
        %2073 = vmatpush1.bf16.msra.mxu0 0
        %2074 = vmatprep.subr.bf16.mxu0 0
        %2075 = vmatpush1.bf16.msra.mxu0 0
        %2076 = vmatprep.subr.bf16.mxu0 0
        %2077 = vmatpush1.bf16.msra.mxu0 0
        %2078 = vmatprep.subr.bf16.mxu0 0
        %2079 = vmatpush1.bf16.msra.mxu0 0
        %2080 = vmatprep.subr.bf16.mxu0 0
        %2081 = vmatpush1.bf16.msra.mxu0 0
        %2082 = vmatprep.mubr.bf16.mxu0 0
        %2083 = vmatmul.mubr.bf16.gmra.mrb[0].mxu0 %v2045
        %v2084 = vpop.f32.mrb[0].mxu0
        %v2085 = vadd.f32 %v2017, %v2084
        %v2086 = vpop.f32.mrb[0].mxu0
        %v2087 = vadd.f32 %v2017, %v2086
        %v2088 = vpop.f32.mrb[0].mxu0
        %v2089 = vadd.f32 %v2022, %v2088
        %v2090 = vpop.f32.mrb[0].mxu0
        %v2091 = vadd.f32 %v2022, %v2090
        %2092 = vmatprep.mubr.bf16.mxu0 0
        %2093 = vmatmul.mubr.bf16.gmra.mrb[0].mxu0 %v2048
        %v2094 = vpop.f32.mrb[0].mxu0
        %v2095 = vadd.f32 %v2027, %v2094
        %v2096 = vpop.f32.mrb[0].mxu0
        %v2097 = vadd.f32 %v2027, %v2096
        %v2098 = vpop.f32.mrb[0].mxu0
        %v2099 = vadd.f32 %v2032, %v2098
        %v2100 = vpop.f32.mrb[0].mxu0
        %v2101 = vadd.f32 %v2032, %v2100
        %2102 = vdwg.mxu0
        %2103 = vmatprep.subr.bf16.mxu0 %v1991
        %2104 = vmatpush1.bf16.msra.mxu0 %v1990
        %2105 = vmatprep.subr.bf16.mxu0 %v1999
        %2106 = vmatpush1.bf16.msra.mxu0 %v1998
        %2107 = vmatprep.subr.bf16.mxu0 0
        %2108 = vmatpush1.bf16.msra.mxu0 0
        %2109 = vmatprep.subr.bf16.mxu0 0
        %2110 = vmatpush1.bf16.msra.mxu0 0
        %2111 = vmatprep.subr.bf16.mxu0 0
        %2112 = vmatpush1.bf16.msra.mxu0 0
        %2113 = vmatprep.subr.bf16.mxu0 0
        %2114 = vmatpush1.bf16.msra.mxu0 0
        %2115 = vmatprep.subr.bf16.mxu0 0
        %2116 = vmatpush1.bf16.msra.mxu0 0
        %2117 = vmatprep.subr.bf16.mxu0 0
        %2118 = vmatpush1.bf16.msra.mxu0 0
        %2119 = vmatprep.subr.bf16.mxu0 0
        %2120 = vmatpush1.bf16.msra.mxu0 0
        %2121 = vmatprep.subr.bf16.mxu0 0
        %2122 = vmatpush1.bf16.msra.mxu0 0
        %2123 = vmatprep.subr.bf16.mxu0 0
        %2124 = vmatpush1.bf16.msra.mxu0 0
        %2125 = vmatprep.subr.bf16.mxu0 0
        %2126 = vmatpush1.bf16.msra.mxu0 0
        %2127 = vmatprep.subr.bf16.mxu0 0
        %2128 = vmatpush1.bf16.msra.mxu0 0
        %2129 = vmatprep.subr.bf16.mxu0 0
        %2130 = vmatpush1.bf16.msra.mxu0 0
        %2131 = vmatprep.subr.bf16.mxu0 0
        %2132 = vmatpush1.bf16.msra.mxu0 0
        %2133 = vmatprep.subr.bf16.mxu0 0
        %2134 = vmatpush1.bf16.msra.mxu0 0
        %2135 = vmatprep.mubr.bf16.mxu0 0
        %2136 = vmatmul.mubr.bf16.gmra.mrb[0].mxu0 %v2045
        %v2137 = vpop.f32.mrb[0].mxu0
        %v2138 = vadd.f32 %v2017, %v2137
        %v2139 = vpop.f32.mrb[0].mxu0
        %v2140 = vadd.f32 %v2017, %v2139
        %v2141 = vpop.f32.mrb[0].mxu0
        %v2142 = vadd.f32 %v2022, %v2141
        %v2143 = vpop.f32.mrb[0].mxu0
        %v2144 = vadd.f32 %v2022, %v2143
        %2145 = vmatprep.mubr.bf16.mxu0 0
        %2146 = vmatmul.mubr.bf16.gmra.mrb[0].mxu0 %v2048
        %v2147 = vpop.f32.mrb[0].mxu0
        %v2148 = vadd.f32 %v2027, %v2147
        %v2149 = vpop.f32.mrb[0].mxu0
        %v2150 = vadd.f32 %v2027, %v2149
        %v2151 = vpop.f32.mrb[0].mxu0
        %v2152 = vadd.f32 %v2032, %v2151
        %v2153 = vpop.f32.mrb[0].mxu0
        %v2154 = vadd.f32 %v2032, %v2153
        %2155 = vdwg.mxu0
        %2156 = vmatprep.subr.bf16.mxu0 %v1993
        %2157 = vmatpush1.bf16.msra.mxu0 %v1992
        %2158 = vmatprep.subr.bf16.mxu0 %v2001
        %2159 = vmatpush1.bf16.msra.mxu0 %v2000
        %2160 = vmatprep.subr.bf16.mxu0 0
        %2161 = vmatpush1.bf16.msra.mxu0 0
        %2162 = vmatprep.subr.bf16.mxu0 0
        %2163 = vmatpush1.bf16.msra.mxu0 0
        %2164 = vmatprep.subr.bf16.mxu0 0
        %2165 = vmatpush1.bf16.msra.mxu0 0
        %2166 = vmatprep.subr.bf16.mxu0 0
        %2167 = vmatpush1.bf16.msra.mxu0 0
        %2168 = vmatprep.subr.bf16.mxu0 0
        %2169 = vmatpush1.bf16.msra.mxu0 0
        %2170 = vmatprep.subr.bf16.mxu0 0
        %2171 = vmatpush1.bf16.msra.mxu0 0
        %2172 = vmatprep.subr.bf16.mxu0 0
        %2173 = vmatpush1.bf16.msra.mxu0 0
        %2174 = vmatprep.subr.bf16.mxu0 0
        %2175 = vmatpush1.bf16.msra.mxu0 0
        %2176 = vmatprep.subr.bf16.mxu0 0
        %2177 = vmatpush1.bf16.msra.mxu0 0
        %2178 = vmatprep.subr.bf16.mxu0 0
        %2179 = vmatpush1.bf16.msra.mxu0 0
        %2180 = vmatprep.subr.bf16.mxu0 0
        %2181 = vmatpush1.bf16.msra.mxu0 0
        %2182 = vmatprep.subr.bf16.mxu0 0
        %2183 = vmatpush1.bf16.msra.mxu0 0
        %2184 = vmatprep.subr.bf16.mxu0 0
        %2185 = vmatpush1.bf16.msra.mxu0 0
        %2186 = vmatprep.subr.bf16.mxu0 0
        %2187 = vmatpush1.bf16.msra.mxu0 0
        %2188 = vmatprep.mubr.bf16.mxu0 0
        %2189 = vmatmul.mubr.bf16.gmra.mrb[0].mxu0 %v2045
        %v2190 = vpop.f32.mrb[0].mxu0
        %v2191 = vadd.f32 %v2017, %v2190
        %v2192 = vpop.f32.mrb[0].mxu0
        %v2193 = vadd.f32 %v2017, %v2192
        %v2194 = vpop.f32.mrb[0].mxu0
        %v2195 = vadd.f32 %v2022, %v2194
        %v2196 = vpop.f32.mrb[0].mxu0
        %v2197 = vadd.f32 %v2022, %v2196
        %2198 = vmatprep.mubr.bf16.mxu0 0
        %2199 = vmatmul.mubr.bf16.gmra.mrb[0].mxu0 %v2048
        %v2200 = vpop.f32.mrb[0].mxu0
        %v2201 = vadd.f32 %v2027, %v2200
        %v2202 = vpop.f32.mrb[0].mxu0
        %v2203 = vadd.f32 %v2027, %v2202
        %v2204 = vpop.f32.mrb[0].mxu0
        %v2205 = vadd.f32 %v2032, %v2204
        %v2206 = vpop.f32.mrb[0].mxu0
        %v2207 = vadd.f32 %v2032, %v2206
        %2208 = vdwg.mxu0
        %2209 = vmatprep.subr.bf16.mxu0 %v1995
        %2210 = vmatpush1.bf16.msra.mxu0 %v1994
        %2211 = vmatprep.subr.bf16.mxu0 %v2003
        %2212 = vmatpush1.bf16.msra.mxu0 %v2002
        %2213 = vmatprep.subr.bf16.mxu0 0
        %2214 = vmatpush1.bf16.msra.mxu0 0
        %2215 = vmatprep.subr.bf16.mxu0 0
        %2216 = vmatpush1.bf16.msra.mxu0 0
        %2217 = vmatprep.subr.bf16.mxu0 0
        %2218 = vmatpush1.bf16.msra.mxu0 0
        %2219 = vmatprep.subr.bf16.mxu0 0
        %2220 = vmatpush1.bf16.msra.mxu0 0
        %2221 = vmatprep.subr.bf16.mxu0 0
        %2222 = vmatpush1.bf16.msra.mxu0 0
        %2223 = vmatprep.subr.bf16.mxu0 0
        %2224 = vmatpush1.bf16.msra.mxu0 0
        %2225 = vmatprep.subr.bf16.mxu0 0
        %2226 = vmatpush1.bf16.msra.mxu0 0
        %2227 = vmatprep.subr.bf16.mxu0 0
        %2228 = vmatpush1.bf16.msra.mxu0 0
        %2229 = vmatprep.subr.bf16.mxu0 0
        %2230 = vmatpush1.bf16.msra.mxu0 0
        %2231 = vmatprep.subr.bf16.mxu0 0
        %2232 = vmatpush1.bf16.msra.mxu0 0
        %2233 = vmatprep.subr.bf16.mxu0 0
        %2234 = vmatpush1.bf16.msra.mxu0 0
        %2235 = vmatprep.subr.bf16.mxu0 0
        %2236 = vmatpush1.bf16.msra.mxu0 0
        %2237 = vmatprep.subr.bf16.mxu0 0
        %2238 = vmatpush1.bf16.msra.mxu0 0
        %2239 = vmatprep.subr.bf16.mxu0 0
        %2240 = vmatpush1.bf16.msra.mxu0 0
        %2241 = vmatprep.mubr.bf16.mxu0 0
        %2242 = vmatmul.mubr.bf16.gmra.mrb[0].mxu0 %v2045
        %v2243 = vpop.f32.mrb[0].mxu0
        %v2244 = vadd.f32 %v2017, %v2243
        %v2245 = vpop.f32.mrb[0].mxu0
        %v2246 = vadd.f32 %v2017, %v2245
        %v2247 = vpop.f32.mrb[0].mxu0
        %v2248 = vadd.f32 %v2022, %v2247
        %v2249 = vpop.f32.mrb[0].mxu0
        %v2250 = vadd.f32 %v2022, %v2249
        %2251 = vmatprep.mubr.bf16.mxu0 0
        %2252 = vmatmul.mubr.bf16.gmra.mrb[0].mxu0 %v2048
        %v2253 = vpop.f32.mrb[0].mxu0
        %v2254 = vadd.f32 %v2027, %v2253
        %v2255 = vpop.f32.mrb[0].mxu0
        %v2256 = vadd.f32 %v2027, %v2255
        %v2257 = vpop.f32.mrb[0].mxu0
        %v2258 = vadd.f32 %v2032, %v2257
        %v2259 = vpop.f32.mrb[0].mxu0
        %v2260 = vadd.f32 %v2032, %v2259
        %2261 = vdwg.mxu0
        %v2262 = vmax.f32 %v2085, 0.0
        %v2263 = vmax.f32 %v2087, 0.0
        %v2264 = vmax.f32 %v2138, 0.0
        %v2265 = vmax.f32 %v2140, 0.0
        %v2266 = vmax.f32 %v2191, 0.0
        %v2267 = vmax.f32 %v2193, 0.0
        %v2268 = vmax.f32 %v2244, 0.0
        %v2269 = vmax.f32 %v2246, 0.0
        %v2270 = vmax.f32 %v2089, 0.0
        %v2271 = vmax.f32 %v2091, 0.0
        %v2272 = vmax.f32 %v2142, 0.0
        %v2273 = vmax.f32 %v2144, 0.0
        %v2274 = vmax.f32 %v2195, 0.0
        %v2275 = vmax.f32 %v2197, 0.0
        %v2276 = vmax.f32 %v2248, 0.0
        %v2277 = vmax.f32 %v2250, 0.0
        %v2278 = vmax.f32 %v2095, 0.0
        %v2279 = vmax.f32 %v2097, 0.0
        %v2280 = vmax.f32 %v2148, 0.0
        %v2281 = vmax.f32 %v2150, 0.0
        %v2282 = vmax.f32 %v2201, 0.0
        %v2283 = vmax.f32 %v2203, 0.0
        %v2284 = vmax.f32 %v2254, 0.0
        %v2285 = vmax.f32 %v2256, 0.0
        %v2286 = vmax.f32 %v2099, 0.0
        %v2287 = vmax.f32 %v2101, 0.0
        %v2288 = vmax.f32 %v2152, 0.0
        %v2289 = vmax.f32 %v2154, 0.0
        %v2290 = vmax.f32 %v2205, 0.0
        %v2291 = vmax.f32 %v2207, 0.0
        %v2292 = vmax.f32 %v2258, 0.0
        %v2293 = vmax.f32 %v2260, 0.0
        %v2294 = vpack.c.bf16 %v2270, %v2262
        %v2295 = vpack.c.bf16 %v2271, %v2263
        %v2296 = vpack.c.bf16 %v2272, %v2264
        %v2297 = vpack.c.bf16 %v2273, %v2265
        %v2298 = vpack.c.bf16 %v2274, %v2266
        %v2299 = vpack.c.bf16 %v2275, %v2267
        %v2300 = vpack.c.bf16 %v2276, %v2268
        %v2301 = vpack.c.bf16 %v2277, %v2269
        %v2302 = vpack.c.bf16 %v2286, %v2278
        %v2303 = vpack.c.bf16 %v2287, %v2279
        %v2304 = vpack.c.bf16 %v2288, %v2280
        %v2305 = vpack.c.bf16 %v2289, %v2281
        %v2306 = vpack.c.bf16 %v2290, %v2282
        %v2307 = vpack.c.bf16 %v2291, %v2283
        %v2308 = vpack.c.bf16 %v2292, %v2284
        %v2309 = vpack.c.bf16 %v2293, %v2285
        %s2310 = scalar_lea.vmem %s3, 64
        %v2311 = vld [vmem:[%s2310] sm:$0xf]
        %v2312 = vld [vmem:[%s2310 + $0x4] sm:$0xf]
        %v2313 = vld [vmem:[%s2310 + $0x8] sm:$0xf]
        %v2314 = vld [vmem:[%s2310 + $0xc] sm:$0xf]
        %v2319 = vunpack.c.l.b16 %v2311
        %v2320 = vunpack.c.l.b16 %v2312
        %v2321 = vunpack.c.l.b16 %v2313
        %v2322 = vunpack.c.l.b16 %v2314
        %v2323 = vpack.c.b16 %v2320, %v2319
        %v2324 = vpack.c.b16 %v2322, %v2321
        %v2326 = vsel %vm1125, %v2323, 0
        %v2329 = vsel %vm1125, %v2324, 0
        %2331 = vmatprep.subr.bf16.mxu0 %v2295
        %2332 = vmatpush1.bf16.msra.mxu0 %v2294
        %2333 = vmatprep.subr.bf16.mxu0 %v2303
        %2334 = vmatpush1.bf16.msra.mxu0 %v2302
        %2335 = vmatprep.subr.bf16.mxu0 0
        %2336 = vmatpush1.bf16.msra.mxu0 0
        %2337 = vmatprep.subr.bf16.mxu0 0
        %2338 = vmatpush1.bf16.msra.mxu0 0
        %2339 = vmatprep.subr.bf16.mxu0 0
        %2340 = vmatpush1.bf16.msra.mxu0 0
        %2341 = vmatprep.subr.bf16.mxu0 0
        %2342 = vmatpush1.bf16.msra.mxu0 0
        %2343 = vmatprep.subr.bf16.mxu0 0
        %2344 = vmatpush1.bf16.msra.mxu0 0
        %2345 = vmatprep.subr.bf16.mxu0 0
        %2346 = vmatpush1.bf16.msra.mxu0 0
        %2347 = vmatprep.subr.bf16.mxu0 0
        %2348 = vmatpush1.bf16.msra.mxu0 0
        %2349 = vmatprep.subr.bf16.mxu0 0
        %2350 = vmatpush1.bf16.msra.mxu0 0
        %2351 = vmatprep.subr.bf16.mxu0 0
        %2352 = vmatpush1.bf16.msra.mxu0 0
        %2353 = vmatprep.subr.bf16.mxu0 0
        %2354 = vmatpush1.bf16.msra.mxu0 0
        %2355 = vmatprep.subr.bf16.mxu0 0
        %2356 = vmatpush1.bf16.msra.mxu0 0
        %2357 = vmatprep.subr.bf16.mxu0 0
        %2358 = vmatpush1.bf16.msra.mxu0 0
        %2359 = vmatprep.subr.bf16.mxu0 0
        %2360 = vmatpush1.bf16.msra.mxu0 0
        %2361 = vmatprep.subr.bf16.mxu0 0
        %2362 = vmatpush1.bf16.msra.mxu0 0
        %2363 = vmatprep.mubr.bf16.mxu0 0
        %2364 = vmatmul.mubr.bf16.gmra.mrb[0].mxu0 %v2326
        %v2365 = vpop.f32.mrb[0].mxu0
        %v2366 = vadd.f32 %v1006, %v2365
        %v2367 = vpop.f32.mrb[0].mxu0
        %v2368 = vadd.f32 %v1007, %v2367
        %v2369 = vpop.f32.mrb[0].mxu0
        %v2370 = vadd.f32 %v1014, %v2369
        %v2371 = vpop.f32.mrb[0].mxu0
        %v2372 = vadd.f32 %v1015, %v2371
        %2373 = vmatprep.mubr.bf16.mxu0 0
        %2374 = vmatmul.mubr.bf16.gmra.mrb[0].mxu0 %v2329
        %v2375 = vpop.f32.mrb[0].mxu0
        %v2376 = vadd.f32 %v1022, %v2375
        %v2377 = vpop.f32.mrb[0].mxu0
        %v2378 = vadd.f32 %v1023, %v2377
        %v2379 = vpop.f32.mrb[0].mxu0
        %v2380 = vadd.f32 %v1030, %v2379
        %v2381 = vpop.f32.mrb[0].mxu0
        %v2382 = vadd.f32 %v1031, %v2381
        %2383 = vdwg.mxu0
        %2384 = vmatprep.subr.bf16.mxu0 %v2297
        %2385 = vmatpush1.bf16.msra.mxu0 %v2296
        %2386 = vmatprep.subr.bf16.mxu0 %v2305
        %2387 = vmatpush1.bf16.msra.mxu0 %v2304
        %2388 = vmatprep.subr.bf16.mxu0 0
        %2389 = vmatpush1.bf16.msra.mxu0 0
        %2390 = vmatprep.subr.bf16.mxu0 0
        %2391 = vmatpush1.bf16.msra.mxu0 0
        %2392 = vmatprep.subr.bf16.mxu0 0
        %2393 = vmatpush1.bf16.msra.mxu0 0
        %2394 = vmatprep.subr.bf16.mxu0 0
        %2395 = vmatpush1.bf16.msra.mxu0 0
        %2396 = vmatprep.subr.bf16.mxu0 0
        %2397 = vmatpush1.bf16.msra.mxu0 0
        %2398 = vmatprep.subr.bf16.mxu0 0
        %2399 = vmatpush1.bf16.msra.mxu0 0
        %2400 = vmatprep.subr.bf16.mxu0 0
        %2401 = vmatpush1.bf16.msra.mxu0 0
        %2402 = vmatprep.subr.bf16.mxu0 0
        %2403 = vmatpush1.bf16.msra.mxu0 0
        %2404 = vmatprep.subr.bf16.mxu0 0
        %2405 = vmatpush1.bf16.msra.mxu0 0
        %2406 = vmatprep.subr.bf16.mxu0 0
        %2407 = vmatpush1.bf16.msra.mxu0 0
        %2408 = vmatprep.subr.bf16.mxu0 0
        %2409 = vmatpush1.bf16.msra.mxu0 0
        %2410 = vmatprep.subr.bf16.mxu0 0
        %2411 = vmatpush1.bf16.msra.mxu0 0
        %2412 = vmatprep.subr.bf16.mxu0 0
        %2413 = vmatpush1.bf16.msra.mxu0 0
        %2414 = vmatprep.subr.bf16.mxu0 0
        %2415 = vmatpush1.bf16.msra.mxu0 0
        %2416 = vmatprep.mubr.bf16.mxu0 0
        %2417 = vmatmul.mubr.bf16.gmra.mrb[0].mxu0 %v2326
        %v2418 = vpop.f32.mrb[0].mxu0
        %v2419 = vadd.f32 %v1008, %v2418
        %v2420 = vpop.f32.mrb[0].mxu0
        %v2421 = vadd.f32 %v1009, %v2420
        %v2422 = vpop.f32.mrb[0].mxu0
        %v2423 = vadd.f32 %v1016, %v2422
        %v2424 = vpop.f32.mrb[0].mxu0
        %v2425 = vadd.f32 %v1017, %v2424
        %2426 = vmatprep.mubr.bf16.mxu0 0
        %2427 = vmatmul.mubr.bf16.gmra.mrb[0].mxu0 %v2329
        %v2428 = vpop.f32.mrb[0].mxu0
        %v2429 = vadd.f32 %v1024, %v2428
        %v2430 = vpop.f32.mrb[0].mxu0
        %v2431 = vadd.f32 %v1025, %v2430
        %v2432 = vpop.f32.mrb[0].mxu0
        %v2433 = vadd.f32 %v1032, %v2432
        %v2434 = vpop.f32.mrb[0].mxu0
        %v2435 = vadd.f32 %v1033, %v2434
        %2436 = vdwg.mxu0
        %2437 = vmatprep.subr.bf16.mxu0 %v2299
        %2438 = vmatpush1.bf16.msra.mxu0 %v2298
        %2439 = vmatprep.subr.bf16.mxu0 %v2307
        %2440 = vmatpush1.bf16.msra.mxu0 %v2306
        %2441 = vmatprep.subr.bf16.mxu0 0
        %2442 = vmatpush1.bf16.msra.mxu0 0
        %2443 = vmatprep.subr.bf16.mxu0 0
        %2444 = vmatpush1.bf16.msra.mxu0 0
        %2445 = vmatprep.subr.bf16.mxu0 0
        %2446 = vmatpush1.bf16.msra.mxu0 0
        %2447 = vmatprep.subr.bf16.mxu0 0
        %2448 = vmatpush1.bf16.msra.mxu0 0
        %2449 = vmatprep.subr.bf16.mxu0 0
        %2450 = vmatpush1.bf16.msra.mxu0 0
        %2451 = vmatprep.subr.bf16.mxu0 0
        %2452 = vmatpush1.bf16.msra.mxu0 0
        %2453 = vmatprep.subr.bf16.mxu0 0
        %2454 = vmatpush1.bf16.msra.mxu0 0
        %2455 = vmatprep.subr.bf16.mxu0 0
        %2456 = vmatpush1.bf16.msra.mxu0 0
        %2457 = vmatprep.subr.bf16.mxu0 0
        %2458 = vmatpush1.bf16.msra.mxu0 0
        %2459 = vmatprep.subr.bf16.mxu0 0
        %2460 = vmatpush1.bf16.msra.mxu0 0
        %2461 = vmatprep.subr.bf16.mxu0 0
        %2462 = vmatpush1.bf16.msra.mxu0 0
        %2463 = vmatprep.subr.bf16.mxu0 0
        %2464 = vmatpush1.bf16.msra.mxu0 0
        %2465 = vmatprep.subr.bf16.mxu0 0
        %2466 = vmatpush1.bf16.msra.mxu0 0
        %2467 = vmatprep.subr.bf16.mxu0 0
        %2468 = vmatpush1.bf16.msra.mxu0 0
        %2469 = vmatprep.mubr.bf16.mxu0 0
        %2470 = vmatmul.mubr.bf16.gmra.mrb[0].mxu0 %v2326
        %v2471 = vpop.f32.mrb[0].mxu0
        %v2472 = vadd.f32 %v1010, %v2471
        %v2473 = vpop.f32.mrb[0].mxu0
        %v2474 = vadd.f32 %v1011, %v2473
        %v2475 = vpop.f32.mrb[0].mxu0
        %v2476 = vadd.f32 %v1018, %v2475
        %v2477 = vpop.f32.mrb[0].mxu0
        %v2478 = vadd.f32 %v1019, %v2477
        %2479 = vmatprep.mubr.bf16.mxu0 0
        %2480 = vmatmul.mubr.bf16.gmra.mrb[0].mxu0 %v2329
        %v2481 = vpop.f32.mrb[0].mxu0
        %v2482 = vadd.f32 %v1026, %v2481
        %v2483 = vpop.f32.mrb[0].mxu0
        %v2484 = vadd.f32 %v1027, %v2483
        %v2485 = vpop.f32.mrb[0].mxu0
        %v2486 = vadd.f32 %v1034, %v2485
        %v2487 = vpop.f32.mrb[0].mxu0
        %v2488 = vadd.f32 %v1035, %v2487
        %2489 = vdwg.mxu0
        %2490 = vmatprep.subr.bf16.mxu0 %v2301
        %2491 = vmatpush1.bf16.msra.mxu0 %v2300
        %2492 = vmatprep.subr.bf16.mxu0 %v2309
        %2493 = vmatpush1.bf16.msra.mxu0 %v2308
        %2494 = vmatprep.subr.bf16.mxu0 0
        %2495 = vmatpush1.bf16.msra.mxu0 0
        %2496 = vmatprep.subr.bf16.mxu0 0
        %2497 = vmatpush1.bf16.msra.mxu0 0
        %2498 = vmatprep.subr.bf16.mxu0 0
        %2499 = vmatpush1.bf16.msra.mxu0 0
        %2500 = vmatprep.subr.bf16.mxu0 0
        %2501 = vmatpush1.bf16.msra.mxu0 0
        %2502 = vmatprep.subr.bf16.mxu0 0
        %2503 = vmatpush1.bf16.msra.mxu0 0
        %2504 = vmatprep.subr.bf16.mxu0 0
        %2505 = vmatpush1.bf16.msra.mxu0 0
        %2506 = vmatprep.subr.bf16.mxu0 0
        %2507 = vmatpush1.bf16.msra.mxu0 0
        %2508 = vmatprep.subr.bf16.mxu0 0
        %2509 = vmatpush1.bf16.msra.mxu0 0
        %2510 = vmatprep.subr.bf16.mxu0 0
        %2511 = vmatpush1.bf16.msra.mxu0 0
        %2512 = vmatprep.subr.bf16.mxu0 0
        %2513 = vmatpush1.bf16.msra.mxu0 0
        %2514 = vmatprep.subr.bf16.mxu0 0
        %2515 = vmatpush1.bf16.msra.mxu0 0
        %2516 = vmatprep.subr.bf16.mxu0 0
        %2517 = vmatpush1.bf16.msra.mxu0 0
        %2518 = vmatprep.subr.bf16.mxu0 0
        %2519 = vmatpush1.bf16.msra.mxu0 0
        %2520 = vmatprep.subr.bf16.mxu0 0
        %2521 = vmatpush1.bf16.msra.mxu0 0
        %2522 = vmatprep.mubr.bf16.mxu0 0
        %2523 = vmatmul.mubr.bf16.gmra.mrb[0].mxu0 %v2326
        %v2524 = vpop.f32.mrb[0].mxu0
        %v2525 = vadd.f32 %v1012, %v2524
        %v2526 = vpop.f32.mrb[0].mxu0
        %v2527 = vadd.f32 %v1013, %v2526
        %v2528 = vpop.f32.mrb[0].mxu0
        %v2529 = vadd.f32 %v1020, %v2528
        %v2530 = vpop.f32.mrb[0].mxu0
        %v2531 = vadd.f32 %v1021, %v2530
        %2532 = vmatprep.mubr.bf16.mxu0 0
        %2533 = vmatmul.mubr.bf16.gmra.mrb[0].mxu0 %v2329
        %v2534 = vpop.f32.mrb[0].mxu0
        %v2535 = vadd.f32 %v1028, %v2534
        %v2536 = vpop.f32.mrb[0].mxu0
        %v2537 = vadd.f32 %v1029, %v2536
        %v2538 = vpop.f32.mrb[0].mxu0
        %v2539 = vadd.f32 %v1036, %v2538
        %v2540 = vpop.f32.mrb[0].mxu0
        %v2541 = vadd.f32 %v1037, %v2540
        %2542 = vdwg.mxu0
        %s2543 = scalar_lea.vmem %s2, 160
        %v2544 = vld [vmem:[%s2543] sm:$0xff]
        %v2545 = vld [vmem:[%s2543 + $0x8] sm:$0xff]
        %v2546 = vld [vmem:[%s2543 + $0x10] sm:$0xff]
        %v2547 = vld [vmem:[%s2543 + $0x18] sm:$0xff]
        %2549 = vset.pattern.permute.xlu0 0
        %2550 = vperm.xlu0 %2549, %v2544
        %v2551 = vpop.permute.xlu0 %2550
        %2554 = vset.pattern.permute.xlu0 0
        %2555 = vperm.xlu0 %2554, %v2545
        %v2556 = vpop.permute.xlu0 %2555
        %2559 = vset.pattern.permute.xlu0 0
        %2560 = vperm.xlu0 %2559, %v2546
        %v2561 = vpop.permute.xlu0 %2560
        %2564 = vset.pattern.permute.xlu0 0
        %2565 = vperm.xlu0 %2564, %v2547
        %v2566 = vpop.permute.xlu0 %2565
        %v2568 = vadd.f32 %v2366, %v2551
        %v2569 = vadd.f32 %v2368, %v2551
        %v2570 = vadd.f32 %v2419, %v2551
        %v2571 = vadd.f32 %v2421, %v2551
        %v2572 = vadd.f32 %v2472, %v2551
        %v2573 = vadd.f32 %v2474, %v2551
        %v2574 = vadd.f32 %v2525, %v2551
        %v2575 = vadd.f32 %v2527, %v2551
        %v2576 = vadd.f32 %v2370, %v2556
        %v2577 = vadd.f32 %v2372, %v2556
        %v2578 = vadd.f32 %v2423, %v2556
        %v2579 = vadd.f32 %v2425, %v2556
        %v2580 = vadd.f32 %v2476, %v2556
        %v2581 = vadd.f32 %v2478, %v2556
        %v2582 = vadd.f32 %v2529, %v2556
        %v2583 = vadd.f32 %v2531, %v2556
        %v2584 = vadd.f32 %v2376, %v2561
        %v2585 = vadd.f32 %v2378, %v2561
        %v2586 = vadd.f32 %v2429, %v2561
        %v2587 = vadd.f32 %v2431, %v2561
        %v2588 = vadd.f32 %v2482, %v2561
        %v2589 = vadd.f32 %v2484, %v2561
        %v2590 = vadd.f32 %v2535, %v2561
        %v2591 = vadd.f32 %v2537, %v2561
        %v2592 = vadd.f32 %v2380, %v2566
        %v2593 = vadd.f32 %v2382, %v2566
        %v2594 = vadd.f32 %v2433, %v2566
        %v2595 = vadd.f32 %v2435, %v2566
        %v2596 = vadd.f32 %v2486, %v2566
        %v2597 = vadd.f32 %v2488, %v2566
        %v2598 = vadd.f32 %v2539, %v2566
        %v2599 = vadd.f32 %v2541, %v2566
        %v2600 = vmax.f32 %v2568, 0.0
        %v2601 = vmax.f32 %v2569, 0.0
        %v2602 = vmax.f32 %v2570, 0.0
        %v2603 = vmax.f32 %v2571, 0.0
        %v2604 = vmax.f32 %v2572, 0.0
        %v2605 = vmax.f32 %v2573, 0.0
        %v2606 = vmax.f32 %v2574, 0.0
        %v2607 = vmax.f32 %v2575, 0.0
        %v2608 = vmax.f32 %v2576, 0.0
        %v2609 = vmax.f32 %v2577, 0.0
        %v2610 = vmax.f32 %v2578, 0.0
        %v2611 = vmax.f32 %v2579, 0.0
        %v2612 = vmax.f32 %v2580, 0.0
        %v2613 = vmax.f32 %v2581, 0.0
        %v2614 = vmax.f32 %v2582, 0.0
        %v2615 = vmax.f32 %v2583, 0.0
        %v2616 = vmax.f32 %v2584, 0.0
        %v2617 = vmax.f32 %v2585, 0.0
        %v2618 = vmax.f32 %v2586, 0.0
        %v2619 = vmax.f32 %v2587, 0.0
        %v2620 = vmax.f32 %v2588, 0.0
        %v2621 = vmax.f32 %v2589, 0.0
        %v2622 = vmax.f32 %v2590, 0.0
        %v2623 = vmax.f32 %v2591, 0.0
        %v2624 = vmax.f32 %v2592, 0.0
        %v2625 = vmax.f32 %v2593, 0.0
        %v2626 = vmax.f32 %v2594, 0.0
        %v2627 = vmax.f32 %v2595, 0.0
        %v2628 = vmax.f32 %v2596, 0.0
        %v2629 = vmax.f32 %v2597, 0.0
        %v2630 = vmax.f32 %v2598, 0.0
        %v2631 = vmax.f32 %v2599, 0.0
        %v2632 = vpack.c.bf16 %v2608, %v2600
        %v2633 = vpack.c.bf16 %v2609, %v2601
        %v2634 = vpack.c.bf16 %v2610, %v2602
        %v2635 = vpack.c.bf16 %v2611, %v2603
        %v2636 = vpack.c.bf16 %v2612, %v2604
        %v2637 = vpack.c.bf16 %v2613, %v2605
        %v2638 = vpack.c.bf16 %v2614, %v2606
        %v2639 = vpack.c.bf16 %v2615, %v2607
        %v2640 = vpack.c.bf16 %v2624, %v2616
        %v2641 = vpack.c.bf16 %v2625, %v2617
        %v2642 = vpack.c.bf16 %v2626, %v2618
        %v2643 = vpack.c.bf16 %v2627, %v2619
        %v2644 = vpack.c.bf16 %v2628, %v2620
        %v2645 = vpack.c.bf16 %v2629, %v2621
        %v2646 = vpack.c.bf16 %v2630, %v2622
        %v2647 = vpack.c.bf16 %v2631, %v2623
        %s2648 = scalar_lea.vmem %s3, 80
        %v2649 = vld [vmem:[%s2648] sm:$0xf]
        %v2650 = vld [vmem:[%s2648 + $0x4] sm:$0xf]
        %v2651 = vld [vmem:[%s2648 + $0x8] sm:$0xf]
        %v2652 = vld [vmem:[%s2648 + $0xc] sm:$0xf]
        %s2653 = scalar_lea.vmem %s2, 192
        %v2654 = vld [vmem:[%s2653] sm:$0xff]
        %v2655 = vld [vmem:[%s2653 + $0x8] sm:$0xff]
        %v2656 = vld [vmem:[%s2653 + $0x10] sm:$0xff]
        %v2657 = vld [vmem:[%s2653 + $0x18] sm:$0xff]
        %2659 = vset.pattern.permute.xlu0 0
        %2660 = vperm.xlu0 %2659, %v2654
        %v2661 = vpop.permute.xlu0 %2660
        %2664 = vset.pattern.permute.xlu0 0
        %2665 = vperm.xlu0 %2664, %v2655
        %v2666 = vpop.permute.xlu0 %2665
        %2669 = vset.pattern.permute.xlu0 0
        %2670 = vperm.xlu0 %2669, %v2656
        %v2671 = vpop.permute.xlu0 %2670
        %2674 = vset.pattern.permute.xlu0 0
        %2675 = vperm.xlu0 %2674, %v2657
        %v2676 = vpop.permute.xlu0 %2675
        %v2682 = vunpack.c.l.b16 %v2649
        %v2683 = vunpack.c.l.b16 %v2650
        %v2684 = vunpack.c.l.b16 %v2651
        %v2685 = vunpack.c.l.b16 %v2652
        %v2686 = vpack.c.b16 %v2683, %v2682
        %v2687 = vpack.c.b16 %v2685, %v2684
        %v2689 = vsel %vm1125, %v2686, 0
        %v2692 = vsel %vm1125, %v2687, 0
        %2694 = vmatprep.subr.bf16.mxu0 %v2633
        %2695 = vmatpush1.bf16.msra.mxu0 %v2632
        %2696 = vmatprep.subr.bf16.mxu0 %v2641
        %2697 = vmatpush1.bf16.msra.mxu0 %v2640
        %2698 = vmatprep.subr.bf16.mxu0 0
        %2699 = vmatpush1.bf16.msra.mxu0 0
        %2700 = vmatprep.subr.bf16.mxu0 0
        %2701 = vmatpush1.bf16.msra.mxu0 0
        %2702 = vmatprep.subr.bf16.mxu0 0
        %2703 = vmatpush1.bf16.msra.mxu0 0
        %2704 = vmatprep.subr.bf16.mxu0 0
        %2705 = vmatpush1.bf16.msra.mxu0 0
        %2706 = vmatprep.subr.bf16.mxu0 0
        %2707 = vmatpush1.bf16.msra.mxu0 0
        %2708 = vmatprep.subr.bf16.mxu0 0
        %2709 = vmatpush1.bf16.msra.mxu0 0
        %2710 = vmatprep.subr.bf16.mxu0 0
        %2711 = vmatpush1.bf16.msra.mxu0 0
        %2712 = vmatprep.subr.bf16.mxu0 0
        %2713 = vmatpush1.bf16.msra.mxu0 0
        %2714 = vmatprep.subr.bf16.mxu0 0
        %2715 = vmatpush1.bf16.msra.mxu0 0
        %2716 = vmatprep.subr.bf16.mxu0 0
        %2717 = vmatpush1.bf16.msra.mxu0 0
        %2718 = vmatprep.subr.bf16.mxu0 0
        %2719 = vmatpush1.bf16.msra.mxu0 0
        %2720 = vmatprep.subr.bf16.mxu0 0
        %2721 = vmatpush1.bf16.msra.mxu0 0
        %2722 = vmatprep.subr.bf16.mxu0 0
        %2723 = vmatpush1.bf16.msra.mxu0 0
        %2724 = vmatprep.subr.bf16.mxu0 0
        %2725 = vmatpush1.bf16.msra.mxu0 0
        %2726 = vmatprep.mubr.bf16.mxu0 0
        %2727 = vmatmul.mubr.bf16.gmra.mrb[0].mxu0 %v2689
        %v2728 = vpop.f32.mrb[0].mxu0
        %v2729 = vadd.f32 %v2661, %v2728
        %v2730 = vpop.f32.mrb[0].mxu0
        %v2731 = vadd.f32 %v2661, %v2730
        %v2732 = vpop.f32.mrb[0].mxu0
        %v2733 = vadd.f32 %v2666, %v2732
        %v2734 = vpop.f32.mrb[0].mxu0
        %v2735 = vadd.f32 %v2666, %v2734
        %2736 = vmatprep.mubr.bf16.mxu0 0
        %2737 = vmatmul.mubr.bf16.gmra.mrb[0].mxu0 %v2692
        %v2738 = vpop.f32.mrb[0].mxu0
        %v2739 = vadd.f32 %v2671, %v2738
        %v2740 = vpop.f32.mrb[0].mxu0
        %v2741 = vadd.f32 %v2671, %v2740
        %v2742 = vpop.f32.mrb[0].mxu0
        %v2743 = vadd.f32 %v2676, %v2742
        %v2744 = vpop.f32.mrb[0].mxu0
        %v2745 = vadd.f32 %v2676, %v2744
        %2746 = vdwg.mxu0
        %2747 = vmatprep.subr.bf16.mxu0 %v2635
        %2748 = vmatpush1.bf16.msra.mxu0 %v2634
        %2749 = vmatprep.subr.bf16.mxu0 %v2643
        %2750 = vmatpush1.bf16.msra.mxu0 %v2642
        %2751 = vmatprep.subr.bf16.mxu0 0
        %2752 = vmatpush1.bf16.msra.mxu0 0
        %2753 = vmatprep.subr.bf16.mxu0 0
        %2754 = vmatpush1.bf16.msra.mxu0 0
        %2755 = vmatprep.subr.bf16.mxu0 0
        %2756 = vmatpush1.bf16.msra.mxu0 0
        %2757 = vmatprep.subr.bf16.mxu0 0
        %2758 = vmatpush1.bf16.msra.mxu0 0
        %2759 = vmatprep.subr.bf16.mxu0 0
        %2760 = vmatpush1.bf16.msra.mxu0 0
        %2761 = vmatprep.subr.bf16.mxu0 0
        %2762 = vmatpush1.bf16.msra.mxu0 0
        %2763 = vmatprep.subr.bf16.mxu0 0
        %2764 = vmatpush1.bf16.msra.mxu0 0
        %2765 = vmatprep.subr.bf16.mxu0 0
        %2766 = vmatpush1.bf16.msra.mxu0 0
        %2767 = vmatprep.subr.bf16.mxu0 0
        %2768 = vmatpush1.bf16.msra.mxu0 0
        %2769 = vmatprep.subr.bf16.mxu0 0
        %2770 = vmatpush1.bf16.msra.mxu0 0
        %2771 = vmatprep.subr.bf16.mxu0 0
        %2772 = vmatpush1.bf16.msra.mxu0 0
        %2773 = vmatprep.subr.bf16.mxu0 0
        %2774 = vmatpush1.bf16.msra.mxu0 0
        %2775 = vmatprep.subr.bf16.mxu0 0
        %2776 = vmatpush1.bf16.msra.mxu0 0
        %2777 = vmatprep.subr.bf16.mxu0 0
        %2778 = vmatpush1.bf16.msra.mxu0 0
        %2779 = vmatprep.mubr.bf16.mxu0 0
        %2780 = vmatmul.mubr.bf16.gmra.mrb[0].mxu0 %v2689
        %v2781 = vpop.f32.mrb[0].mxu0
        %v2782 = vadd.f32 %v2661, %v2781
        %v2783 = vpop.f32.mrb[0].mxu0
        %v2784 = vadd.f32 %v2661, %v2783
        %v2785 = vpop.f32.mrb[0].mxu0
        %v2786 = vadd.f32 %v2666, %v2785
        %v2787 = vpop.f32.mrb[0].mxu0
        %v2788 = vadd.f32 %v2666, %v2787
        %2789 = vmatprep.mubr.bf16.mxu0 0
        %2790 = vmatmul.mubr.bf16.gmra.mrb[0].mxu0 %v2692
        %v2791 = vpop.f32.mrb[0].mxu0
        %v2792 = vadd.f32 %v2671, %v2791
        %v2793 = vpop.f32.mrb[0].mxu0
        %v2794 = vadd.f32 %v2671, %v2793
        %v2795 = vpop.f32.mrb[0].mxu0
        %v2796 = vadd.f32 %v2676, %v2795
        %v2797 = vpop.f32.mrb[0].mxu0
        %v2798 = vadd.f32 %v2676, %v2797
        %2799 = vdwg.mxu0
        %2800 = vmatprep.subr.bf16.mxu0 %v2637
        %2801 = vmatpush1.bf16.msra.mxu0 %v2636
        %2802 = vmatprep.subr.bf16.mxu0 %v2645
        %2803 = vmatpush1.bf16.msra.mxu0 %v2644
        %2804 = vmatprep.subr.bf16.mxu0 0
        %2805 = vmatpush1.bf16.msra.mxu0 0
        %2806 = vmatprep.subr.bf16.mxu0 0
        %2807 = vmatpush1.bf16.msra.mxu0 0
        %2808 = vmatprep.subr.bf16.mxu0 0
        %2809 = vmatpush1.bf16.msra.mxu0 0
        %2810 = vmatprep.subr.bf16.mxu0 0
        %2811 = vmatpush1.bf16.msra.mxu0 0
        %2812 = vmatprep.subr.bf16.mxu0 0
        %2813 = vmatpush1.bf16.msra.mxu0 0
        %2814 = vmatprep.subr.bf16.mxu0 0
        %2815 = vmatpush1.bf16.msra.mxu0 0
        %2816 = vmatprep.subr.bf16.mxu0 0
        %2817 = vmatpush1.bf16.msra.mxu0 0
        %2818 = vmatprep.subr.bf16.mxu0 0
        %2819 = vmatpush1.bf16.msra.mxu0 0
        %2820 = vmatprep.subr.bf16.mxu0 0
        %2821 = vmatpush1.bf16.msra.mxu0 0
        %2822 = vmatprep.subr.bf16.mxu0 0
        %2823 = vmatpush1.bf16.msra.mxu0 0
        %2824 = vmatprep.subr.bf16.mxu0 0
        %2825 = vmatpush1.bf16.msra.mxu0 0
        %2826 = vmatprep.subr.bf16.mxu0 0
        %2827 = vmatpush1.bf16.msra.mxu0 0
        %2828 = vmatprep.subr.bf16.mxu0 0
        %2829 = vmatpush1.bf16.msra.mxu0 0
        %2830 = vmatprep.subr.bf16.mxu0 0
        %2831 = vmatpush1.bf16.msra.mxu0 0
        %2832 = vmatprep.mubr.bf16.mxu0 0
        %2833 = vmatmul.mubr.bf16.gmra.mrb[0].mxu0 %v2689
        %v2834 = vpop.f32.mrb[0].mxu0
        %v2835 = vadd.f32 %v2661, %v2834
        %v2836 = vpop.f32.mrb[0].mxu0
        %v2837 = vadd.f32 %v2661, %v2836
        %v2838 = vpop.f32.mrb[0].mxu0
        %v2839 = vadd.f32 %v2666, %v2838
        %v2840 = vpop.f32.mrb[0].mxu0
        %v2841 = vadd.f32 %v2666, %v2840
        %2842 = vmatprep.mubr.bf16.mxu0 0
        %2843 = vmatmul.mubr.bf16.gmra.mrb[0].mxu0 %v2692
        %v2844 = vpop.f32.mrb[0].mxu0
        %v2845 = vadd.f32 %v2671, %v2844
        %v2846 = vpop.f32.mrb[0].mxu0
        %v2847 = vadd.f32 %v2671, %v2846
        %v2848 = vpop.f32.mrb[0].mxu0
        %v2849 = vadd.f32 %v2676, %v2848
        %v2850 = vpop.f32.mrb[0].mxu0
        %v2851 = vadd.f32 %v2676, %v2850
        %2852 = vdwg.mxu0
        %2853 = vmatprep.subr.bf16.mxu0 %v2639
        %2854 = vmatpush1.bf16.msra.mxu0 %v2638
        %2855 = vmatprep.subr.bf16.mxu0 %v2647
        %2856 = vmatpush1.bf16.msra.mxu0 %v2646
        %2857 = vmatprep.subr.bf16.mxu0 0
        %2858 = vmatpush1.bf16.msra.mxu0 0
        %2859 = vmatprep.subr.bf16.mxu0 0
        %2860 = vmatpush1.bf16.msra.mxu0 0
        %2861 = vmatprep.subr.bf16.mxu0 0
        %2862 = vmatpush1.bf16.msra.mxu0 0
        %2863 = vmatprep.subr.bf16.mxu0 0
        %2864 = vmatpush1.bf16.msra.mxu0 0
        %2865 = vmatprep.subr.bf16.mxu0 0
        %2866 = vmatpush1.bf16.msra.mxu0 0
        %2867 = vmatprep.subr.bf16.mxu0 0
        %2868 = vmatpush1.bf16.msra.mxu0 0
        %2869 = vmatprep.subr.bf16.mxu0 0
        %2870 = vmatpush1.bf16.msra.mxu0 0
        %2871 = vmatprep.subr.bf16.mxu0 0
        %2872 = vmatpush1.bf16.msra.mxu0 0
        %2873 = vmatprep.subr.bf16.mxu0 0
        %2874 = vmatpush1.bf16.msra.mxu0 0
        %2875 = vmatprep.subr.bf16.mxu0 0
        %2876 = vmatpush1.bf16.msra.mxu0 0
        %2877 = vmatprep.subr.bf16.mxu0 0
        %2878 = vmatpush1.bf16.msra.mxu0 0
        %2879 = vmatprep.subr.bf16.mxu0 0
        %2880 = vmatpush1.bf16.msra.mxu0 0
        %2881 = vmatprep.subr.bf16.mxu0 0
        %2882 = vmatpush1.bf16.msra.mxu0 0
        %2883 = vmatprep.subr.bf16.mxu0 0
        %2884 = vmatpush1.bf16.msra.mxu0 0
        %2885 = vmatprep.mubr.bf16.mxu0 0
        %2886 = vmatmul.mubr.bf16.gmra.mrb[0].mxu0 %v2689
        %v2887 = vpop.f32.mrb[0].mxu0
        %v2888 = vadd.f32 %v2661, %v2887
        %v2889 = vpop.f32.mrb[0].mxu0
        %v2890 = vadd.f32 %v2661, %v2889
        %v2891 = vpop.f32.mrb[0].mxu0
        %v2892 = vadd.f32 %v2666, %v2891
        %v2893 = vpop.f32.mrb[0].mxu0
        %v2894 = vadd.f32 %v2666, %v2893
        %2895 = vmatprep.mubr.bf16.mxu0 0
        %2896 = vmatmul.mubr.bf16.gmra.mrb[0].mxu0 %v2692
        %v2897 = vpop.f32.mrb[0].mxu0
        %v2898 = vadd.f32 %v2671, %v2897
        %v2899 = vpop.f32.mrb[0].mxu0
        %v2900 = vadd.f32 %v2671, %v2899
        %v2901 = vpop.f32.mrb[0].mxu0
        %v2902 = vadd.f32 %v2676, %v2901
        %v2903 = vpop.f32.mrb[0].mxu0
        %v2904 = vadd.f32 %v2676, %v2903
        %2905 = vdwg.mxu0
        %v2906 = vmax.f32 %v2729, 0.0
        %v2907 = vmax.f32 %v2731, 0.0
        %v2908 = vmax.f32 %v2782, 0.0
        %v2909 = vmax.f32 %v2784, 0.0
        %v2910 = vmax.f32 %v2835, 0.0
        %v2911 = vmax.f32 %v2837, 0.0
        %v2912 = vmax.f32 %v2888, 0.0
        %v2913 = vmax.f32 %v2890, 0.0
        %v2914 = vmax.f32 %v2733, 0.0
        %v2915 = vmax.f32 %v2735, 0.0
        %v2916 = vmax.f32 %v2786, 0.0
        %v2917 = vmax.f32 %v2788, 0.0
        %v2918 = vmax.f32 %v2839, 0.0
        %v2919 = vmax.f32 %v2841, 0.0
        %v2920 = vmax.f32 %v2892, 0.0
        %v2921 = vmax.f32 %v2894, 0.0
        %v2922 = vmax.f32 %v2739, 0.0
        %v2923 = vmax.f32 %v2741, 0.0
        %v2924 = vmax.f32 %v2792, 0.0
        %v2925 = vmax.f32 %v2794, 0.0
        %v2926 = vmax.f32 %v2845, 0.0
        %v2927 = vmax.f32 %v2847, 0.0
        %v2928 = vmax.f32 %v2898, 0.0
        %v2929 = vmax.f32 %v2900, 0.0
        %v2930 = vmax.f32 %v2743, 0.0
        %v2931 = vmax.f32 %v2745, 0.0
        %v2932 = vmax.f32 %v2796, 0.0
        %v2933 = vmax.f32 %v2798, 0.0
        %v2934 = vmax.f32 %v2849, 0.0
        %v2935 = vmax.f32 %v2851, 0.0
        %v2936 = vmax.f32 %v2902, 0.0
        %v2937 = vmax.f32 %v2904, 0.0
        %v2938 = vpack.c.bf16 %v2914, %v2906
        %v2939 = vpack.c.bf16 %v2915, %v2907
        %v2940 = vpack.c.bf16 %v2916, %v2908
        %v2941 = vpack.c.bf16 %v2917, %v2909
        %v2942 = vpack.c.bf16 %v2918, %v2910
        %v2943 = vpack.c.bf16 %v2919, %v2911
        %v2944 = vpack.c.bf16 %v2920, %v2912
        %v2945 = vpack.c.bf16 %v2921, %v2913
        %v2946 = vpack.c.bf16 %v2930, %v2922
        %v2947 = vpack.c.bf16 %v2931, %v2923
        %v2948 = vpack.c.bf16 %v2932, %v2924
        %v2949 = vpack.c.bf16 %v2933, %v2925
        %v2950 = vpack.c.bf16 %v2934, %v2926
        %v2951 = vpack.c.bf16 %v2935, %v2927
        %v2952 = vpack.c.bf16 %v2936, %v2928
        %v2953 = vpack.c.bf16 %v2937, %v2929
        %s2954 = scalar_lea.vmem %s3, 96
        %v2955 = vld [vmem:[%s2954] sm:$0xf]
        %v2956 = vld [vmem:[%s2954 + $0x4] sm:$0xf]
        %v2957 = vld [vmem:[%s2954 + $0x8] sm:$0xf]
        %v2958 = vld [vmem:[%s2954 + $0xc] sm:$0xf]
        %s2959 = scalar_lea.vmem %s2, 224
        %v2960 = vld [vmem:[%s2959] sm:$0xff]
        %v2961 = vld [vmem:[%s2959 + $0x8] sm:$0xff]
        %v2962 = vld [vmem:[%s2959 + $0x10] sm:$0xff]
        %v2963 = vld [vmem:[%s2959 + $0x18] sm:$0xff]
        %2965 = vset.pattern.permute.xlu0 0
        %2966 = vperm.xlu0 %2965, %v2960
        %v2967 = vpop.permute.xlu0 %2966
        %2970 = vset.pattern.permute.xlu0 0
        %2971 = vperm.xlu0 %2970, %v2961
        %v2972 = vpop.permute.xlu0 %2971
        %2975 = vset.pattern.permute.xlu0 0
        %2976 = vperm.xlu0 %2975, %v2962
        %v2977 = vpop.permute.xlu0 %2976
        %2980 = vset.pattern.permute.xlu0 0
        %2981 = vperm.xlu0 %2980, %v2963
        %v2982 = vpop.permute.xlu0 %2981
        %v2988 = vunpack.c.l.b16 %v2955
        %v2989 = vunpack.c.l.b16 %v2956
        %v2990 = vunpack.c.l.b16 %v2957
        %v2991 = vunpack.c.l.b16 %v2958
        %v2992 = vpack.c.b16 %v2989, %v2988
        %v2993 = vpack.c.b16 %v2991, %v2990
        %v2995 = vsel %vm1125, %v2992, 0
        %v2998 = vsel %vm1125, %v2993, 0
        %3000 = vmatprep.subr.bf16.mxu0 %v2939
        %3001 = vmatpush1.bf16.msra.mxu0 %v2938
        %3002 = vmatprep.subr.bf16.mxu0 %v2947
        %3003 = vmatpush1.bf16.msra.mxu0 %v2946
        %3004 = vmatprep.subr.bf16.mxu0 0
        %3005 = vmatpush1.bf16.msra.mxu0 0
        %3006 = vmatprep.subr.bf16.mxu0 0
        %3007 = vmatpush1.bf16.msra.mxu0 0
        %3008 = vmatprep.subr.bf16.mxu0 0
        %3009 = vmatpush1.bf16.msra.mxu0 0
        %3010 = vmatprep.subr.bf16.mxu0 0
        %3011 = vmatpush1.bf16.msra.mxu0 0
        %3012 = vmatprep.subr.bf16.mxu0 0
        %3013 = vmatpush1.bf16.msra.mxu0 0
        %3014 = vmatprep.subr.bf16.mxu0 0
        %3015 = vmatpush1.bf16.msra.mxu0 0
        %3016 = vmatprep.subr.bf16.mxu0 0
        %3017 = vmatpush1.bf16.msra.mxu0 0
        %3018 = vmatprep.subr.bf16.mxu0 0
        %3019 = vmatpush1.bf16.msra.mxu0 0
        %3020 = vmatprep.subr.bf16.mxu0 0
        %3021 = vmatpush1.bf16.msra.mxu0 0
        %3022 = vmatprep.subr.bf16.mxu0 0
        %3023 = vmatpush1.bf16.msra.mxu0 0
        %3024 = vmatprep.subr.bf16.mxu0 0
        %3025 = vmatpush1.bf16.msra.mxu0 0
        %3026 = vmatprep.subr.bf16.mxu0 0
        %3027 = vmatpush1.bf16.msra.mxu0 0
        %3028 = vmatprep.subr.bf16.mxu0 0
        %3029 = vmatpush1.bf16.msra.mxu0 0
        %3030 = vmatprep.subr.bf16.mxu0 0
        %3031 = vmatpush1.bf16.msra.mxu0 0
        %3032 = vmatprep.mubr.bf16.mxu0 0
        %3033 = vmatmul.mubr.bf16.gmra.mrb[0].mxu0 %v2995
        %v3034 = vpop.f32.mrb[0].mxu0
        %v3035 = vadd.f32 %v2967, %v3034
        %v3036 = vpop.f32.mrb[0].mxu0
        %v3037 = vadd.f32 %v2967, %v3036
        %v3038 = vpop.f32.mrb[0].mxu0
        %v3039 = vadd.f32 %v2972, %v3038
        %v3040 = vpop.f32.mrb[0].mxu0
        %v3041 = vadd.f32 %v2972, %v3040
        %3042 = vmatprep.mubr.bf16.mxu0 0
        %3043 = vmatmul.mubr.bf16.gmra.mrb[0].mxu0 %v2998
        %v3044 = vpop.f32.mrb[0].mxu0
        %v3045 = vadd.f32 %v2977, %v3044
        %v3046 = vpop.f32.mrb[0].mxu0
        %v3047 = vadd.f32 %v2977, %v3046
        %v3048 = vpop.f32.mrb[0].mxu0
        %v3049 = vadd.f32 %v2982, %v3048
        %v3050 = vpop.f32.mrb[0].mxu0
        %v3051 = vadd.f32 %v2982, %v3050
        %3052 = vdwg.mxu0
        %3053 = vmatprep.subr.bf16.mxu0 %v2941
        %3054 = vmatpush1.bf16.msra.mxu0 %v2940
        %3055 = vmatprep.subr.bf16.mxu0 %v2949
        %3056 = vmatpush1.bf16.msra.mxu0 %v2948
        %3057 = vmatprep.subr.bf16.mxu0 0
        %3058 = vmatpush1.bf16.msra.mxu0 0
        %3059 = vmatprep.subr.bf16.mxu0 0
        %3060 = vmatpush1.bf16.msra.mxu0 0
        %3061 = vmatprep.subr.bf16.mxu0 0
        %3062 = vmatpush1.bf16.msra.mxu0 0
        %3063 = vmatprep.subr.bf16.mxu0 0
        %3064 = vmatpush1.bf16.msra.mxu0 0
        %3065 = vmatprep.subr.bf16.mxu0 0
        %3066 = vmatpush1.bf16.msra.mxu0 0
        %3067 = vmatprep.subr.bf16.mxu0 0
        %3068 = vmatpush1.bf16.msra.mxu0 0
        %3069 = vmatprep.subr.bf16.mxu0 0
        %3070 = vmatpush1.bf16.msra.mxu0 0
        %3071 = vmatprep.subr.bf16.mxu0 0
        %3072 = vmatpush1.bf16.msra.mxu0 0
        %3073 = vmatprep.subr.bf16.mxu0 0
        %3074 = vmatpush1.bf16.msra.mxu0 0
        %3075 = vmatprep.subr.bf16.mxu0 0
        %3076 = vmatpush1.bf16.msra.mxu0 0
        %3077 = vmatprep.subr.bf16.mxu0 0
        %3078 = vmatpush1.bf16.msra.mxu0 0
        %3079 = vmatprep.subr.bf16.mxu0 0
        %3080 = vmatpush1.bf16.msra.mxu0 0
        %3081 = vmatprep.subr.bf16.mxu0 0
        %3082 = vmatpush1.bf16.msra.mxu0 0
        %3083 = vmatprep.subr.bf16.mxu0 0
        %3084 = vmatpush1.bf16.msra.mxu0 0
        %3085 = vmatprep.mubr.bf16.mxu0 0
        %3086 = vmatmul.mubr.bf16.gmra.mrb[0].mxu0 %v2995
        %v3087 = vpop.f32.mrb[0].mxu0
        %v3088 = vadd.f32 %v2967, %v3087
        %v3089 = vpop.f32.mrb[0].mxu0
        %v3090 = vadd.f32 %v2967, %v3089
        %v3091 = vpop.f32.mrb[0].mxu0
        %v3092 = vadd.f32 %v2972, %v3091
        %v3093 = vpop.f32.mrb[0].mxu0
        %v3094 = vadd.f32 %v2972, %v3093
        %3095 = vmatprep.mubr.bf16.mxu0 0
        %3096 = vmatmul.mubr.bf16.gmra.mrb[0].mxu0 %v2998
        %v3097 = vpop.f32.mrb[0].mxu0
        %v3098 = vadd.f32 %v2977, %v3097
        %v3099 = vpop.f32.mrb[0].mxu0
        %v3100 = vadd.f32 %v2977, %v3099
        %v3101 = vpop.f32.mrb[0].mxu0
        %v3102 = vadd.f32 %v2982, %v3101
        %v3103 = vpop.f32.mrb[0].mxu0
        %v3104 = vadd.f32 %v2982, %v3103
        %3105 = vdwg.mxu0
        %3106 = vmatprep.subr.bf16.mxu0 %v2943
        %3107 = vmatpush1.bf16.msra.mxu0 %v2942
        %3108 = vmatprep.subr.bf16.mxu0 %v2951
        %3109 = vmatpush1.bf16.msra.mxu0 %v2950
        %3110 = vmatprep.subr.bf16.mxu0 0
        %3111 = vmatpush1.bf16.msra.mxu0 0
        %3112 = vmatprep.subr.bf16.mxu0 0
        %3113 = vmatpush1.bf16.msra.mxu0 0
        %3114 = vmatprep.subr.bf16.mxu0 0
        %3115 = vmatpush1.bf16.msra.mxu0 0
        %3116 = vmatprep.subr.bf16.mxu0 0
        %3117 = vmatpush1.bf16.msra.mxu0 0
        %3118 = vmatprep.subr.bf16.mxu0 0
        %3119 = vmatpush1.bf16.msra.mxu0 0
        %3120 = vmatprep.subr.bf16.mxu0 0
        %3121 = vmatpush1.bf16.msra.mxu0 0
        %3122 = vmatprep.subr.bf16.mxu0 0
        %3123 = vmatpush1.bf16.msra.mxu0 0
        %3124 = vmatprep.subr.bf16.mxu0 0
        %3125 = vmatpush1.bf16.msra.mxu0 0
        %3126 = vmatprep.subr.bf16.mxu0 0
        %3127 = vmatpush1.bf16.msra.mxu0 0
        %3128 = vmatprep.subr.bf16.mxu0 0
        %3129 = vmatpush1.bf16.msra.mxu0 0
        %3130 = vmatprep.subr.bf16.mxu0 0
        %3131 = vmatpush1.bf16.msra.mxu0 0
        %3132 = vmatprep.subr.bf16.mxu0 0
        %3133 = vmatpush1.bf16.msra.mxu0 0
        %3134 = vmatprep.subr.bf16.mxu0 0
        %3135 = vmatpush1.bf16.msra.mxu0 0
        %3136 = vmatprep.subr.bf16.mxu0 0
        %3137 = vmatpush1.bf16.msra.mxu0 0
        %3138 = vmatprep.mubr.bf16.mxu0 0
        %3139 = vmatmul.mubr.bf16.gmra.mrb[0].mxu0 %v2995
        %v3140 = vpop.f32.mrb[0].mxu0
        %v3141 = vadd.f32 %v2967, %v3140
        %v3142 = vpop.f32.mrb[0].mxu0
        %v3143 = vadd.f32 %v2967, %v3142
        %v3144 = vpop.f32.mrb[0].mxu0
        %v3145 = vadd.f32 %v2972, %v3144
        %v3146 = vpop.f32.mrb[0].mxu0
        %v3147 = vadd.f32 %v2972, %v3146
        %3148 = vmatprep.mubr.bf16.mxu0 0
        %3149 = vmatmul.mubr.bf16.gmra.mrb[0].mxu0 %v2998
        %v3150 = vpop.f32.mrb[0].mxu0
        %v3151 = vadd.f32 %v2977, %v3150
        %v3152 = vpop.f32.mrb[0].mxu0
        %v3153 = vadd.f32 %v2977, %v3152
        %v3154 = vpop.f32.mrb[0].mxu0
        %v3155 = vadd.f32 %v2982, %v3154
        %v3156 = vpop.f32.mrb[0].mxu0
        %v3157 = vadd.f32 %v2982, %v3156
        %3158 = vdwg.mxu0
        %3159 = vmatprep.subr.bf16.mxu0 %v2945
        %3160 = vmatpush1.bf16.msra.mxu0 %v2944
        %3161 = vmatprep.subr.bf16.mxu0 %v2953
        %3162 = vmatpush1.bf16.msra.mxu0 %v2952
        %3163 = vmatprep.subr.bf16.mxu0 0
        %3164 = vmatpush1.bf16.msra.mxu0 0
        %3165 = vmatprep.subr.bf16.mxu0 0
        %3166 = vmatpush1.bf16.msra.mxu0 0
        %3167 = vmatprep.subr.bf16.mxu0 0
        %3168 = vmatpush1.bf16.msra.mxu0 0
        %3169 = vmatprep.subr.bf16.mxu0 0
        %3170 = vmatpush1.bf16.msra.mxu0 0
        %3171 = vmatprep.subr.bf16.mxu0 0
        %3172 = vmatpush1.bf16.msra.mxu0 0
        %3173 = vmatprep.subr.bf16.mxu0 0
        %3174 = vmatpush1.bf16.msra.mxu0 0
        %3175 = vmatprep.subr.bf16.mxu0 0
        %3176 = vmatpush1.bf16.msra.mxu0 0
        %3177 = vmatprep.subr.bf16.mxu0 0
        %3178 = vmatpush1.bf16.msra.mxu0 0
        %3179 = vmatprep.subr.bf16.mxu0 0
        %3180 = vmatpush1.bf16.msra.mxu0 0
        %3181 = vmatprep.subr.bf16.mxu0 0
        %3182 = vmatpush1.bf16.msra.mxu0 0
        %3183 = vmatprep.subr.bf16.mxu0 0
        %3184 = vmatpush1.bf16.msra.mxu0 0
        %3185 = vmatprep.subr.bf16.mxu0 0
        %3186 = vmatpush1.bf16.msra.mxu0 0
        %3187 = vmatprep.subr.bf16.mxu0 0
        %3188 = vmatpush1.bf16.msra.mxu0 0
        %3189 = vmatprep.subr.bf16.mxu0 0
        %3190 = vmatpush1.bf16.msra.mxu0 0
        %3191 = vmatprep.mubr.bf16.mxu0 0
        %3192 = vmatmul.mubr.bf16.gmra.mrb[0].mxu0 %v2995
        %v3193 = vpop.f32.mrb[0].mxu0
        %v3194 = vadd.f32 %v2967, %v3193
        %v3195 = vpop.f32.mrb[0].mxu0
        %v3196 = vadd.f32 %v2967, %v3195
        %v3197 = vpop.f32.mrb[0].mxu0
        %v3198 = vadd.f32 %v2972, %v3197
        %v3199 = vpop.f32.mrb[0].mxu0
        %v3200 = vadd.f32 %v2972, %v3199
        %3201 = vmatprep.mubr.bf16.mxu0 0
        %3202 = vmatmul.mubr.bf16.gmra.mrb[0].mxu0 %v2998
        %v3203 = vpop.f32.mrb[0].mxu0
        %v3204 = vadd.f32 %v2977, %v3203
        %v3205 = vpop.f32.mrb[0].mxu0
        %v3206 = vadd.f32 %v2977, %v3205
        %v3207 = vpop.f32.mrb[0].mxu0
        %v3208 = vadd.f32 %v2982, %v3207
        %v3209 = vpop.f32.mrb[0].mxu0
        %v3210 = vadd.f32 %v2982, %v3209
        %3211 = vdwg.mxu0
        %v3212 = vmax.f32 %v3035, 0.0
        %v3213 = vmax.f32 %v3037, 0.0
        %v3214 = vmax.f32 %v3088, 0.0
        %v3215 = vmax.f32 %v3090, 0.0
        %v3216 = vmax.f32 %v3141, 0.0
        %v3217 = vmax.f32 %v3143, 0.0
        %v3218 = vmax.f32 %v3194, 0.0
        %v3219 = vmax.f32 %v3196, 0.0
        %v3220 = vmax.f32 %v3039, 0.0
        %v3221 = vmax.f32 %v3041, 0.0
        %v3222 = vmax.f32 %v3092, 0.0
        %v3223 = vmax.f32 %v3094, 0.0
        %v3224 = vmax.f32 %v3145, 0.0
        %v3225 = vmax.f32 %v3147, 0.0
        %v3226 = vmax.f32 %v3198, 0.0
        %v3227 = vmax.f32 %v3200, 0.0
        %v3228 = vmax.f32 %v3045, 0.0
        %v3229 = vmax.f32 %v3047, 0.0
        %v3230 = vmax.f32 %v3098, 0.0
        %v3231 = vmax.f32 %v3100, 0.0
        %v3232 = vmax.f32 %v3151, 0.0
        %v3233 = vmax.f32 %v3153, 0.0
        %v3234 = vmax.f32 %v3204, 0.0
        %v3235 = vmax.f32 %v3206, 0.0
        %v3236 = vmax.f32 %v3049, 0.0
        %v3237 = vmax.f32 %v3051, 0.0
        %v3238 = vmax.f32 %v3102, 0.0
        %v3239 = vmax.f32 %v3104, 0.0
        %v3240 = vmax.f32 %v3155, 0.0
        %v3241 = vmax.f32 %v3157, 0.0
        %v3242 = vmax.f32 %v3208, 0.0
        %v3243 = vmax.f32 %v3210, 0.0
        %v3244 = vpack.c.bf16 %v3220, %v3212
        %v3245 = vpack.c.bf16 %v3221, %v3213
        %v3246 = vpack.c.bf16 %v3222, %v3214
        %v3247 = vpack.c.bf16 %v3223, %v3215
        %v3248 = vpack.c.bf16 %v3224, %v3216
        %v3249 = vpack.c.bf16 %v3225, %v3217
        %v3250 = vpack.c.bf16 %v3226, %v3218
        %v3251 = vpack.c.bf16 %v3227, %v3219
        %v3252 = vpack.c.bf16 %v3236, %v3228
        %v3253 = vpack.c.bf16 %v3237, %v3229
        %v3254 = vpack.c.bf16 %v3238, %v3230
        %v3255 = vpack.c.bf16 %v3239, %v3231
        %v3256 = vpack.c.bf16 %v3240, %v3232
        %v3257 = vpack.c.bf16 %v3241, %v3233
        %v3258 = vpack.c.bf16 %v3242, %v3234
        %v3259 = vpack.c.bf16 %v3243, %v3235
        %v3260 = vld [vmem:[%s4] sm:$0xf]
        %v3261 = vld [vmem:[%s4 + $0x4] sm:$0xf]
        %v3262 = vld [vmem:[%s4 + $0x8] sm:$0xf]
        %v3263 = vld [vmem:[%s4 + $0xc] sm:$0xf]
        %v3264 = vld [vmem:[%s4 + $0x10] sm:$0x1]
        %v3265 = vld [vmem:[%s5] sm:$0xff]
        %v3266 = vld [vmem:[%s5 + $0x8] sm:$0xff]
        %v3267 = vld [vmem:[%s5 + $0x10] sm:$0xff]
        %v3268 = vld [vmem:[%s5 + $0x18] sm:$0xff]
        %v3269 = vld [vmem:[%s5 + $0x20] sm:$0x1]
        %3271 = vset.pattern.permute.xlu0 0
        %3272 = vperm.xlu0 %3271, %v3265
        %v3273 = vpop.permute.xlu0 %3272
        %3276 = vset.pattern.permute.xlu0 0
        %3277 = vperm.xlu0 %3276, %v3266
        %v3278 = vpop.permute.xlu0 %3277
        %3281 = vset.pattern.permute.xlu0 0
        %3282 = vperm.xlu0 %3281, %v3267
        %v3283 = vpop.permute.xlu0 %3282
        %3286 = vset.pattern.permute.xlu0 0
        %3287 = vperm.xlu0 %3286, %v3268
        %v3288 = vpop.permute.xlu0 %3287
        %3291 = vset.pattern.permute.xlu0 0
        %3292 = vperm.xlu0 %3291, %v3269
        %v3293 = vpop.permute.xlu0 %3292
        %v3300 = vunpack.c.l.b16 %v3260
        %v3301 = vunpack.c.l.b16 %v3261
        %v3302 = vunpack.c.l.b16 %v3262
        %v3303 = vunpack.c.l.b16 %v3263
        %v3304 = vunpack.c.l.b16 %v3264
        %v3305 = vpack.c.b16 %v3301, %v3300
        %v3306 = vpack.c.b16 %v3303, %v3302
        %v3307 = vpack.c.b16 %v3304, %v3304
        %v3309 = vsel %vm1125, %v3305, 0
        %v3312 = vsel %vm1125, %v3306, 0
        %v3315 = vsel %vm1125, %v3307, 0
        %3317 = vmatprep.subr.bf16.mxu0 %v3245
        %3318 = vmatpush1.bf16.msra.mxu0 %v3244
        %3319 = vmatprep.subr.bf16.mxu0 %v3253
        %3320 = vmatpush1.bf16.msra.mxu0 %v3252
        %3321 = vmatprep.subr.bf16.mxu0 0
        %3322 = vmatpush1.bf16.msra.mxu0 0
        %3323 = vmatprep.subr.bf16.mxu0 0
        %3324 = vmatpush1.bf16.msra.mxu0 0
        %3325 = vmatprep.subr.bf16.mxu0 0
        %3326 = vmatpush1.bf16.msra.mxu0 0
        %3327 = vmatprep.subr.bf16.mxu0 0
        %3328 = vmatpush1.bf16.msra.mxu0 0
        %3329 = vmatprep.subr.bf16.mxu0 0
        %3330 = vmatpush1.bf16.msra.mxu0 0
        %3331 = vmatprep.subr.bf16.mxu0 0
        %3332 = vmatpush1.bf16.msra.mxu0 0
        %3333 = vmatprep.subr.bf16.mxu0 0
        %3334 = vmatpush1.bf16.msra.mxu0 0
        %3335 = vmatprep.subr.bf16.mxu0 0
        %3336 = vmatpush1.bf16.msra.mxu0 0
        %3337 = vmatprep.subr.bf16.mxu0 0
        %3338 = vmatpush1.bf16.msra.mxu0 0
        %3339 = vmatprep.subr.bf16.mxu0 0
        %3340 = vmatpush1.bf16.msra.mxu0 0
        %3341 = vmatprep.subr.bf16.mxu0 0
        %3342 = vmatpush1.bf16.msra.mxu0 0
        %3343 = vmatprep.subr.bf16.mxu0 0
        %3344 = vmatpush1.bf16.msra.mxu0 0
        %3345 = vmatprep.subr.bf16.mxu0 0
        %3346 = vmatpush1.bf16.msra.mxu0 0
        %3347 = vmatprep.subr.bf16.mxu0 0
        %3348 = vmatpush1.bf16.msra.mxu0 0
        %3349 = vmatprep.mubr.bf16.mxu0 0
        %3350 = vmatmul.mubr.bf16.gmra.mrb[0].mxu0 %v3309
        %v3351 = vpop.f32.mrb[0].mxu0
        %v3352 = vadd.f32 %v3273, %v3351
        %v3353 = vpop.f32.mrb[0].mxu0
        %v3354 = vadd.f32 %v3273, %v3353
        %v3355 = vpop.f32.mrb[0].mxu0
        %v3356 = vadd.f32 %v3278, %v3355
        %v3357 = vpop.f32.mrb[0].mxu0
        %v3358 = vadd.f32 %v3278, %v3357
        %3359 = vmatprep.mubr.bf16.mxu0 0
        %3360 = vmatmul.mubr.bf16.gmra.mrb[0].mxu0 %v3312
        %v3361 = vpop.f32.mrb[0].mxu0
        %v3362 = vadd.f32 %v3283, %v3361
        %v3363 = vpop.f32.mrb[0].mxu0
        %v3364 = vadd.f32 %v3283, %v3363
        %v3365 = vpop.f32.mrb[0].mxu0
        %v3366 = vadd.f32 %v3288, %v3365
        %v3367 = vpop.f32.mrb[0].mxu0
        %v3368 = vadd.f32 %v3288, %v3367
        %3369 = vmatprep.mubr.bf16.mxu0 0
        %3370 = vmatmul.mubr.bf16.gmra.mrb[0].mxu0 %v3315
        %v3371 = vpop.f32.mrb[0].mxu0
        %v3372 = vadd.f32 %v3293, %v3371
        %v3373 = vpop.f32.mrb[0].mxu0
        %v3374 = vadd.f32 %v3293, %v3373
        %v3375 = vpop.f32.mrb[0].mxu0
        %v3376 = vpop.f32.mrb[0].mxu0
        %3377 = vdwg.mxu0
        %3378 = vmatprep.subr.bf16.mxu0 %v3247
        %3379 = vmatpush1.bf16.msra.mxu0 %v3246
        %3380 = vmatprep.subr.bf16.mxu0 %v3255
        %3381 = vmatpush1.bf16.msra.mxu0 %v3254
        %3382 = vmatprep.subr.bf16.mxu0 0
        %3383 = vmatpush1.bf16.msra.mxu0 0
        %3384 = vmatprep.subr.bf16.mxu0 0
        %3385 = vmatpush1.bf16.msra.mxu0 0
        %3386 = vmatprep.subr.bf16.mxu0 0
        %3387 = vmatpush1.bf16.msra.mxu0 0
        %3388 = vmatprep.subr.bf16.mxu0 0
        %3389 = vmatpush1.bf16.msra.mxu0 0
        %3390 = vmatprep.subr.bf16.mxu0 0
        %3391 = vmatpush1.bf16.msra.mxu0 0
        %3392 = vmatprep.subr.bf16.mxu0 0
        %3393 = vmatpush1.bf16.msra.mxu0 0
        %3394 = vmatprep.subr.bf16.mxu0 0
        %3395 = vmatpush1.bf16.msra.mxu0 0
        %3396 = vmatprep.subr.bf16.mxu0 0
        %3397 = vmatpush1.bf16.msra.mxu0 0
        %3398 = vmatprep.subr.bf16.mxu0 0
        %3399 = vmatpush1.bf16.msra.mxu0 0
        %3400 = vmatprep.subr.bf16.mxu0 0
        %3401 = vmatpush1.bf16.msra.mxu0 0
        %3402 = vmatprep.subr.bf16.mxu0 0
        %3403 = vmatpush1.bf16.msra.mxu0 0
        %3404 = vmatprep.subr.bf16.mxu0 0
        %3405 = vmatpush1.bf16.msra.mxu0 0
        %3406 = vmatprep.subr.bf16.mxu0 0
        %3407 = vmatpush1.bf16.msra.mxu0 0
        %3408 = vmatprep.subr.bf16.mxu0 0
        %3409 = vmatpush1.bf16.msra.mxu0 0
        %3410 = vmatprep.mubr.bf16.mxu0 0
        %3411 = vmatmul.mubr.bf16.gmra.mrb[0].mxu0 %v3309
        %v3412 = vpop.f32.mrb[0].mxu0
        %v3413 = vadd.f32 %v3273, %v3412
        %v3414 = vpop.f32.mrb[0].mxu0
        %v3415 = vadd.f32 %v3273, %v3414
        %v3416 = vpop.f32.mrb[0].mxu0
        %v3417 = vadd.f32 %v3278, %v3416
        %v3418 = vpop.f32.mrb[0].mxu0
        %v3419 = vadd.f32 %v3278, %v3418
        %3420 = vmatprep.mubr.bf16.mxu0 0
        %3421 = vmatmul.mubr.bf16.gmra.mrb[0].mxu0 %v3312
        %v3422 = vpop.f32.mrb[0].mxu0
        %v3423 = vadd.f32 %v3283, %v3422
        %v3424 = vpop.f32.mrb[0].mxu0
        %v3425 = vadd.f32 %v3283, %v3424
        %v3426 = vpop.f32.mrb[0].mxu0
        %v3427 = vadd.f32 %v3288, %v3426
        %v3428 = vpop.f32.mrb[0].mxu0
        %v3429 = vadd.f32 %v3288, %v3428
        %3430 = vmatprep.mubr.bf16.mxu0 0
        %3431 = vmatmul.mubr.bf16.gmra.mrb[0].mxu0 %v3315
        %v3432 = vpop.f32.mrb[0].mxu0
        %v3433 = vadd.f32 %v3293, %v3432
        %v3434 = vpop.f32.mrb[0].mxu0
        %v3435 = vadd.f32 %v3293, %v3434
        %v3436 = vpop.f32.mrb[0].mxu0
        %v3437 = vpop.f32.mrb[0].mxu0
        %3438 = vdwg.mxu0
        %3439 = vmatprep.subr.bf16.mxu0 %v3249
        %3440 = vmatpush1.bf16.msra.mxu0 %v3248
        %3441 = vmatprep.subr.bf16.mxu0 %v3257
        %3442 = vmatpush1.bf16.msra.mxu0 %v3256
        %3443 = vmatprep.subr.bf16.mxu0 0
        %3444 = vmatpush1.bf16.msra.mxu0 0
        %3445 = vmatprep.subr.bf16.mxu0 0
        %3446 = vmatpush1.bf16.msra.mxu0 0
        %3447 = vmatprep.subr.bf16.mxu0 0
        %3448 = vmatpush1.bf16.msra.mxu0 0
        %3449 = vmatprep.subr.bf16.mxu0 0
        %3450 = vmatpush1.bf16.msra.mxu0 0
        %3451 = vmatprep.subr.bf16.mxu0 0
        %3452 = vmatpush1.bf16.msra.mxu0 0
        %3453 = vmatprep.subr.bf16.mxu0 0
        %3454 = vmatpush1.bf16.msra.mxu0 0
        %3455 = vmatprep.subr.bf16.mxu0 0
        %3456 = vmatpush1.bf16.msra.mxu0 0
        %3457 = vmatprep.subr.bf16.mxu0 0
        %3458 = vmatpush1.bf16.msra.mxu0 0
        %3459 = vmatprep.subr.bf16.mxu0 0
        %3460 = vmatpush1.bf16.msra.mxu0 0
        %3461 = vmatprep.subr.bf16.mxu0 0
        %3462 = vmatpush1.bf16.msra.mxu0 0
        %3463 = vmatprep.subr.bf16.mxu0 0
        %3464 = vmatpush1.bf16.msra.mxu0 0
        %3465 = vmatprep.subr.bf16.mxu0 0
        %3466 = vmatpush1.bf16.msra.mxu0 0
        %3467 = vmatprep.subr.bf16.mxu0 0
        %3468 = vmatpush1.bf16.msra.mxu0 0
        %3469 = vmatprep.subr.bf16.mxu0 0
        %3470 = vmatpush1.bf16.msra.mxu0 0
        %3471 = vmatprep.mubr.bf16.mxu0 0
        %3472 = vmatmul.mubr.bf16.gmra.mrb[0].mxu0 %v3309
        %v3473 = vpop.f32.mrb[0].mxu0
        %v3474 = vadd.f32 %v3273, %v3473
        %v3475 = vpop.f32.mrb[0].mxu0
        %v3476 = vadd.f32 %v3273, %v3475
        %v3477 = vpop.f32.mrb[0].mxu0
        %v3478 = vadd.f32 %v3278, %v3477
        %v3479 = vpop.f32.mrb[0].mxu0
        %v3480 = vadd.f32 %v3278, %v3479
        %3481 = vmatprep.mubr.bf16.mxu0 0
        %3482 = vmatmul.mubr.bf16.gmra.mrb[0].mxu0 %v3312
        %v3483 = vpop.f32.mrb[0].mxu0
        %v3484 = vadd.f32 %v3283, %v3483
        %v3485 = vpop.f32.mrb[0].mxu0
        %v3486 = vadd.f32 %v3283, %v3485
        %v3487 = vpop.f32.mrb[0].mxu0
        %v3488 = vadd.f32 %v3288, %v3487
        %v3489 = vpop.f32.mrb[0].mxu0
        %v3490 = vadd.f32 %v3288, %v3489
        %3491 = vmatprep.mubr.bf16.mxu0 0
        %3492 = vmatmul.mubr.bf16.gmra.mrb[0].mxu0 %v3315
        %v3493 = vpop.f32.mrb[0].mxu0
        %v3494 = vadd.f32 %v3293, %v3493
        %v3495 = vpop.f32.mrb[0].mxu0
        %v3496 = vadd.f32 %v3293, %v3495
        %v3497 = vpop.f32.mrb[0].mxu0
        %v3498 = vpop.f32.mrb[0].mxu0
        %3499 = vdwg.mxu0
        %3500 = vmatprep.subr.bf16.mxu0 %v3251
        %3501 = vmatpush1.bf16.msra.mxu0 %v3250
        %3502 = vmatprep.subr.bf16.mxu0 %v3259
        %3503 = vmatpush1.bf16.msra.mxu0 %v3258
        %3504 = vmatprep.subr.bf16.mxu0 0
        %3505 = vmatpush1.bf16.msra.mxu0 0
        %3506 = vmatprep.subr.bf16.mxu0 0
        %3507 = vmatpush1.bf16.msra.mxu0 0
        %3508 = vmatprep.subr.bf16.mxu0 0
        %3509 = vmatpush1.bf16.msra.mxu0 0
        %3510 = vmatprep.subr.bf16.mxu0 0
        %3511 = vmatpush1.bf16.msra.mxu0 0
        %3512 = vmatprep.subr.bf16.mxu0 0
        %3513 = vmatpush1.bf16.msra.mxu0 0
        %3514 = vmatprep.subr.bf16.mxu0 0
        %3515 = vmatpush1.bf16.msra.mxu0 0
        %3516 = vmatprep.subr.bf16.mxu0 0
        %3517 = vmatpush1.bf16.msra.mxu0 0
        %3518 = vmatprep.subr.bf16.mxu0 0
        %3519 = vmatpush1.bf16.msra.mxu0 0
        %3520 = vmatprep.subr.bf16.mxu0 0
        %3521 = vmatpush1.bf16.msra.mxu0 0
        %3522 = vmatprep.subr.bf16.mxu0 0
        %3523 = vmatpush1.bf16.msra.mxu0 0
        %3524 = vmatprep.subr.bf16.mxu0 0
        %3525 = vmatpush1.bf16.msra.mxu0 0
        %3526 = vmatprep.subr.bf16.mxu0 0
        %3527 = vmatpush1.bf16.msra.mxu0 0
        %3528 = vmatprep.subr.bf16.mxu0 0
        %3529 = vmatpush1.bf16.msra.mxu0 0
        %3530 = vmatprep.subr.bf16.mxu0 0
        %3531 = vmatpush1.bf16.msra.mxu0 0
        %3532 = vmatprep.mubr.bf16.mxu0 0
        %3533 = vmatmul.mubr.bf16.gmra.mrb[0].mxu0 %v3309
        %v3534 = vpop.f32.mrb[0].mxu0
        %v3535 = vadd.f32 %v3273, %v3534
        %v3536 = vpop.f32.mrb[0].mxu0
        %v3537 = vadd.f32 %v3273, %v3536
        %v3538 = vpop.f32.mrb[0].mxu0
        %v3539 = vadd.f32 %v3278, %v3538
        %v3540 = vpop.f32.mrb[0].mxu0
        %v3541 = vadd.f32 %v3278, %v3540
        %3542 = vmatprep.mubr.bf16.mxu0 0
        %3543 = vmatmul.mubr.bf16.gmra.mrb[0].mxu0 %v3312
        %v3544 = vpop.f32.mrb[0].mxu0
        %v3545 = vadd.f32 %v3283, %v3544
        %v3546 = vpop.f32.mrb[0].mxu0
        %v3547 = vadd.f32 %v3283, %v3546
        %v3548 = vpop.f32.mrb[0].mxu0
        %v3549 = vadd.f32 %v3288, %v3548
        %v3550 = vpop.f32.mrb[0].mxu0
        %v3551 = vadd.f32 %v3288, %v3550
        %3552 = vmatprep.mubr.bf16.mxu0 0
        %3553 = vmatmul.mubr.bf16.gmra.mrb[0].mxu0 %v3315
        %v3554 = vpop.f32.mrb[0].mxu0
        %v3555 = vadd.f32 %v3293, %v3554
        %v3556 = vpop.f32.mrb[0].mxu0
        %v3557 = vadd.f32 %v3293, %v3556
        %v3558 = vpop.f32.mrb[0].mxu0
        %v3559 = vpop.f32.mrb[0].mxu0
        %3560 = vdwg.mxu0
        %v3561 = vpack.c.bf16 %v3356, %v3352
        %v3562 = vpack.c.bf16 %v3358, %v3354
        %v3563 = vpack.c.bf16 %v3417, %v3413
        %v3564 = vpack.c.bf16 %v3419, %v3415
        %v3565 = vpack.c.bf16 %v3478, %v3474
        %v3566 = vpack.c.bf16 %v3480, %v3476
        %v3567 = vpack.c.bf16 %v3539, %v3535
        %v3568 = vpack.c.bf16 %v3541, %v3537
        %v3569 = vpack.c.bf16 %v3366, %v3362
        %v3570 = vpack.c.bf16 %v3368, %v3364
        %v3571 = vpack.c.bf16 %v3427, %v3423
        %v3572 = vpack.c.bf16 %v3429, %v3425
        %v3573 = vpack.c.bf16 %v3488, %v3484
        %v3574 = vpack.c.bf16 %v3490, %v3486
        %v3575 = vpack.c.bf16 %v3549, %v3545
        %v3576 = vpack.c.bf16 %v3551, %v3547
        %v3577 = vld [vmem:[%s7] sm:$0xf]
        %v3578 = vld [vmem:[%s7 + $0x4] sm:$0xf]
        %v3579 = vunpack.c.l.bf16 %v3577
        %v3580 = vunpack.c.l.bf16 %v3578
        %v3581 = vlaneseq
        %v3582 = vshrl.u32 %v3581, 7
        %v3583 = vsub.s32 3, %v3582
        %v3584 = vrot.slane %v405, %v3583
        %v3585 = vlaneseq
        %v3586 = vshrl.u32 %v3585, 7
        %v3587 = vsub.s32 3, %v3586
        %v3588 = vrot.slane %v406, %v3587
        %v3589 = vlaneseq
        %v3590 = vshrl.u32 %v3589, 7
        %v3591 = vsub.s32 3, %v3590
        %v3592 = vrot.slane %v407, %v3591
        %v3593 = vlaneseq
        %v3594 = vshrl.u32 %v3593, 7
        %v3595 = vsub.s32 3, %v3594
        %v3596 = vrot.slane %v408, %v3595
        %v3597 = vlaneseq
        %v3598 = vshrl.u32 %v3597, 7
        %v3599 = vsub.s32 3, %v3598
        %v3600 = vrot.slane %v409, %v3599
        %v3601 = vlaneseq
        %v3602 = vshrl.u32 %v3601, 7
        %v3603 = vsub.s32 3, %v3602
        %v3604 = vrot.slane %v410, %v3603
        %v3605 = vlaneseq
        %v3606 = vshrl.u32 %v3605, 7
        %v3607 = vsub.s32 3, %v3606
        %v3608 = vrot.slane %v411, %v3607
        %v3609 = vlaneseq
        %v3610 = vshrl.u32 %v3609, 7
        %v3611 = vsub.s32 3, %v3610
        %v3612 = vrot.slane %v412, %v3611
        %3614 = vset.pattern.permute.xlu0 0
        %3615 = vperm.xlu0 %3614, %v3579
        %v3616 = vpop.permute.xlu0 %3615
        %3619 = vset.pattern.permute.xlu0 0
        %3620 = vperm.xlu0 %3619, %v3580
        %v3621 = vpop.permute.xlu0 %3620
        %v3623 = vmul.f32 %v3616, %v3584
        %v3624 = vmul.f32 %v3616, %v3588
        %v3625 = vmul.f32 %v3616, %v3592
        %v3626 = vmul.f32 %v3616, %v3596
        %v3627 = vmul.f32 %v3616, %v3600
        %v3628 = vmul.f32 %v3616, %v3604
        %v3629 = vmul.f32 %v3616, %v3608
        %v3630 = vmul.f32 %v3616, %v3612
        %v3631 = vmul.f32 %v3621, %v3584
        %v3632 = vmul.f32 %v3621, %v3588
        %v3633 = vmul.f32 %v3621, %v3592
        %v3634 = vmul.f32 %v3621, %v3596
        %v3635 = vmul.f32 %v3621, %v3600
        %v3636 = vmul.f32 %v3621, %v3604
        %v3637 = vmul.f32 %v3621, %v3608
        %v3638 = vmul.f32 %v3621, %v3612
        %v3639 = vadd.f32 %v3623, 0.0
        %v3640 = vadd.f32 %v3624, 0.0
        %v3641 = vadd.f32 %v3625, 0.0
        %v3642 = vadd.f32 %v3626, 0.0
        %v3643 = vadd.f32 %v3627, 0.0
        %v3644 = vadd.f32 %v3628, 0.0
        %v3645 = vadd.f32 %v3629, 0.0
        %v3646 = vadd.f32 %v3630, 0.0
        %v3647 = vadd.f32 %v3631, 0.0
        %v3648 = vadd.f32 %v3632, 0.0
        %v3649 = vadd.f32 %v3633, 0.0
        %v3650 = vadd.f32 %v3634, 0.0
        %v3651 = vadd.f32 %v3635, 0.0
        %v3652 = vadd.f32 %v3636, 0.0
        %v3653 = vadd.f32 %v3637, 0.0
        %v3654 = vadd.f32 %v3638, 0.0
        %v3655 = vlaneseq
        %v3656 = vshrl.u32 %v3655, 7
        %v3657 = vsub.s32 4, %v3656
        %v3658 = vrot.slane %v405, %v3657
        %v3659 = vlaneseq
        %v3660 = vshrl.u32 %v3659, 7
        %v3661 = vsub.s32 4, %v3660
        %v3662 = vrot.slane %v406, %v3661
        %v3663 = vlaneseq
        %v3664 = vshrl.u32 %v3663, 7
        %v3665 = vsub.s32 4, %v3664
        %v3666 = vrot.slane %v407, %v3665
        %v3667 = vlaneseq
        %v3668 = vshrl.u32 %v3667, 7
        %v3669 = vsub.s32 4, %v3668
        %v3670 = vrot.slane %v408, %v3669
        %v3671 = vlaneseq
        %v3672 = vshrl.u32 %v3671, 7
        %v3673 = vsub.s32 4, %v3672
        %v3674 = vrot.slane %v409, %v3673
        %v3675 = vlaneseq
        %v3676 = vshrl.u32 %v3675, 7
        %v3677 = vsub.s32 4, %v3676
        %v3678 = vrot.slane %v410, %v3677
        %v3679 = vlaneseq
        %v3680 = vshrl.u32 %v3679, 7
        %v3681 = vsub.s32 4, %v3680
        %v3682 = vrot.slane %v411, %v3681
        %v3683 = vlaneseq
        %v3684 = vshrl.u32 %v3683, 7
        %v3685 = vsub.s32 4, %v3684
        %v3686 = vrot.slane %v412, %v3685
        %3687 = vset.pattern.permute.xlu0 1
        %3688 = vperm.xlu0 %3687, %v3579
        %v3689 = vpop.permute.xlu0 %3688
        %3691 = vset.pattern.permute.xlu0 1
        %3692 = vperm.xlu0 %3691, %v3580
        %v3693 = vpop.permute.xlu0 %3692
        %v3695 = vmul.f32 %v3689, %v3658
        %v3696 = vmul.f32 %v3689, %v3662
        %v3697 = vmul.f32 %v3689, %v3666
        %v3698 = vmul.f32 %v3689, %v3670
        %v3699 = vmul.f32 %v3689, %v3674
        %v3700 = vmul.f32 %v3689, %v3678
        %v3701 = vmul.f32 %v3689, %v3682
        %v3702 = vmul.f32 %v3689, %v3686
        %v3703 = vmul.f32 %v3693, %v3658
        %v3704 = vmul.f32 %v3693, %v3662
        %v3705 = vmul.f32 %v3693, %v3666
        %v3706 = vmul.f32 %v3693, %v3670
        %v3707 = vmul.f32 %v3693, %v3674
        %v3708 = vmul.f32 %v3693, %v3678
        %v3709 = vmul.f32 %v3693, %v3682
        %v3710 = vmul.f32 %v3693, %v3686
        %v3711 = vadd.f32 %v3639, %v3695
        %v3712 = vadd.f32 %v3640, %v3696
        %v3713 = vadd.f32 %v3641, %v3697
        %v3714 = vadd.f32 %v3642, %v3698
        %v3715 = vadd.f32 %v3643, %v3699
        %v3716 = vadd.f32 %v3644, %v3700
        %v3717 = vadd.f32 %v3645, %v3701
        %v3718 = vadd.f32 %v3646, %v3702
        %v3719 = vadd.f32 %v3647, %v3703
        %v3720 = vadd.f32 %v3648, %v3704
        %v3721 = vadd.f32 %v3649, %v3705
        %v3722 = vadd.f32 %v3650, %v3706
        %v3723 = vadd.f32 %v3651, %v3707
        %v3724 = vadd.f32 %v3652, %v3708
        %v3725 = vadd.f32 %v3653, %v3709
        %v3726 = vadd.f32 %v3654, %v3710
        %v3727 = vlaneseq
        %v3728 = vshrl.u32 %v3727, 7
        %v3729 = vsub.s32 5, %v3728
        %v3730 = vrot.slane %v405, %v3729
        %v3731 = vlaneseq
        %v3732 = vshrl.u32 %v3731, 7
        %v3733 = vsub.s32 5, %v3732
        %v3734 = vrot.slane %v406, %v3733
        %v3735 = vlaneseq
        %v3736 = vshrl.u32 %v3735, 7
        %v3737 = vsub.s32 5, %v3736
        %v3738 = vrot.slane %v407, %v3737
        %v3739 = vlaneseq
        %v3740 = vshrl.u32 %v3739, 7
        %v3741 = vsub.s32 5, %v3740
        %v3742 = vrot.slane %v408, %v3741
        %v3743 = vlaneseq
        %v3744 = vshrl.u32 %v3743, 7
        %v3745 = vsub.s32 5, %v3744
        %v3746 = vrot.slane %v409, %v3745
        %v3747 = vlaneseq
        %v3748 = vshrl.u32 %v3747, 7
        %v3749 = vsub.s32 5, %v3748
        %v3750 = vrot.slane %v410, %v3749
        %v3751 = vlaneseq
        %v3752 = vshrl.u32 %v3751, 7
        %v3753 = vsub.s32 5, %v3752
        %v3754 = vrot.slane %v411, %v3753
        %v3755 = vlaneseq
        %v3756 = vshrl.u32 %v3755, 7
        %v3757 = vsub.s32 5, %v3756
        %v3758 = vrot.slane %v412, %v3757
        %3759 = vset.pattern.permute.xlu0 2
        %3760 = vperm.xlu0 %3759, %v3579
        %v3761 = vpop.permute.xlu0 %3760
        %3763 = vset.pattern.permute.xlu0 2
        %3764 = vperm.xlu0 %3763, %v3580
        %v3765 = vpop.permute.xlu0 %3764
        %v3767 = vmul.f32 %v3761, %v3730
        %v3768 = vmul.f32 %v3761, %v3734
        %v3769 = vmul.f32 %v3761, %v3738
        %v3770 = vmul.f32 %v3761, %v3742
        %v3771 = vmul.f32 %v3761, %v3746
        %v3772 = vmul.f32 %v3761, %v3750
        %v3773 = vmul.f32 %v3761, %v3754
        %v3774 = vmul.f32 %v3761, %v3758
        %v3775 = vmul.f32 %v3765, %v3730
        %v3776 = vmul.f32 %v3765, %v3734
        %v3777 = vmul.f32 %v3765, %v3738
        %v3778 = vmul.f32 %v3765, %v3742
        %v3779 = vmul.f32 %v3765, %v3746
        %v3780 = vmul.f32 %v3765, %v3750
        %v3781 = vmul.f32 %v3765, %v3754
        %v3782 = vmul.f32 %v3765, %v3758
        %v3783 = vadd.f32 %v3711, %v3767
        %v3784 = vadd.f32 %v3712, %v3768
        %v3785 = vadd.f32 %v3713, %v3769
        %v3786 = vadd.f32 %v3714, %v3770
        %v3787 = vadd.f32 %v3715, %v3771
        %v3788 = vadd.f32 %v3716, %v3772
        %v3789 = vadd.f32 %v3717, %v3773
        %v3790 = vadd.f32 %v3718, %v3774
        %v3791 = vadd.f32 %v3719, %v3775
        %v3792 = vadd.f32 %v3720, %v3776
        %v3793 = vadd.f32 %v3721, %v3777
        %v3794 = vadd.f32 %v3722, %v3778
        %v3795 = vadd.f32 %v3723, %v3779
        %v3796 = vadd.f32 %v3724, %v3780
        %v3797 = vadd.f32 %v3725, %v3781
        %v3798 = vadd.f32 %v3726, %v3782
        %v3799 = vld [vmem:[%s6] sm:$0xf]
        %v3800 = vld [vmem:[%s6 + $0x4] sm:$0xf]
        %v3803 = vunpack.c.l.b16 %v3799
        %v3804 = vunpack.c.l.b16 %v3800
        %v3805 = vpack.c.b16 %v3804, %v3803
        %v3807 = vsel %vm1125, %v3805, 0
        %3809 = vmatprep.subr.bf16.mxu0 %v3562
        %3810 = vmatpush1.bf16.msra.mxu0 %v3561
        %3811 = vmatprep.subr.bf16.mxu0 %v3570
        %3812 = vmatpush1.bf16.msra.mxu0 %v3569
        %3813 = vmatprep.subr.bf16.mxu0 0
        %3814 = vmatpush1.bf16.msra.mxu0 0
        %3815 = vmatprep.subr.bf16.mxu0 0
        %3816 = vmatpush1.bf16.msra.mxu0 0
        %3817 = vmatprep.subr.bf16.mxu0 0
        %3818 = vmatpush1.bf16.msra.mxu0 0
        %3819 = vmatprep.subr.bf16.mxu0 0
        %3820 = vmatpush1.bf16.msra.mxu0 0
        %3821 = vmatprep.subr.bf16.mxu0 0
        %3822 = vmatpush1.bf16.msra.mxu0 0
        %3823 = vmatprep.subr.bf16.mxu0 0
        %3824 = vmatpush1.bf16.msra.mxu0 0
        %3825 = vmatprep.subr.bf16.mxu0 0
        %3826 = vmatpush1.bf16.msra.mxu0 0
        %3827 = vmatprep.subr.bf16.mxu0 0
        %3828 = vmatpush1.bf16.msra.mxu0 0
        %3829 = vmatprep.subr.bf16.mxu0 0
        %3830 = vmatpush1.bf16.msra.mxu0 0
        %3831 = vmatprep.subr.bf16.mxu0 0
        %3832 = vmatpush1.bf16.msra.mxu0 0
        %3833 = vmatprep.subr.bf16.mxu0 0
        %3834 = vmatpush1.bf16.msra.mxu0 0
        %3835 = vmatprep.subr.bf16.mxu0 0
        %3836 = vmatpush1.bf16.msra.mxu0 0
        %3837 = vmatprep.subr.bf16.mxu0 0
        %3838 = vmatpush1.bf16.msra.mxu0 0
        %3839 = vmatprep.subr.bf16.mxu0 0
        %3840 = vmatpush1.bf16.msra.mxu0 0
        %3841 = vmatprep.mubr.bf16.mxu0 0
        %3842 = vmatmul.mubr.bf16.gmra.mrb[0].mxu0 %v3807
        %v3843 = vpop.f32.mrb[0].mxu0
        %v3844 = vadd.f32 %v3783, %v3843
        %v3845 = vpop.f32.mrb[0].mxu0
        %v3846 = vadd.f32 %v3784, %v3845
        %v3847 = vpop.f32.mrb[0].mxu0
        %v3848 = vadd.f32 %v3791, %v3847
        %v3849 = vpop.f32.mrb[0].mxu0
        %v3850 = vadd.f32 %v3792, %v3849
        %3851 = vdwg.mxu0
        %3852 = vmatprep.subr.bf16.mxu0 %v3564
        %3853 = vmatpush1.bf16.msra.mxu0 %v3563
        %3854 = vmatprep.subr.bf16.mxu0 %v3572
        %3855 = vmatpush1.bf16.msra.mxu0 %v3571
        %3856 = vmatprep.subr.bf16.mxu0 0
        %3857 = vmatpush1.bf16.msra.mxu0 0
        %3858 = vmatprep.subr.bf16.mxu0 0
        %3859 = vmatpush1.bf16.msra.mxu0 0
        %3860 = vmatprep.subr.bf16.mxu0 0
        %3861 = vmatpush1.bf16.msra.mxu0 0
        %3862 = vmatprep.subr.bf16.mxu0 0
        %3863 = vmatpush1.bf16.msra.mxu0 0
        %3864 = vmatprep.subr.bf16.mxu0 0
        %3865 = vmatpush1.bf16.msra.mxu0 0
        %3866 = vmatprep.subr.bf16.mxu0 0
        %3867 = vmatpush1.bf16.msra.mxu0 0
        %3868 = vmatprep.subr.bf16.mxu0 0
        %3869 = vmatpush1.bf16.msra.mxu0 0
        %3870 = vmatprep.subr.bf16.mxu0 0
        %3871 = vmatpush1.bf16.msra.mxu0 0
        %3872 = vmatprep.subr.bf16.mxu0 0
        %3873 = vmatpush1.bf16.msra.mxu0 0
        %3874 = vmatprep.subr.bf16.mxu0 0
        %3875 = vmatpush1.bf16.msra.mxu0 0
        %3876 = vmatprep.subr.bf16.mxu0 0
        %3877 = vmatpush1.bf16.msra.mxu0 0
        %3878 = vmatprep.subr.bf16.mxu0 0
        %3879 = vmatpush1.bf16.msra.mxu0 0
        %3880 = vmatprep.subr.bf16.mxu0 0
        %3881 = vmatpush1.bf16.msra.mxu0 0
        %3882 = vmatprep.subr.bf16.mxu0 0
        %3883 = vmatpush1.bf16.msra.mxu0 0
        %3884 = vmatprep.mubr.bf16.mxu0 0
        %3885 = vmatmul.mubr.bf16.gmra.mrb[0].mxu0 %v3807
        %v3886 = vpop.f32.mrb[0].mxu0
        %v3887 = vadd.f32 %v3785, %v3886
        %v3888 = vpop.f32.mrb[0].mxu0
        %v3889 = vadd.f32 %v3786, %v3888
        %v3890 = vpop.f32.mrb[0].mxu0
        %v3891 = vadd.f32 %v3793, %v3890
        %v3892 = vpop.f32.mrb[0].mxu0
        %v3893 = vadd.f32 %v3794, %v3892
        %3894 = vdwg.mxu0
        %3895 = vmatprep.subr.bf16.mxu0 %v3566
        %3896 = vmatpush1.bf16.msra.mxu0 %v3565
        %3897 = vmatprep.subr.bf16.mxu0 %v3574
        %3898 = vmatpush1.bf16.msra.mxu0 %v3573
        %3899 = vmatprep.subr.bf16.mxu0 0
        %3900 = vmatpush1.bf16.msra.mxu0 0
        %3901 = vmatprep.subr.bf16.mxu0 0
        %3902 = vmatpush1.bf16.msra.mxu0 0
        %3903 = vmatprep.subr.bf16.mxu0 0
        %3904 = vmatpush1.bf16.msra.mxu0 0
        %3905 = vmatprep.subr.bf16.mxu0 0
        %3906 = vmatpush1.bf16.msra.mxu0 0
        %3907 = vmatprep.subr.bf16.mxu0 0
        %3908 = vmatpush1.bf16.msra.mxu0 0
        %3909 = vmatprep.subr.bf16.mxu0 0
        %3910 = vmatpush1.bf16.msra.mxu0 0
        %3911 = vmatprep.subr.bf16.mxu0 0
        %3912 = vmatpush1.bf16.msra.mxu0 0
        %3913 = vmatprep.subr.bf16.mxu0 0
        %3914 = vmatpush1.bf16.msra.mxu0 0
        %3915 = vmatprep.subr.bf16.mxu0 0
        %3916 = vmatpush1.bf16.msra.mxu0 0
        %3917 = vmatprep.subr.bf16.mxu0 0
        %3918 = vmatpush1.bf16.msra.mxu0 0
        %3919 = vmatprep.subr.bf16.mxu0 0
        %3920 = vmatpush1.bf16.msra.mxu0 0
        %3921 = vmatprep.subr.bf16.mxu0 0
        %3922 = vmatpush1.bf16.msra.mxu0 0
        %3923 = vmatprep.subr.bf16.mxu0 0
        %3924 = vmatpush1.bf16.msra.mxu0 0
        %3925 = vmatprep.subr.bf16.mxu0 0
        %3926 = vmatpush1.bf16.msra.mxu0 0
        %3927 = vmatprep.mubr.bf16.mxu0 0
        %3928 = vmatmul.mubr.bf16.gmra.mrb[0].mxu0 %v3807
        %v3929 = vpop.f32.mrb[0].mxu0
        %v3930 = vadd.f32 %v3787, %v3929
        %v3931 = vpop.f32.mrb[0].mxu0
        %v3932 = vadd.f32 %v3788, %v3931
        %v3933 = vpop.f32.mrb[0].mxu0
        %v3934 = vadd.f32 %v3795, %v3933
        %v3935 = vpop.f32.mrb[0].mxu0
        %v3936 = vadd.f32 %v3796, %v3935
        %3937 = vdwg.mxu0
        %3938 = vmatprep.subr.bf16.mxu0 %v3568
        %3939 = vmatpush1.bf16.msra.mxu0 %v3567
        %3940 = vmatprep.subr.bf16.mxu0 %v3576
        %3941 = vmatpush1.bf16.msra.mxu0 %v3575
        %3942 = vmatprep.subr.bf16.mxu0 0
        %3943 = vmatpush1.bf16.msra.mxu0 0
        %3944 = vmatprep.subr.bf16.mxu0 0
        %3945 = vmatpush1.bf16.msra.mxu0 0
        %3946 = vmatprep.subr.bf16.mxu0 0
        %3947 = vmatpush1.bf16.msra.mxu0 0
        %3948 = vmatprep.subr.bf16.mxu0 0
        %3949 = vmatpush1.bf16.msra.mxu0 0
        %3950 = vmatprep.subr.bf16.mxu0 0
        %3951 = vmatpush1.bf16.msra.mxu0 0
        %3952 = vmatprep.subr.bf16.mxu0 0
        %3953 = vmatpush1.bf16.msra.mxu0 0
        %3954 = vmatprep.subr.bf16.mxu0 0
        %3955 = vmatpush1.bf16.msra.mxu0 0
        %3956 = vmatprep.subr.bf16.mxu0 0
        %3957 = vmatpush1.bf16.msra.mxu0 0
        %3958 = vmatprep.subr.bf16.mxu0 0
        %3959 = vmatpush1.bf16.msra.mxu0 0
        %3960 = vmatprep.subr.bf16.mxu0 0
        %3961 = vmatpush1.bf16.msra.mxu0 0
        %3962 = vmatprep.subr.bf16.mxu0 0
        %3963 = vmatpush1.bf16.msra.mxu0 0
        %3964 = vmatprep.subr.bf16.mxu0 0
        %3965 = vmatpush1.bf16.msra.mxu0 0
        %3966 = vmatprep.subr.bf16.mxu0 0
        %3967 = vmatpush1.bf16.msra.mxu0 0
        %3968 = vmatprep.subr.bf16.mxu0 0
        %3969 = vmatpush1.bf16.msra.mxu0 0
        %3970 = vmatprep.mubr.bf16.mxu0 0
        %3971 = vmatmul.mubr.bf16.gmra.mrb[0].mxu0 %v3807
        %v3972 = vpop.f32.mrb[0].mxu0
        %v3973 = vadd.f32 %v3789, %v3972
        %v3974 = vpop.f32.mrb[0].mxu0
        %v3975 = vadd.f32 %v3790, %v3974
        %v3976 = vpop.f32.mrb[0].mxu0
        %v3977 = vadd.f32 %v3797, %v3976
        %v3978 = vpop.f32.mrb[0].mxu0
        %v3979 = vadd.f32 %v3798, %v3978
        %3980 = vdwg.mxu0
        %v3981 = vld [vmem:[%s8] sm:$0xff]
        %v3982 = vld [vmem:[%s8 + $0x8] sm:$0xff]
        %3984 = vset.pattern.permute.xlu0 0
        %3985 = vperm.xlu0 %3984, %v3981
        %v3986 = vpop.permute.xlu0 %3985
        %3989 = vset.pattern.permute.xlu0 0
        %3990 = vperm.xlu0 %3989, %v3982
        %v3991 = vpop.permute.xlu0 %3990
        %v3993 = vadd.f32 %v3844, %v3986
        %v3994 = vadd.f32 %v3846, %v3986
        %v3995 = vadd.f32 %v3887, %v3986
        %v3996 = vadd.f32 %v3889, %v3986
        %v3997 = vadd.f32 %v3930, %v3986
        %v3998 = vadd.f32 %v3932, %v3986
        %v3999 = vadd.f32 %v3973, %v3986
        %v4000 = vadd.f32 %v3975, %v3986
        %v4001 = vadd.f32 %v3848, %v3991
        %v4002 = vadd.f32 %v3850, %v3991
        %v4003 = vadd.f32 %v3891, %v3991
        %v4004 = vadd.f32 %v3893, %v3991
        %v4005 = vadd.f32 %v3934, %v3991
        %v4006 = vadd.f32 %v3936, %v3991
        %v4007 = vadd.f32 %v3977, %v3991
        %v4008 = vadd.f32 %v3979, %v3991
        %v4009 = vmax.f32 %v3993, 0.0
        %v4010 = vmax.f32 %v3994, 0.0
        %v4011 = vmax.f32 %v3995, 0.0
        %v4012 = vmax.f32 %v3996, 0.0
        %v4013 = vmax.f32 %v3997, 0.0
        %v4014 = vmax.f32 %v3998, 0.0
        %v4015 = vmax.f32 %v3999, 0.0
        %v4016 = vmax.f32 %v4000, 0.0
        %v4017 = vmax.f32 %v4001, 0.0
        %v4018 = vmax.f32 %v4002, 0.0
        %v4019 = vmax.f32 %v4003, 0.0
        %v4020 = vmax.f32 %v4004, 0.0
        %v4021 = vmax.f32 %v4005, 0.0
        %v4022 = vmax.f32 %v4006, 0.0
        %v4023 = vmax.f32 %v4007, 0.0
        %v4024 = vmax.f32 %v4008, 0.0
        %v4025 = vpack.c.bf16 %v4017, %v4009
        %v4026 = vpack.c.bf16 %v4018, %v4010
        %v4027 = vpack.c.bf16 %v4019, %v4011
        %v4028 = vpack.c.bf16 %v4020, %v4012
        %v4029 = vpack.c.bf16 %v4021, %v4013
        %v4030 = vpack.c.bf16 %v4022, %v4014
        %v4031 = vpack.c.bf16 %v4023, %v4015
        %v4032 = vpack.c.bf16 %v4024, %v4016
        %v4033 = vld [vmem:[%s9] sm:$0x3]
        %v4034 = vld [vmem:[%s10] sm:$0x7]
        %4036 = vset.pattern.permute.xlu0 0
        %4037 = vperm.xlu0 %4036, %v4034
        %v4038 = vpop.permute.xlu0 %4037
        %vm4040 = vcmask 130048
        %v4042 = vsel %vm4040, %v4033, 0
        %4044 = vmatprep.subr.bf16.mxu0 %v4026
        %4045 = vmatpush1.bf16.msra.mxu0 %v4025
        %4046 = vmatprep.subr.bf16.mxu0 0
        %4047 = vmatpush1.bf16.msra.mxu0 0
        %4048 = vmatprep.subr.bf16.mxu0 0
        %4049 = vmatpush1.bf16.msra.mxu0 0
        %4050 = vmatprep.subr.bf16.mxu0 0
        %4051 = vmatpush1.bf16.msra.mxu0 0
        %4052 = vmatprep.subr.bf16.mxu0 0
        %4053 = vmatpush1.bf16.msra.mxu0 0
        %4054 = vmatprep.subr.bf16.mxu0 0
        %4055 = vmatpush1.bf16.msra.mxu0 0
        %4056 = vmatprep.subr.bf16.mxu0 0
        %4057 = vmatpush1.bf16.msra.mxu0 0
        %4058 = vmatprep.subr.bf16.mxu0 0
        %4059 = vmatpush1.bf16.msra.mxu0 0
        %4060 = vmatprep.subr.bf16.mxu0 0
        %4061 = vmatpush1.bf16.msra.mxu0 0
        %4062 = vmatprep.subr.bf16.mxu0 0
        %4063 = vmatpush1.bf16.msra.mxu0 0
        %4064 = vmatprep.subr.bf16.mxu0 0
        %4065 = vmatpush1.bf16.msra.mxu0 0
        %4066 = vmatprep.subr.bf16.mxu0 0
        %4067 = vmatpush1.bf16.msra.mxu0 0
        %4068 = vmatprep.subr.bf16.mxu0 0
        %4069 = vmatpush1.bf16.msra.mxu0 0
        %4070 = vmatprep.subr.bf16.mxu0 0
        %4071 = vmatpush1.bf16.msra.mxu0 0
        %4072 = vmatprep.subr.bf16.mxu0 0
        %4073 = vmatpush1.bf16.msra.mxu0 0
        %4074 = vmatprep.subr.bf16.mxu0 0
        %4075 = vmatpush1.bf16.msra.mxu0 0
        %4076 = vmatprep.mubr.bf16.mxu0 0
        %4077 = vmatmul.mubr.bf16.gmra.mrb[0].mxu0 %v4042
        %v4078 = vpop.f32.mrb[0].mxu0
        %v4079 = vadd.f32 %v4038, %v4078
        %v4080 = vpop.f32.mrb[0].mxu0
        %v4081 = vadd.f32 %v4038, %v4080
        %v4082 = vpop.f32.mrb[0].mxu0
        %v4083 = vpop.f32.mrb[0].mxu0
        %4084 = vdwg.mxu0
        %4085 = vmatprep.subr.bf16.mxu0 %v4028
        %4086 = vmatpush1.bf16.msra.mxu0 %v4027
        %4087 = vmatprep.subr.bf16.mxu0 0
        %4088 = vmatpush1.bf16.msra.mxu0 0
        %4089 = vmatprep.subr.bf16.mxu0 0
        %4090 = vmatpush1.bf16.msra.mxu0 0
        %4091 = vmatprep.subr.bf16.mxu0 0
        %4092 = vmatpush1.bf16.msra.mxu0 0
        %4093 = vmatprep.subr.bf16.mxu0 0
        %4094 = vmatpush1.bf16.msra.mxu0 0
        %4095 = vmatprep.subr.bf16.mxu0 0
        %4096 = vmatpush1.bf16.msra.mxu0 0
        %4097 = vmatprep.subr.bf16.mxu0 0
        %4098 = vmatpush1.bf16.msra.mxu0 0
        %4099 = vmatprep.subr.bf16.mxu0 0
        %4100 = vmatpush1.bf16.msra.mxu0 0
        %4101 = vmatprep.subr.bf16.mxu0 0
        %4102 = vmatpush1.bf16.msra.mxu0 0
        %4103 = vmatprep.subr.bf16.mxu0 0
        %4104 = vmatpush1.bf16.msra.mxu0 0
        %4105 = vmatprep.subr.bf16.mxu0 0
        %4106 = vmatpush1.bf16.msra.mxu0 0
        %4107 = vmatprep.subr.bf16.mxu0 0
        %4108 = vmatpush1.bf16.msra.mxu0 0
        %4109 = vmatprep.subr.bf16.mxu0 0
        %4110 = vmatpush1.bf16.msra.mxu0 0
        %4111 = vmatprep.subr.bf16.mxu0 0
        %4112 = vmatpush1.bf16.msra.mxu0 0
        %4113 = vmatprep.subr.bf16.mxu0 0
        %4114 = vmatpush1.bf16.msra.mxu0 0
        %4115 = vmatprep.subr.bf16.mxu0 0
        %4116 = vmatpush1.bf16.msra.mxu0 0
        %4117 = vmatprep.mubr.bf16.mxu0 0
        %4118 = vmatmul.mubr.bf16.gmra.mrb[0].mxu0 %v4042
        %v4119 = vpop.f32.mrb[0].mxu0
        %v4120 = vadd.f32 %v4038, %v4119
        %v4121 = vpop.f32.mrb[0].mxu0
        %v4122 = vadd.f32 %v4038, %v4121
        %v4123 = vpop.f32.mrb[0].mxu0
        %v4124 = vpop.f32.mrb[0].mxu0
        %4125 = vdwg.mxu0
        %4126 = vmatprep.subr.bf16.mxu0 %v4030
        %4127 = vmatpush1.bf16.msra.mxu0 %v4029
        %4128 = vmatprep.subr.bf16.mxu0 0
        %4129 = vmatpush1.bf16.msra.mxu0 0
        %4130 = vmatprep.subr.bf16.mxu0 0
        %4131 = vmatpush1.bf16.msra.mxu0 0
        %4132 = vmatprep.subr.bf16.mxu0 0
        %4133 = vmatpush1.bf16.msra.mxu0 0
        %4134 = vmatprep.subr.bf16.mxu0 0
        %4135 = vmatpush1.bf16.msra.mxu0 0
        %4136 = vmatprep.subr.bf16.mxu0 0
        %4137 = vmatpush1.bf16.msra.mxu0 0
        %4138 = vmatprep.subr.bf16.mxu0 0
        %4139 = vmatpush1.bf16.msra.mxu0 0
        %4140 = vmatprep.subr.bf16.mxu0 0
        %4141 = vmatpush1.bf16.msra.mxu0 0
        %4142 = vmatprep.subr.bf16.mxu0 0
        %4143 = vmatpush1.bf16.msra.mxu0 0
        %4144 = vmatprep.subr.bf16.mxu0 0
        %4145 = vmatpush1.bf16.msra.mxu0 0
        %4146 = vmatprep.subr.bf16.mxu0 0
        %4147 = vmatpush1.bf16.msra.mxu0 0
        %4148 = vmatprep.subr.bf16.mxu0 0
        %4149 = vmatpush1.bf16.msra.mxu0 0
        %4150 = vmatprep.subr.bf16.mxu0 0
        %4151 = vmatpush1.bf16.msra.mxu0 0
        %4152 = vmatprep.subr.bf16.mxu0 0
        %4153 = vmatpush1.bf16.msra.mxu0 0
        %4154 = vmatprep.subr.bf16.mxu0 0
        %4155 = vmatpush1.bf16.msra.mxu0 0
        %4156 = vmatprep.subr.bf16.mxu0 0
        %4157 = vmatpush1.bf16.msra.mxu0 0
        %4158 = vmatprep.mubr.bf16.mxu0 0
        %4159 = vmatmul.mubr.bf16.gmra.mrb[0].mxu0 %v4042
        %v4160 = vpop.f32.mrb[0].mxu0
        %v4161 = vadd.f32 %v4038, %v4160
        %v4162 = vpop.f32.mrb[0].mxu0
        %v4163 = vadd.f32 %v4038, %v4162
        %v4164 = vpop.f32.mrb[0].mxu0
        %v4165 = vpop.f32.mrb[0].mxu0
        %4166 = vdwg.mxu0
        %4167 = vmatprep.subr.bf16.mxu0 %v4032
        %4168 = vmatpush1.bf16.msra.mxu0 %v4031
        %4169 = vmatprep.subr.bf16.mxu0 0
        %4170 = vmatpush1.bf16.msra.mxu0 0
        %4171 = vmatprep.subr.bf16.mxu0 0
        %4172 = vmatpush1.bf16.msra.mxu0 0
        %4173 = vmatprep.subr.bf16.mxu0 0
        %4174 = vmatpush1.bf16.msra.mxu0 0
        %4175 = vmatprep.subr.bf16.mxu0 0
        %4176 = vmatpush1.bf16.msra.mxu0 0
        %4177 = vmatprep.subr.bf16.mxu0 0
        %4178 = vmatpush1.bf16.msra.mxu0 0
        %4179 = vmatprep.subr.bf16.mxu0 0
        %4180 = vmatpush1.bf16.msra.mxu0 0
        %4181 = vmatprep.subr.bf16.mxu0 0
        %4182 = vmatpush1.bf16.msra.mxu0 0
        %4183 = vmatprep.subr.bf16.mxu0 0
        %4184 = vmatpush1.bf16.msra.mxu0 0
        %4185 = vmatprep.subr.bf16.mxu0 0
        %4186 = vmatpush1.bf16.msra.mxu0 0
        %4187 = vmatprep.subr.bf16.mxu0 0
        %4188 = vmatpush1.bf16.msra.mxu0 0
        %4189 = vmatprep.subr.bf16.mxu0 0
        %4190 = vmatpush1.bf16.msra.mxu0 0
        %4191 = vmatprep.subr.bf16.mxu0 0
        %4192 = vmatpush1.bf16.msra.mxu0 0
        %4193 = vmatprep.subr.bf16.mxu0 0
        %4194 = vmatpush1.bf16.msra.mxu0 0
        %4195 = vmatprep.subr.bf16.mxu0 0
        %4196 = vmatpush1.bf16.msra.mxu0 0
        %4197 = vmatprep.subr.bf16.mxu0 0
        %4198 = vmatpush1.bf16.msra.mxu0 0
        %4199 = vmatprep.mubr.bf16.mxu0 0
        %4200 = vmatmul.mubr.bf16.gmra.mrb[0].mxu0 %v4042
        %v4201 = vpop.f32.mrb[0].mxu0
        %v4202 = vadd.f32 %v4038, %v4201
        %v4203 = vpop.f32.mrb[0].mxu0
        %v4204 = vadd.f32 %v4038, %v4203
        %v4205 = vpop.f32.mrb[0].mxu0
        %v4206 = vpop.f32.mrb[0].mxu0
        %4207 = vdwg.mxu0
        %v4216 = vrot.slane %v3372, 5
        %v4217 = vrot.slane %v3374, 5
        %v4218 = vrot.slane %v3433, 5
        %v4219 = vrot.slane %v3435, 5
        %v4220 = vrot.slane %v3494, 5
        %v4221 = vrot.slane %v3496, 5
        %v4222 = vrot.slane %v3555, 5
        %v4223 = vrot.slane %v3557, 5
        %vm4232 = vcmask 1042432
        %v4233 = vsel %vm4232, %v4079, %v4216
        %v4234 = vsel %vm4232, %v4081, %v4217
        %v4235 = vsel %vm4232, %v4120, %v4218
        %v4236 = vsel %vm4232, %v4122, %v4219
        %v4237 = vsel %vm4232, %v4161, %v4220
        %v4238 = vsel %vm4232, %v4163, %v4221
        %v4239 = vsel %vm4232, %v4202, %v4222
        %v4240 = vsel %vm4232, %v4204, %v4223
        %v4249 = vcombine.low %v4233, %v4234
        %v4250 = vcombine.low %v4235, %v4236
        %v4251 = vcombine.low %v4237, %v4238
        %v4252 = vcombine.low %v4239, %v4240
        %4257 = vst [vmem:[%s380] sm:$0xff] %v4249
        %4258 = vst [vmem:[%s380 + $0x8] sm:$0xff] %v4250
        %4259 = vst [vmem:[%s380 + $0x10] sm:$0xff] %v4251
        %4260 = vst [vmem:[%s380 + $0x18] sm:$0xff] %v4252
        %s4261 = sand.u32 %s269, 1
        %s4262 = scalar_lea.sflag [#allocation3], %s4261
        %s4263 = sand.u32 %s269, 1
        %s4264 = smul.addr %s4263, 32
        %s4265 = scalar_lea.vmem [#allocation2], %s4264
        // Predicated region
        $region65: #{tpu_custom_call.1} parent=63 // pred_check
          %p4266 = pneg %p279
        $region66: #{tpu_custom_call.1} parent=63 // pred_check_branch
          %4268 = sbr.rel (%p4266) target = $region68
        $region67: #{tpu_custom_call.1} parent=63 // pred_region
          %s4269 = smul.u32 8, %s25
          %s4271 = ssub.s32 512, 512
          %4272 = vsyncadd %s4262, %s4271
          %s4273 = smul.addr %s4269, 64
          %s4274 = scalar_lea.hbm %s11, %s4273
          %s4276 = sshll.u32 %s4265, 4
          %s4277 = int_to_ptr.vmem [resolvable:$true] %s4276
          %4279 = dma.vmem_to_hbm [thread:$0]  %s4277, 512, %s4274, %s4262
        $region68: #{tpu_custom_call.1} parent=63 // pred_fallthru
          _
      $region64: #{tpu_custom_call.1} parent=5 // pred_fallthru
        _
      %p4280 = scmp.le.s32.totalorder 2, %s20
      // Predicated region
      $region69: #{tpu_custom_call.1} parent=5 // pred_check
        %p4281 = pneg %p4280
      $region70: #{tpu_custom_call.1} parent=5 // pred_check_branch
        %4283 = sbr.rel (%p4281) target = $region72
      $region71: #{tpu_custom_call.1} parent=5 // pred_region
        %s4284 = ssub.s32 %s20, 2
        // Predicated region
        $region73: #{tpu_custom_call.1} parent=71 // pred_check
          %p4285 = pneg %p285
        $region74: #{tpu_custom_call.1} parent=71 // pred_check_branch
          %4287 = sbr.rel (%p4285) target = $region76
        $region75: #{tpu_custom_call.1} parent=71 // pred_region
          %s4288 = sand.u32 %s270, 1
          %s4289 = scalar_lea.sflag [#allocation3], %s4288
          %s4290 = sand.u32 %s270, 1
          %s4291 = smul.addr %s4290, 32
          %s4292 = scalar_lea.vmem [#allocation2], %s4291
          %4293 = dma.done %s4289, 512
        $region76: #{tpu_custom_call.1} parent=71 // pred_fallthru
          _
      $region72: #{tpu_custom_call.1} parent=5 // pred_fallthru
        _
    $region6: #{tpu_custom_call.1} parent=1 // loop_footer
      %s24 = sadd.s32 1, %s20
    $region7: #{tpu_custom_call.1} parent=1 // loop_footer_branch
      %19 = sbr.rel target = $region3
    $region8: #{tpu_custom_call.1} parent=1 // loop_exit
      _
    %4294 = vsyncpa [#allocation3], 1
    %s4295 = scalar_lea.sflag [#allocation3], 1
    %4296 = vsyncpa %s4295, 1

</llo_original>
